<compile_context>
chip_gen: v7x
topology: tpu7x:2x2x1
jax: 0.10.0
libtpu: 0.0.40
codegen_flags: <defaults>
</compile_context>

<pallas_src>
import functools

import jax
import jax.numpy as jnp
from jax import lax
from jax.experimental import pallas as pl
from jax.experimental.pallas import tpu as pltpu

_LEAKY_SLOPE = 0.01  # nn.LeakyReLU default negative_slope
_BN_EPS = 1e-5       # nn.BatchNorm2d default eps


def _tap_masks(cout, H, W):
    """9 boundary masks over the flattened (cout, H*W) layout.

    masks[t][co, h*W + w] is True iff the source pixel (h+dh, w+dw) of tap
    t = (dh+1)*3 + (dw+1) lies inside the image (i.e. the rolled value is NOT
    wrap-around garbage).  The centre tap needs no mask -> None.
    """
    HW = H * W
    pos = lax.broadcasted_iota(jnp.int32, (cout, HW), 1)   # flattened spatial idx
    # Column index within a row (avoid vector integer div/mod when W is pow2).
    if W & (W - 1) == 0:
        w_idx = pos & (W - 1)
    else:
        w_idx = pos % W   # general case; W is a power of two in typical UNets
    masks = []
    for dh in (-1, 0, 1):
        for dw in (-1, 0, 1):
            conds = []
            if dh == -1:
                conds.append(pos >= W)               # h >= 1
            elif dh == 1:
                conds.append(pos < (H - 1) * W)      # h <= H-2
            if dw == -1:
                conds.append(w_idx >= 1)
            elif dw == 1:
                conds.append(w_idx <= W - 2)
            if not conds:
                masks.append(None)                   # centre tap: always valid
            else:
                m = conds[0]
                for c in conds[1:]:
                    m = m & c
                masks.append(m)
    return masks


def _conv3x3_bn_lrelu(x, w_ref, b_ref, masks, cin, cout, H, W):
    """3x3 'same' conv + folded-BN bias + LeakyReLU, lane-dense VPU formulation.

    x      : (cin, H*W) f32 value (lane axis = flattened spatial)
    w_ref  : (cout, cin*9) f32 VMEM ref, column index ci*9 + (dh+1)*3 + (dw+1)
    b_ref  : (cout, 1) f32 VMEM ref (folded BN shift)
    masks  : list of 9 (cout, H*W) bool masks (None for the centre tap)
    returns: (cout, H*W) f32
    """
    HW = H * W
    acc = jnp.zeros((cout, HW), jnp.float32)
    t = 0
    for dh in (-1, 0, 1):
        for dw in (-1, 0, 1):
            shift = (-(dh * W + dw)) % HW
            # One lane-axis roll covers every input channel of this tap (XLU).
            rolled = x if shift == 0 else pltpu.roll(x, shift, axis=1)
            partial = None
            for ci in range(cin):
                col = ci * 9 + t
                w_col = w_ref[:, col:col + 1]                         # (cout, 1)
                xi = jnp.broadcast_to(rolled[ci:ci + 1, :], (cout, HW))
                term = w_col * xi                                     # all cout at once
                partial = term if partial is None else partial + term
            if masks[t] is None:
                acc = acc + partial
            else:
                acc = acc + jnp.where(masks[t], partial, 0.0)
            t += 1
    y = acc + b_ref[...]                                  # (cout,1) bias, lane-bcast
    return jnp.where(y >= 0.0, y, _LEAKY_SLOPE * y)       # LeakyReLU


def _convblock_kernel(x_ref, w1_ref, b1_ref, w2_ref, b2_ref, o_ref, *, H, W):
    # x_ref : (nb, Cin,  H*W)   lane-dense input block
    # w*_ref: (Cout, C*9) VMEM  folded conv+BN weights
    # b*_ref: (Cout, 1)   VMEM  folded BN shift
    # o_ref : (nb, Cout, H*W)   lane-dense output block
    nb, cin, _ = x_ref.shape
    cout = o_ref.shape[1]
    masks = _tap_masks(cout, H, W)       # shared by both convs & all nb elements
    for b in range(nb):
        x = x_ref[b].astype(jnp.float32)                                  # (cin, HW)
        # conv1 + BN1 + LeakyReLU (Dropout2d == identity in inference mode)
        h = _conv3x3_bn_lrelu(x, w1_ref, b1_ref, masks, cin, cout, H, W)
        # conv2 + BN2 + LeakyReLU — intermediate `h` never leaves registers.
        y = _conv3x3_bn_lrelu(h, w2_ref, b2_ref, masks, cout, cout, H, W)
        o_ref[b] = y.astype(o_ref.dtype)                 # single lane-dense store


def _fold_bn(w, gamma, beta, mean, var, eps=_BN_EPS):
    """Fold inference-mode BatchNorm into the bias-free conv.
    Returns (Cout, Cin*9) scaled weights (column = ci*9 + kh*3 + kw) and a
    (Cout, 1) bias."""
    cout = w.shape[0]
    scale = gamma / jnp.sqrt(var + eps)                      # (Cout,)
    w_f = (w * scale[:, None, None, None]).reshape(cout, -1)  # (Cout, Cin*9)
    b_f = (beta - mean * scale).reshape(cout, 1)               # (Cout, 1)
    return w_f.astype(jnp.float32), b_f.astype(jnp.float32)


def convblock_forward(x, w1, bn1, w2, bn2, *, batch_block=None):
    """x: (N, Cin, H, W) NCHW.  w1: (Cout, Cin, 3, 3); w2: (Cout, Cout, 3, 3).
    bn1/bn2: (gamma, beta, running_mean, running_var).  Inference-mode forward."""
    N, Cin, H, W = x.shape
    Cout = w1.shape[0]
    assert w1.shape == (Cout, Cin, 3, 3) and w2.shape == (Cout, Cout, 3, 3)
    HW = H * W

    if batch_block is None:
        # Amortize per-grid-step overhead but keep >=2 parallel grid steps so
        # both TensorCores get work on v7x.
        batch_block = 1
        for nb_try in (4, 2):
            if N % nb_try == 0 and N // nb_try >= 2:
                batch_block = nb_try
                break
    nb = batch_block
    assert N % nb == 0

    w1f, b1f = _fold_bn(w1, *bn1)
    w2f, b2f = _fold_bn(w2, *bn2)

    # Contiguous merge of the two trailing dims: metadata-only, no HBM pass.
    x_flat = x.reshape(N, Cin, HW)

    kernel = functools.partial(_convblock_kernel, H=H, W=W)
    out_flat = pl.pallas_call(
        kernel,
        out_shape=jax.ShapeDtypeStruct((N, Cout, HW), x.dtype),
        grid_spec=pltpu.PrefetchScalarGridSpec(
            num_scalar_prefetch=0,
            grid=(N // nb,),
            in_specs=[
                pl.BlockSpec((nb, Cin, HW), lambda n: (n, 0, 0)),
                # Constant-index weight/bias blocks: fetched once, reused across steps.
                pl.BlockSpec((Cout, Cin * 9), lambda n: (0, 0)),
                pl.BlockSpec((Cout, 1), lambda n: (0, 0)),
                pl.BlockSpec((Cout, Cout * 9), lambda n: (0, 0)),
                pl.BlockSpec((Cout, 1), lambda n: (0, 0)),
            ],
            out_specs=pl.BlockSpec((nb, Cout, HW), lambda n: (n, 0, 0)),
        ),
        compiler_params=pltpu.CompilerParams(
            dimension_semantics=("parallel",)),
    )(x_flat, w1f, b1f, w2f, b2f)
    return out_flat.reshape(N, Cout, H, W)


if __name__ == "__main__":
    key = jax.random.PRNGKey(0)
    ks = jax.random.split(key, 5)

    N, Cin, Cout, H, W = 2, 4, 8, 16, 16

    x = jax.random.normal(ks[0], (N, Cin, H, W), dtype=jnp.float32)

    bw1 = 1.0 / (Cin * 9) ** 0.5
    bw2 = 1.0 / (Cout * 9) ** 0.5
    w1 = jax.random.uniform(ks[1], (Cout, Cin, 3, 3), minval=-bw1, maxval=bw1,
                            dtype=jnp.float32)
    w2 = jax.random.uniform(ks[2], (Cout, Cout, 3, 3), minval=-bw2, maxval=bw2,
                            dtype=jnp.float32)

    def rand_bn(k):
        k1, k2, k3, k4 = jax.random.split(k, 4)
        gamma = jax.random.uniform(k1, (Cout,), minval=0.5, maxval=1.5,
                                   dtype=jnp.float32)
        beta = 0.1 * jax.random.normal(k2, (Cout,), dtype=jnp.float32)
        mean = 0.1 * jax.random.normal(k3, (Cout,), dtype=jnp.float32)
        var = jax.random.uniform(k4, (Cout,), minval=0.5, maxval=1.5,
                                 dtype=jnp.float32)
        return gamma, beta, mean, var

    bn1 = rand_bn(ks[3])
    bn2 = rand_bn(ks[4])

    out = convblock_forward(x, w1, bn1, w2, bn2)
    out = jax.block_until_ready(out)
    assert out.shape == (N, Cout, H, W)

    # Pure-JAX reference of the PyTorch forward (inference mode).
    def conv(a, w):
        return jax.lax.conv_general_dilated(
            a, w, window_strides=(1, 1), padding="SAME",
            dimension_numbers=("NCHW", "OIHW", "NCHW"))

    def bn(a, p):
        g, b, m, v = p
        return ((a - m[None, :, None, None])
                / jnp.sqrt(v[None, :, None, None] + _BN_EPS)
                * g[None, :, None, None] + b[None, :, None, None])

    def lrelu(a):
        return jnp.where(a >= 0, a, _LEAKY_SLOPE * a)

    h_ref = lrelu(bn(conv(x, w1), bn1))
    ref = lrelu(bn(conv(h_ref, w2), bn2))

    err = float(jnp.max(jnp.abs(out - ref)))
    assert jnp.allclose(out, ref, atol=1e-4, rtol=1e-4), err

    print("KERNEL_OK")
</pallas_src>

<mosaic_0001>
module attributes {stable_mosaic.version = 11 : i64} {
  func.func @_convblock_kernel(%arg0: i32, %arg1: memref<1x4x256xf32, #tpu.memory_space<vmem>>, %arg2: memref<8x36xf32, #tpu.memory_space<vmem>>, %arg3: memref<8x1xf32, #tpu.memory_space<vmem>>, %arg4: memref<8x72xf32, #tpu.memory_space<vmem>>, %arg5: memref<8x1xf32, #tpu.memory_space<vmem>>, %arg6: memref<1x8x256xf32, #tpu.memory_space<vmem>>) attributes {dimension_semantics = [#tpu.dimension_semantics<parallel>], iteration_bounds = array<i64: 2>, scalar_prefetch = 0 : i64, scratch_operands = 0 : i64, tpu.core_type = #tpu.core_type<tc>, window_params = [{transform_indices = @transform_0, window_bounds = array<i64: 1, 4, 256>}, {pipeline_mode = #tpu.pipeline_mode<synchronous>, transform_indices = @transform_1, window_bounds = array<i64: 8, 36>}, {pipeline_mode = #tpu.pipeline_mode<synchronous>, transform_indices = @transform_2, window_bounds = array<i64: 8, 1>}, {pipeline_mode = #tpu.pipeline_mode<synchronous>, transform_indices = @transform_3, window_bounds = array<i64: 8, 72>}, {pipeline_mode = #tpu.pipeline_mode<synchronous>, transform_indices = @transform_4, window_bounds = array<i64: 8, 1>}, {transform_indices = @transform_5, window_bounds = array<i64: 1, 8, 256>}]} {
    %0 = tpu.iota {dimensions = array<i32: 1>} : vector<8x256xi32>
    %c15_i32 = arith.constant 15 : i32
    %1 = vector.broadcast %c15_i32 : i32 to vector<8x256xi32>
    %2 = arith.andi %0, %1 : vector<8x256xi32>
    %c16_i32 = arith.constant 16 : i32
    %3 = vector.broadcast %c16_i32 : i32 to vector<8x256xi32>
    %4 = arith.cmpi sge, %0, %3 : vector<8x256xi32>
    %c1_i32 = arith.constant 1 : i32
    %5 = vector.broadcast %c1_i32 : i32 to vector<8x256xi32>
    %6 = arith.cmpi sge, %2, %5 : vector<8x256xi32>
    %7 = arith.andi %4, %6 : vector<8x256xi1>
    %c16_i32_0 = arith.constant 16 : i32
    %8 = vector.broadcast %c16_i32_0 : i32 to vector<8x256xi32>
    %9 = arith.cmpi sge, %0, %8 : vector<8x256xi32>
    %c16_i32_1 = arith.constant 16 : i32
    %10 = vector.broadcast %c16_i32_1 : i32 to vector<8x256xi32>
    %11 = arith.cmpi sge, %0, %10 : vector<8x256xi32>
    %c14_i32 = arith.constant 14 : i32
    %12 = vector.broadcast %c14_i32 : i32 to vector<8x256xi32>
    %13 = arith.cmpi sle, %2, %12 : vector<8x256xi32>
    %14 = arith.andi %11, %13 : vector<8x256xi1>
    %c1_i32_2 = arith.constant 1 : i32
    %15 = vector.broadcast %c1_i32_2 : i32 to vector<8x256xi32>
    %16 = arith.cmpi sge, %2, %15 : vector<8x256xi32>
    %c14_i32_3 = arith.constant 14 : i32
    %17 = vector.broadcast %c14_i32_3 : i32 to vector<8x256xi32>
    %18 = arith.cmpi sle, %2, %17 : vector<8x256xi32>
    %c240_i32 = arith.constant 240 : i32
    %19 = vector.broadcast %c240_i32 : i32 to vector<8x256xi32>
    %20 = arith.cmpi slt, %0, %19 : vector<8x256xi32>
    %c1_i32_4 = arith.constant 1 : i32
    %21 = vector.broadcast %c1_i32_4 : i32 to vector<8x256xi32>
    %22 = arith.cmpi sge, %2, %21 : vector<8x256xi32>
    %23 = arith.andi %20, %22 : vector<8x256xi1>
    %c240_i32_5 = arith.constant 240 : i32
    %24 = vector.broadcast %c240_i32_5 : i32 to vector<8x256xi32>
    %25 = arith.cmpi slt, %0, %24 : vector<8x256xi32>
    %c240_i32_6 = arith.constant 240 : i32
    %26 = vector.broadcast %c240_i32_6 : i32 to vector<8x256xi32>
    %27 = arith.cmpi slt, %0, %26 : vector<8x256xi32>
    %c14_i32_7 = arith.constant 14 : i32
    %28 = vector.broadcast %c14_i32_7 : i32 to vector<8x256xi32>
    %29 = arith.cmpi sle, %2, %28 : vector<8x256xi32>
    %30 = arith.andi %27, %29 : vector<8x256xi1>
    %c0 = arith.constant 0 : index
    %c0_8 = arith.constant 0 : index
    %c0_9 = arith.constant 0 : index
    %31 = vector.load %arg1[%c0, %c0_8, %c0_9] : memref<1x4x256xf32, #tpu.memory_space<vmem>>, vector<1x4x256xf32>
    %32 = vector.shape_cast %31 : vector<1x4x256xf32> to vector<4x256xf32>
    %cst = arith.constant 0.000000e+00 : f32
    %33 = vector.broadcast %cst : f32 to vector<8x256xf32>
    %c17_i32 = arith.constant 17 : i32
    %34 = tpu.dynamic_rotate %32 by %c17_i32 dim 1 : vector<4x256xf32>, i32 -> vector<4x256xf32>
    %c0_10 = arith.constant 0 : index
    %c0_11 = arith.constant 0 : index
    %35 = vector.load %arg2[%c0_10, %c0_11] : memref<8x36xf32, #tpu.memory_space<vmem>>, vector<8x1xf32>
    %36 = vector.extract_strided_slice %34 {offsets = [0, 0], sizes = [1, 256], strides = [1, 1]} : vector<4x256xf32> to vector<1x256xf32>
    %37 = vector.shape_cast %36 : vector<1x256xf32> to vector<1x256xf32>
    %38 = vector.broadcast %37 : vector<1x256xf32> to vector<8x256xf32>
    %39 = vector.broadcast %35 : vector<8x1xf32> to vector<8x256xf32>
    %40 = arith.mulf %39, %38 : vector<8x256xf32>
    %c0_12 = arith.constant 0 : index
    %c9 = arith.constant 9 : index
    %41 = vector.load %arg2[%c0_12, %c9] : memref<8x36xf32, #tpu.memory_space<vmem>>, vector<8x1xf32>
    %42 = vector.extract_strided_slice %34 {offsets = [1, 0], sizes = [1, 256], strides = [1, 1]} : vector<4x256xf32> to vector<1x256xf32>
    %43 = vector.shape_cast %42 : vector<1x256xf32> to vector<1x256xf32>
    %44 = vector.broadcast %43 : vector<1x256xf32> to vector<8x256xf32>
    %45 = vector.broadcast %41 : vector<8x1xf32> to vector<8x256xf32>
    %46 = arith.mulf %45, %44 : vector<8x256xf32>
    %47 = arith.addf %40, %46 : vector<8x256xf32>
    %c0_13 = arith.constant 0 : index
    %c18 = arith.constant 18 : index
    %48 = vector.load %arg2[%c0_13, %c18] : memref<8x36xf32, #tpu.memory_space<vmem>>, vector<8x1xf32>
    %49 = vector.extract_strided_slice %34 {offsets = [2, 0], sizes = [1, 256], strides = [1, 1]} : vector<4x256xf32> to vector<1x256xf32>
    %50 = vector.shape_cast %49 : vector<1x256xf32> to vector<1x256xf32>
    %51 = vector.broadcast %50 : vector<1x256xf32> to vector<8x256xf32>
    %52 = vector.broadcast %48 : vector<8x1xf32> to vector<8x256xf32>
    %53 = arith.mulf %52, %51 : vector<8x256xf32>
    %54 = arith.addf %47, %53 : vector<8x256xf32>
    %c0_14 = arith.constant 0 : index
    %c27 = arith.constant 27 : index
    %55 = vector.load %arg2[%c0_14, %c27] : memref<8x36xf32, #tpu.memory_space<vmem>>, vector<8x1xf32>
    %56 = vector.extract_strided_slice %34 {offsets = [3, 0], sizes = [1, 256], strides = [1, 1]} : vector<4x256xf32> to vector<1x256xf32>
    %57 = vector.shape_cast %56 : vector<1x256xf32> to vector<1x256xf32>
    %58 = vector.broadcast %57 : vector<1x256xf32> to vector<8x256xf32>
    %59 = vector.broadcast %55 : vector<8x1xf32> to vector<8x256xf32>
    %60 = arith.mulf %59, %58 : vector<8x256xf32>
    %61 = arith.addf %54, %60 : vector<8x256xf32>
    %cst_15 = arith.constant 0.000000e+00 : f32
    %62 = vector.broadcast %cst_15 : f32 to vector<8x256xf32>
    %63 = arith.select %7, %61, %62 : vector<8x256xi1>, vector<8x256xf32>
    %64 = arith.addf %33, %63 : vector<8x256xf32>
    %c16_i32_16 = arith.constant 16 : i32
    %65 = tpu.dynamic_rotate %32 by %c16_i32_16 dim 1 : vector<4x256xf32>, i32 -> vector<4x256xf32>
    %c0_17 = arith.constant 0 : index
    %c1 = arith.constant 1 : index
    %66 = vector.load %arg2[%c0_17, %c1] : memref<8x36xf32, #tpu.memory_space<vmem>>, vector<8x1xf32>
    %67 = vector.extract_strided_slice %65 {offsets = [0, 0], sizes = [1, 256], strides = [1, 1]} : vector<4x256xf32> to vector<1x256xf32>
    %68 = vector.shape_cast %67 : vector<1x256xf32> to vector<1x256xf32>
    %69 = vector.broadcast %68 : vector<1x256xf32> to vector<8x256xf32>
    %70 = vector.broadcast %66 : vector<8x1xf32> to vector<8x256xf32>
    %71 = arith.mulf %70, %69 : vector<8x256xf32>
    %c0_18 = arith.constant 0 : index
    %c10 = arith.constant 10 : index
    %72 = vector.load %arg2[%c0_18, %c10] : memref<8x36xf32, #tpu.memory_space<vmem>>, vector<8x1xf32>
    %73 = vector.extract_strided_slice %65 {offsets = [1, 0], sizes = [1, 256], strides = [1, 1]} : vector<4x256xf32> to vector<1x256xf32>
    %74 = vector.shape_cast %73 : vector<1x256xf32> to vector<1x256xf32>
    %75 = vector.broadcast %74 : vector<1x256xf32> to vector<8x256xf32>
    %76 = vector.broadcast %72 : vector<8x1xf32> to vector<8x256xf32>
    %77 = arith.mulf %76, %75 : vector<8x256xf32>
    %78 = arith.addf %71, %77 : vector<8x256xf32>
    %c0_19 = arith.constant 0 : index
    %c19 = arith.constant 19 : index
    %79 = vector.load %arg2[%c0_19, %c19] : memref<8x36xf32, #tpu.memory_space<vmem>>, vector<8x1xf32>
    %80 = vector.extract_strided_slice %65 {offsets = [2, 0], sizes = [1, 256], strides = [1, 1]} : vector<4x256xf32> to vector<1x256xf32>
    %81 = vector.shape_cast %80 : vector<1x256xf32> to vector<1x256xf32>
    %82 = vector.broadcast %81 : vector<1x256xf32> to vector<8x256xf32>
    %83 = vector.broadcast %79 : vector<8x1xf32> to vector<8x256xf32>
    %84 = arith.mulf %83, %82 : vector<8x256xf32>
    %85 = arith.addf %78, %84 : vector<8x256xf32>
    %c0_20 = arith.constant 0 : index
    %c28 = arith.constant 28 : index
    %86 = vector.load %arg2[%c0_20, %c28] : memref<8x36xf32, #tpu.memory_space<vmem>>, vector<8x1xf32>
    %87 = vector.extract_strided_slice %65 {offsets = [3, 0], sizes = [1, 256], strides = [1, 1]} : vector<4x256xf32> to vector<1x256xf32>
    %88 = vector.shape_cast %87 : vector<1x256xf32> to vector<1x256xf32>
    %89 = vector.broadcast %88 : vector<1x256xf32> to vector<8x256xf32>
    %90 = vector.broadcast %86 : vector<8x1xf32> to vector<8x256xf32>
    %91 = arith.mulf %90, %89 : vector<8x256xf32>
    %92 = arith.addf %85, %91 : vector<8x256xf32>
    %cst_21 = arith.constant 0.000000e+00 : f32
    %93 = vector.broadcast %cst_21 : f32 to vector<8x256xf32>
    %94 = arith.select %9, %92, %93 : vector<8x256xi1>, vector<8x256xf32>
    %95 = arith.addf %64, %94 : vector<8x256xf32>
    %c15_i32_22 = arith.constant 15 : i32
    %96 = tpu.dynamic_rotate %32 by %c15_i32_22 dim 1 : vector<4x256xf32>, i32 -> vector<4x256xf32>
    %c0_23 = arith.constant 0 : index
    %c2 = arith.constant 2 : index
    %97 = vector.load %arg2[%c0_23, %c2] : memref<8x36xf32, #tpu.memory_space<vmem>>, vector<8x1xf32>
    %98 = vector.extract_strided_slice %96 {offsets = [0, 0], sizes = [1, 256], strides = [1, 1]} : vector<4x256xf32> to vector<1x256xf32>
    %99 = vector.shape_cast %98 : vector<1x256xf32> to vector<1x256xf32>
    %100 = vector.broadcast %99 : vector<1x256xf32> to vector<8x256xf32>
    %101 = vector.broadcast %97 : vector<8x1xf32> to vector<8x256xf32>
    %102 = arith.mulf %101, %100 : vector<8x256xf32>
    %c0_24 = arith.constant 0 : index
    %c11 = arith.constant 11 : index
    %103 = vector.load %arg2[%c0_24, %c11] : memref<8x36xf32, #tpu.memory_space<vmem>>, vector<8x1xf32>
    %104 = vector.extract_strided_slice %96 {offsets = [1, 0], sizes = [1, 256], strides = [1, 1]} : vector<4x256xf32> to vector<1x256xf32>
    %105 = vector.shape_cast %104 : vector<1x256xf32> to vector<1x256xf32>
    %106 = vector.broadcast %105 : vector<1x256xf32> to vector<8x256xf32>
    %107 = vector.broadcast %103 : vector<8x1xf32> to vector<8x256xf32>
    %108 = arith.mulf %107, %106 : vector<8x256xf32>
    %109 = arith.addf %102, %108 : vector<8x256xf32>
    %c0_25 = arith.constant 0 : index
    %c20 = arith.constant 20 : index
    %110 = vector.load %arg2[%c0_25, %c20] : memref<8x36xf32, #tpu.memory_space<vmem>>, vector<8x1xf32>
    %111 = vector.extract_strided_slice %96 {offsets = [2, 0], sizes = [1, 256], strides = [1, 1]} : vector<4x256xf32> to vector<1x256xf32>
    %112 = vector.shape_cast %111 : vector<1x256xf32> to vector<1x256xf32>
    %113 = vector.broadcast %112 : vector<1x256xf32> to vector<8x256xf32>
    %114 = vector.broadcast %110 : vector<8x1xf32> to vector<8x256xf32>
    %115 = arith.mulf %114, %113 : vector<8x256xf32>
    %116 = arith.addf %109, %115 : vector<8x256xf32>
    %c0_26 = arith.constant 0 : index
    %c29 = arith.constant 29 : index
    %117 = vector.load %arg2[%c0_26, %c29] : memref<8x36xf32, #tpu.memory_space<vmem>>, vector<8x1xf32>
    %118 = vector.extract_strided_slice %96 {offsets = [3, 0], sizes = [1, 256], strides = [1, 1]} : vector<4x256xf32> to vector<1x256xf32>
    %119 = vector.shape_cast %118 : vector<1x256xf32> to vector<1x256xf32>
    %120 = vector.broadcast %119 : vector<1x256xf32> to vector<8x256xf32>
    %121 = vector.broadcast %117 : vector<8x1xf32> to vector<8x256xf32>
    %122 = arith.mulf %121, %120 : vector<8x256xf32>
    %123 = arith.addf %116, %122 : vector<8x256xf32>
    %cst_27 = arith.constant 0.000000e+00 : f32
    %124 = vector.broadcast %cst_27 : f32 to vector<8x256xf32>
    %125 = arith.select %14, %123, %124 : vector<8x256xi1>, vector<8x256xf32>
    %126 = arith.addf %95, %125 : vector<8x256xf32>
    %c1_i32_28 = arith.constant 1 : i32
    %127 = tpu.dynamic_rotate %32 by %c1_i32_28 dim 1 : vector<4x256xf32>, i32 -> vector<4x256xf32>
    %c0_29 = arith.constant 0 : index
    %c3 = arith.constant 3 : index
    %128 = vector.load %arg2[%c0_29, %c3] : memref<8x36xf32, #tpu.memory_space<vmem>>, vector<8x1xf32>
    %129 = vector.extract_strided_slice %127 {offsets = [0, 0], sizes = [1, 256], strides = [1, 1]} : vector<4x256xf32> to vector<1x256xf32>
    %130 = vector.shape_cast %129 : vector<1x256xf32> to vector<1x256xf32>
    %131 = vector.broadcast %130 : vector<1x256xf32> to vector<8x256xf32>
    %132 = vector.broadcast %128 : vector<8x1xf32> to vector<8x256xf32>
    %133 = arith.mulf %132, %131 : vector<8x256xf32>
    %c0_30 = arith.constant 0 : index
    %c12 = arith.constant 12 : index
    %134 = vector.load %arg2[%c0_30, %c12] : memref<8x36xf32, #tpu.memory_space<vmem>>, vector<8x1xf32>
    %135 = vector.extract_strided_slice %127 {offsets = [1, 0], sizes = [1, 256], strides = [1, 1]} : vector<4x256xf32> to vector<1x256xf32>
    %136 = vector.shape_cast %135 : vector<1x256xf32> to vector<1x256xf32>
    %137 = vector.broadcast %136 : vector<1x256xf32> to vector<8x256xf32>
    %138 = vector.broadcast %134 : vector<8x1xf32> to vector<8x256xf32>
    %139 = arith.mulf %138, %137 : vector<8x256xf32>
    %140 = arith.addf %133, %139 : vector<8x256xf32>
    %c0_31 = arith.constant 0 : index
    %c21 = arith.constant 21 : index
    %141 = vector.load %arg2[%c0_31, %c21] : memref<8x36xf32, #tpu.memory_space<vmem>>, vector<8x1xf32>
    %142 = vector.extract_strided_slice %127 {offsets = [2, 0], sizes = [1, 256], strides = [1, 1]} : vector<4x256xf32> to vector<1x256xf32>
    %143 = vector.shape_cast %142 : vector<1x256xf32> to vector<1x256xf32>
    %144 = vector.broadcast %143 : vector<1x256xf32> to vector<8x256xf32>
    %145 = vector.broadcast %141 : vector<8x1xf32> to vector<8x256xf32>
    %146 = arith.mulf %145, %144 : vector<8x256xf32>
    %147 = arith.addf %140, %146 : vector<8x256xf32>
    %c0_32 = arith.constant 0 : index
    %c30 = arith.constant 30 : index
    %148 = vector.load %arg2[%c0_32, %c30] : memref<8x36xf32, #tpu.memory_space<vmem>>, vector<8x1xf32>
    %149 = vector.extract_strided_slice %127 {offsets = [3, 0], sizes = [1, 256], strides = [1, 1]} : vector<4x256xf32> to vector<1x256xf32>
    %150 = vector.shape_cast %149 : vector<1x256xf32> to vector<1x256xf32>
    %151 = vector.broadcast %150 : vector<1x256xf32> to vector<8x256xf32>
    %152 = vector.broadcast %148 : vector<8x1xf32> to vector<8x256xf32>
    %153 = arith.mulf %152, %151 : vector<8x256xf32>
    %154 = arith.addf %147, %153 : vector<8x256xf32>
    %cst_33 = arith.constant 0.000000e+00 : f32
    %155 = vector.broadcast %cst_33 : f32 to vector<8x256xf32>
    %156 = arith.select %16, %154, %155 : vector<8x256xi1>, vector<8x256xf32>
    %157 = arith.addf %126, %156 : vector<8x256xf32>
    %c0_34 = arith.constant 0 : index
    %c4 = arith.constant 4 : index
    %158 = vector.load %arg2[%c0_34, %c4] : memref<8x36xf32, #tpu.memory_space<vmem>>, vector<8x1xf32>
    %159 = vector.extract_strided_slice %32 {offsets = [0, 0], sizes = [1, 256], strides = [1, 1]} : vector<4x256xf32> to vector<1x256xf32>
    %160 = vector.shape_cast %159 : vector<1x256xf32> to vector<1x256xf32>
    %161 = vector.broadcast %160 : vector<1x256xf32> to vector<8x256xf32>
    %162 = vector.broadcast %158 : vector<8x1xf32> to vector<8x256xf32>
    %163 = arith.mulf %162, %161 : vector<8x256xf32>
    %c0_35 = arith.constant 0 : index
    %c13 = arith.constant 13 : index
    %164 = vector.load %arg2[%c0_35, %c13] : memref<8x36xf32, #tpu.memory_space<vmem>>, vector<8x1xf32>
    %165 = vector.extract_strided_slice %32 {offsets = [1, 0], sizes = [1, 256], strides = [1, 1]} : vector<4x256xf32> to vector<1x256xf32>
    %166 = vector.shape_cast %165 : vector<1x256xf32> to vector<1x256xf32>
    %167 = vector.broadcast %166 : vector<1x256xf32> to vector<8x256xf32>
    %168 = vector.broadcast %164 : vector<8x1xf32> to vector<8x256xf32>
    %169 = arith.mulf %168, %167 : vector<8x256xf32>
    %170 = arith.addf %163, %169 : vector<8x256xf32>
    %c0_36 = arith.constant 0 : index
    %c22 = arith.constant 22 : index
    %171 = vector.load %arg2[%c0_36, %c22] : memref<8x36xf32, #tpu.memory_space<vmem>>, vector<8x1xf32>
    %172 = vector.extract_strided_slice %32 {offsets = [2, 0], sizes = [1, 256], strides = [1, 1]} : vector<4x256xf32> to vector<1x256xf32>
    %173 = vector.shape_cast %172 : vector<1x256xf32> to vector<1x256xf32>
    %174 = vector.broadcast %173 : vector<1x256xf32> to vector<8x256xf32>
    %175 = vector.broadcast %171 : vector<8x1xf32> to vector<8x256xf32>
    %176 = arith.mulf %175, %174 : vector<8x256xf32>
    %177 = arith.addf %170, %176 : vector<8x256xf32>
    %c0_37 = arith.constant 0 : index
    %c31 = arith.constant 31 : index
    %178 = vector.load %arg2[%c0_37, %c31] : memref<8x36xf32, #tpu.memory_space<vmem>>, vector<8x1xf32>
    %179 = vector.extract_strided_slice %32 {offsets = [3, 0], sizes = [1, 256], strides = [1, 1]} : vector<4x256xf32> to vector<1x256xf32>
    %180 = vector.shape_cast %179 : vector<1x256xf32> to vector<1x256xf32>
    %181 = vector.broadcast %180 : vector<1x256xf32> to vector<8x256xf32>
    %182 = vector.broadcast %178 : vector<8x1xf32> to vector<8x256xf32>
    %183 = arith.mulf %182, %181 : vector<8x256xf32>
    %184 = arith.addf %177, %183 : vector<8x256xf32>
    %185 = arith.addf %157, %184 : vector<8x256xf32>
    %c255_i32 = arith.constant 255 : i32
    %186 = tpu.dynamic_rotate %32 by %c255_i32 dim 1 : vector<4x256xf32>, i32 -> vector<4x256xf32>
    %c0_38 = arith.constant 0 : index
    %c5 = arith.constant 5 : index
    %187 = vector.load %arg2[%c0_38, %c5] : memref<8x36xf32, #tpu.memory_space<vmem>>, vector<8x1xf32>
    %188 = vector.extract_strided_slice %186 {offsets = [0, 0], sizes = [1, 256], strides = [1, 1]} : vector<4x256xf32> to vector<1x256xf32>
    %189 = vector.shape_cast %188 : vector<1x256xf32> to vector<1x256xf32>
    %190 = vector.broadcast %189 : vector<1x256xf32> to vector<8x256xf32>
    %191 = vector.broadcast %187 : vector<8x1xf32> to vector<8x256xf32>
    %192 = arith.mulf %191, %190 : vector<8x256xf32>
    %c0_39 = arith.constant 0 : index
    %c14 = arith.constant 14 : index
    %193 = vector.load %arg2[%c0_39, %c14] : memref<8x36xf32, #tpu.memory_space<vmem>>, vector<8x1xf32>
    %194 = vector.extract_strided_slice %186 {offsets = [1, 0], sizes = [1, 256], strides = [1, 1]} : vector<4x256xf32> to vector<1x256xf32>
    %195 = vector.shape_cast %194 : vector<1x256xf32> to vector<1x256xf32>
    %196 = vector.broadcast %195 : vector<1x256xf32> to vector<8x256xf32>
    %197 = vector.broadcast %193 : vector<8x1xf32> to vector<8x256xf32>
    %198 = arith.mulf %197, %196 : vector<8x256xf32>
    %199 = arith.addf %192, %198 : vector<8x256xf32>
    %c0_40 = arith.constant 0 : index
    %c23 = arith.constant 23 : index
    %200 = vector.load %arg2[%c0_40, %c23] : memref<8x36xf32, #tpu.memory_space<vmem>>, vector<8x1xf32>
    %201 = vector.extract_strided_slice %186 {offsets = [2, 0], sizes = [1, 256], strides = [1, 1]} : vector<4x256xf32> to vector<1x256xf32>
    %202 = vector.shape_cast %201 : vector<1x256xf32> to vector<1x256xf32>
    %203 = vector.broadcast %202 : vector<1x256xf32> to vector<8x256xf32>
    %204 = vector.broadcast %200 : vector<8x1xf32> to vector<8x256xf32>
    %205 = arith.mulf %204, %203 : vector<8x256xf32>
    %206 = arith.addf %199, %205 : vector<8x256xf32>
    %c0_41 = arith.constant 0 : index
    %c32 = arith.constant 32 : index
    %207 = vector.load %arg2[%c0_41, %c32] : memref<8x36xf32, #tpu.memory_space<vmem>>, vector<8x1xf32>
    %208 = vector.extract_strided_slice %186 {offsets = [3, 0], sizes = [1, 256], strides = [1, 1]} : vector<4x256xf32> to vector<1x256xf32>
    %209 = vector.shape_cast %208 : vector<1x256xf32> to vector<1x256xf32>
    %210 = vector.broadcast %209 : vector<1x256xf32> to vector<8x256xf32>
    %211 = vector.broadcast %207 : vector<8x1xf32> to vector<8x256xf32>
    %212 = arith.mulf %211, %210 : vector<8x256xf32>
    %213 = arith.addf %206, %212 : vector<8x256xf32>
    %cst_42 = arith.constant 0.000000e+00 : f32
    %214 = vector.broadcast %cst_42 : f32 to vector<8x256xf32>
    %215 = arith.select %18, %213, %214 : vector<8x256xi1>, vector<8x256xf32>
    %216 = arith.addf %185, %215 : vector<8x256xf32>
    %c241_i32 = arith.constant 241 : i32
    %217 = tpu.dynamic_rotate %32 by %c241_i32 dim 1 : vector<4x256xf32>, i32 -> vector<4x256xf32>
    %c0_43 = arith.constant 0 : index
    %c6 = arith.constant 6 : index
    %218 = vector.load %arg2[%c0_43, %c6] : memref<8x36xf32, #tpu.memory_space<vmem>>, vector<8x1xf32>
    %219 = vector.extract_strided_slice %217 {offsets = [0, 0], sizes = [1, 256], strides = [1, 1]} : vector<4x256xf32> to vector<1x256xf32>
    %220 = vector.shape_cast %219 : vector<1x256xf32> to vector<1x256xf32>
    %221 = vector.broadcast %220 : vector<1x256xf32> to vector<8x256xf32>
    %222 = vector.broadcast %218 : vector<8x1xf32> to vector<8x256xf32>
    %223 = arith.mulf %222, %221 : vector<8x256xf32>
    %c0_44 = arith.constant 0 : index
    %c15 = arith.constant 15 : index
    %224 = vector.load %arg2[%c0_44, %c15] : memref<8x36xf32, #tpu.memory_space<vmem>>, vector<8x1xf32>
    %225 = vector.extract_strided_slice %217 {offsets = [1, 0], sizes = [1, 256], strides = [1, 1]} : vector<4x256xf32> to vector<1x256xf32>
    %226 = vector.shape_cast %225 : vector<1x256xf32> to vector<1x256xf32>
    %227 = vector.broadcast %226 : vector<1x256xf32> to vector<8x256xf32>
    %228 = vector.broadcast %224 : vector<8x1xf32> to vector<8x256xf32>
    %229 = arith.mulf %228, %227 : vector<8x256xf32>
    %230 = arith.addf %223, %229 : vector<8x256xf32>
    %c0_45 = arith.constant 0 : index
    %c24 = arith.constant 24 : index
    %231 = vector.load %arg2[%c0_45, %c24] : memref<8x36xf32, #tpu.memory_space<vmem>>, vector<8x1xf32>
    %232 = vector.extract_strided_slice %217 {offsets = [2, 0], sizes = [1, 256], strides = [1, 1]} : vector<4x256xf32> to vector<1x256xf32>
    %233 = vector.shape_cast %232 : vector<1x256xf32> to vector<1x256xf32>
    %234 = vector.broadcast %233 : vector<1x256xf32> to vector<8x256xf32>
    %235 = vector.broadcast %231 : vector<8x1xf32> to vector<8x256xf32>
    %236 = arith.mulf %235, %234 : vector<8x256xf32>
    %237 = arith.addf %230, %236 : vector<8x256xf32>
    %c0_46 = arith.constant 0 : index
    %c33 = arith.constant 33 : index
    %238 = vector.load %arg2[%c0_46, %c33] : memref<8x36xf32, #tpu.memory_space<vmem>>, vector<8x1xf32>
    %239 = vector.extract_strided_slice %217 {offsets = [3, 0], sizes = [1, 256], strides = [1, 1]} : vector<4x256xf32> to vector<1x256xf32>
    %240 = vector.shape_cast %239 : vector<1x256xf32> to vector<1x256xf32>
    %241 = vector.broadcast %240 : vector<1x256xf32> to vector<8x256xf32>
    %242 = vector.broadcast %238 : vector<8x1xf32> to vector<8x256xf32>
    %243 = arith.mulf %242, %241 : vector<8x256xf32>
    %244 = arith.addf %237, %243 : vector<8x256xf32>
    %cst_47 = arith.constant 0.000000e+00 : f32
    %245 = vector.broadcast %cst_47 : f32 to vector<8x256xf32>
    %246 = arith.select %23, %244, %245 : vector<8x256xi1>, vector<8x256xf32>
    %247 = arith.addf %216, %246 : vector<8x256xf32>
    %c240_i32_48 = arith.constant 240 : i32
    %248 = tpu.dynamic_rotate %32 by %c240_i32_48 dim 1 : vector<4x256xf32>, i32 -> vector<4x256xf32>
    %c0_49 = arith.constant 0 : index
    %c7 = arith.constant 7 : index
    %249 = vector.load %arg2[%c0_49, %c7] : memref<8x36xf32, #tpu.memory_space<vmem>>, vector<8x1xf32>
    %250 = vector.extract_strided_slice %248 {offsets = [0, 0], sizes = [1, 256], strides = [1, 1]} : vector<4x256xf32> to vector<1x256xf32>
    %251 = vector.shape_cast %250 : vector<1x256xf32> to vector<1x256xf32>
    %252 = vector.broadcast %251 : vector<1x256xf32> to vector<8x256xf32>
    %253 = vector.broadcast %249 : vector<8x1xf32> to vector<8x256xf32>
    %254 = arith.mulf %253, %252 : vector<8x256xf32>
    %c0_50 = arith.constant 0 : index
    %c16 = arith.constant 16 : index
    %255 = vector.load %arg2[%c0_50, %c16] : memref<8x36xf32, #tpu.memory_space<vmem>>, vector<8x1xf32>
    %256 = vector.extract_strided_slice %248 {offsets = [1, 0], sizes = [1, 256], strides = [1, 1]} : vector<4x256xf32> to vector<1x256xf32>
    %257 = vector.shape_cast %256 : vector<1x256xf32> to vector<1x256xf32>
    %258 = vector.broadcast %257 : vector<1x256xf32> to vector<8x256xf32>
    %259 = vector.broadcast %255 : vector<8x1xf32> to vector<8x256xf32>
    %260 = arith.mulf %259, %258 : vector<8x256xf32>
    %261 = arith.addf %254, %260 : vector<8x256xf32>
    %c0_51 = arith.constant 0 : index
    %c25 = arith.constant 25 : index
    %262 = vector.load %arg2[%c0_51, %c25] : memref<8x36xf32, #tpu.memory_space<vmem>>, vector<8x1xf32>
    %263 = vector.extract_strided_slice %248 {offsets = [2, 0], sizes = [1, 256], strides = [1, 1]} : vector<4x256xf32> to vector<1x256xf32>
    %264 = vector.shape_cast %263 : vector<1x256xf32> to vector<1x256xf32>
    %265 = vector.broadcast %264 : vector<1x256xf32> to vector<8x256xf32>
    %266 = vector.broadcast %262 : vector<8x1xf32> to vector<8x256xf32>
    %267 = arith.mulf %266, %265 : vector<8x256xf32>
    %268 = arith.addf %261, %267 : vector<8x256xf32>
    %c0_52 = arith.constant 0 : index
    %c34 = arith.constant 34 : index
    %269 = vector.load %arg2[%c0_52, %c34] : memref<8x36xf32, #tpu.memory_space<vmem>>, vector<8x1xf32>
    %270 = vector.extract_strided_slice %248 {offsets = [3, 0], sizes = [1, 256], strides = [1, 1]} : vector<4x256xf32> to vector<1x256xf32>
    %271 = vector.shape_cast %270 : vector<1x256xf32> to vector<1x256xf32>
    %272 = vector.broadcast %271 : vector<1x256xf32> to vector<8x256xf32>
    %273 = vector.broadcast %269 : vector<8x1xf32> to vector<8x256xf32>
    %274 = arith.mulf %273, %272 : vector<8x256xf32>
    %275 = arith.addf %268, %274 : vector<8x256xf32>
    %cst_53 = arith.constant 0.000000e+00 : f32
    %276 = vector.broadcast %cst_53 : f32 to vector<8x256xf32>
    %277 = arith.select %25, %275, %276 : vector<8x256xi1>, vector<8x256xf32>
    %278 = arith.addf %247, %277 : vector<8x256xf32>
    %c239_i32 = arith.constant 239 : i32
    %279 = tpu.dynamic_rotate %32 by %c239_i32 dim 1 : vector<4x256xf32>, i32 -> vector<4x256xf32>
    %c0_54 = arith.constant 0 : index
    %c8 = arith.constant 8 : index
    %280 = vector.load %arg2[%c0_54, %c8] : memref<8x36xf32, #tpu.memory_space<vmem>>, vector<8x1xf32>
    %281 = vector.extract_strided_slice %279 {offsets = [0, 0], sizes = [1, 256], strides = [1, 1]} : vector<4x256xf32> to vector<1x256xf32>
    %282 = vector.shape_cast %281 : vector<1x256xf32> to vector<1x256xf32>
    %283 = vector.broadcast %282 : vector<1x256xf32> to vector<8x256xf32>
    %284 = vector.broadcast %280 : vector<8x1xf32> to vector<8x256xf32>
    %285 = arith.mulf %284, %283 : vector<8x256xf32>
    %c0_55 = arith.constant 0 : index
    %c17 = arith.constant 17 : index
    %286 = vector.load %arg2[%c0_55, %c17] : memref<8x36xf32, #tpu.memory_space<vmem>>, vector<8x1xf32>
    %287 = vector.extract_strided_slice %279 {offsets = [1, 0], sizes = [1, 256], strides = [1, 1]} : vector<4x256xf32> to vector<1x256xf32>
    %288 = vector.shape_cast %287 : vector<1x256xf32> to vector<1x256xf32>
    %289 = vector.broadcast %288 : vector<1x256xf32> to vector<8x256xf32>
    %290 = vector.broadcast %286 : vector<8x1xf32> to vector<8x256xf32>
    %291 = arith.mulf %290, %289 : vector<8x256xf32>
    %292 = arith.addf %285, %291 : vector<8x256xf32>
    %c0_56 = arith.constant 0 : index
    %c26 = arith.constant 26 : index
    %293 = vector.load %arg2[%c0_56, %c26] : memref<8x36xf32, #tpu.memory_space<vmem>>, vector<8x1xf32>
    %294 = vector.extract_strided_slice %279 {offsets = [2, 0], sizes = [1, 256], strides = [1, 1]} : vector<4x256xf32> to vector<1x256xf32>
    %295 = vector.shape_cast %294 : vector<1x256xf32> to vector<1x256xf32>
    %296 = vector.broadcast %295 : vector<1x256xf32> to vector<8x256xf32>
    %297 = vector.broadcast %293 : vector<8x1xf32> to vector<8x256xf32>
    %298 = arith.mulf %297, %296 : vector<8x256xf32>
    %299 = arith.addf %292, %298 : vector<8x256xf32>
    %c0_57 = arith.constant 0 : index
    %c35 = arith.constant 35 : index
    %300 = vector.load %arg2[%c0_57, %c35] : memref<8x36xf32, #tpu.memory_space<vmem>>, vector<8x1xf32>
    %301 = vector.extract_strided_slice %279 {offsets = [3, 0], sizes = [1, 256], strides = [1, 1]} : vector<4x256xf32> to vector<1x256xf32>
    %302 = vector.shape_cast %301 : vector<1x256xf32> to vector<1x256xf32>
    %303 = vector.broadcast %302 : vector<1x256xf32> to vector<8x256xf32>
    %304 = vector.broadcast %300 : vector<8x1xf32> to vector<8x256xf32>
    %305 = arith.mulf %304, %303 : vector<8x256xf32>
    %306 = arith.addf %299, %305 : vector<8x256xf32>
    %cst_58 = arith.constant 0.000000e+00 : f32
    %307 = vector.broadcast %cst_58 : f32 to vector<8x256xf32>
    %308 = arith.select %30, %306, %307 : vector<8x256xi1>, vector<8x256xf32>
    %309 = arith.addf %278, %308 : vector<8x256xf32>
    %c0_59 = arith.constant 0 : index
    %c0_60 = arith.constant 0 : index
    %310 = vector.load %arg3[%c0_59, %c0_60] : memref<8x1xf32, #tpu.memory_space<vmem>>, vector<8x1xf32>
    %311 = vector.broadcast %310 : vector<8x1xf32> to vector<8x256xf32>
    %312 = arith.addf %309, %311 : vector<8x256xf32>
    %cst_61 = arith.constant 0.000000e+00 : f32
    %313 = vector.broadcast %cst_61 : f32 to vector<8x256xf32>
    %314 = arith.cmpf oge, %312, %313 : vector<8x256xf32>
    %cst_62 = arith.constant 0.00999999977 : f32
    %315 = vector.broadcast %cst_62 : f32 to vector<8x256xf32>
    %316 = arith.mulf %315, %312 : vector<8x256xf32>
    %317 = arith.select %314, %312, %316 : vector<8x256xi1>, vector<8x256xf32>
    %cst_63 = arith.constant 0.000000e+00 : f32
    %318 = vector.broadcast %cst_63 : f32 to vector<8x256xf32>
    %c17_i32_64 = arith.constant 17 : i32
    %319 = tpu.dynamic_rotate %317 by %c17_i32_64 dim 1 : vector<8x256xf32>, i32 -> vector<8x256xf32>
    %c0_65 = arith.constant 0 : index
    %c0_66 = arith.constant 0 : index
    %320 = vector.load %arg4[%c0_65, %c0_66] : memref<8x72xf32, #tpu.memory_space<vmem>>, vector<8x1xf32>
    %321 = vector.extract_strided_slice %319 {offsets = [0, 0], sizes = [1, 256], strides = [1, 1]} : vector<8x256xf32> to vector<1x256xf32>
    %322 = vector.shape_cast %321 : vector<1x256xf32> to vector<1x256xf32>
    %323 = vector.broadcast %322 : vector<1x256xf32> to vector<8x256xf32>
    %324 = vector.broadcast %320 : vector<8x1xf32> to vector<8x256xf32>
    %325 = arith.mulf %324, %323 : vector<8x256xf32>
    %c0_67 = arith.constant 0 : index
    %c9_68 = arith.constant 9 : index
    %326 = vector.load %arg4[%c0_67, %c9_68] : memref<8x72xf32, #tpu.memory_space<vmem>>, vector<8x1xf32>
    %327 = vector.extract_strided_slice %319 {offsets = [1, 0], sizes = [1, 256], strides = [1, 1]} : vector<8x256xf32> to vector<1x256xf32>
    %328 = vector.shape_cast %327 : vector<1x256xf32> to vector<1x256xf32>
    %329 = vector.broadcast %328 : vector<1x256xf32> to vector<8x256xf32>
    %330 = vector.broadcast %326 : vector<8x1xf32> to vector<8x256xf32>
    %331 = arith.mulf %330, %329 : vector<8x256xf32>
    %332 = arith.addf %325, %331 : vector<8x256xf32>
    %c0_69 = arith.constant 0 : index
    %c18_70 = arith.constant 18 : index
    %333 = vector.load %arg4[%c0_69, %c18_70] : memref<8x72xf32, #tpu.memory_space<vmem>>, vector<8x1xf32>
    %334 = vector.extract_strided_slice %319 {offsets = [2, 0], sizes = [1, 256], strides = [1, 1]} : vector<8x256xf32> to vector<1x256xf32>
    %335 = vector.shape_cast %334 : vector<1x256xf32> to vector<1x256xf32>
    %336 = vector.broadcast %335 : vector<1x256xf32> to vector<8x256xf32>
    %337 = vector.broadcast %333 : vector<8x1xf32> to vector<8x256xf32>
    %338 = arith.mulf %337, %336 : vector<8x256xf32>
    %339 = arith.addf %332, %338 : vector<8x256xf32>
    %c0_71 = arith.constant 0 : index
    %c27_72 = arith.constant 27 : index
    %340 = vector.load %arg4[%c0_71, %c27_72] : memref<8x72xf32, #tpu.memory_space<vmem>>, vector<8x1xf32>
    %341 = vector.extract_strided_slice %319 {offsets = [3, 0], sizes = [1, 256], strides = [1, 1]} : vector<8x256xf32> to vector<1x256xf32>
    %342 = vector.shape_cast %341 : vector<1x256xf32> to vector<1x256xf32>
    %343 = vector.broadcast %342 : vector<1x256xf32> to vector<8x256xf32>
    %344 = vector.broadcast %340 : vector<8x1xf32> to vector<8x256xf32>
    %345 = arith.mulf %344, %343 : vector<8x256xf32>
    %346 = arith.addf %339, %345 : vector<8x256xf32>
    %c0_73 = arith.constant 0 : index
    %c36 = arith.constant 36 : index
    %347 = vector.load %arg4[%c0_73, %c36] : memref<8x72xf32, #tpu.memory_space<vmem>>, vector<8x1xf32>
    %348 = vector.extract_strided_slice %319 {offsets = [4, 0], sizes = [1, 256], strides = [1, 1]} : vector<8x256xf32> to vector<1x256xf32>
    %349 = vector.shape_cast %348 : vector<1x256xf32> to vector<1x256xf32>
    %350 = vector.broadcast %349 : vector<1x256xf32> to vector<8x256xf32>
    %351 = vector.broadcast %347 : vector<8x1xf32> to vector<8x256xf32>
    %352 = arith.mulf %351, %350 : vector<8x256xf32>
    %353 = arith.addf %346, %352 : vector<8x256xf32>
    %c0_74 = arith.constant 0 : index
    %c45 = arith.constant 45 : index
    %354 = vector.load %arg4[%c0_74, %c45] : memref<8x72xf32, #tpu.memory_space<vmem>>, vector<8x1xf32>
    %355 = vector.extract_strided_slice %319 {offsets = [5, 0], sizes = [1, 256], strides = [1, 1]} : vector<8x256xf32> to vector<1x256xf32>
    %356 = vector.shape_cast %355 : vector<1x256xf32> to vector<1x256xf32>
    %357 = vector.broadcast %356 : vector<1x256xf32> to vector<8x256xf32>
    %358 = vector.broadcast %354 : vector<8x1xf32> to vector<8x256xf32>
    %359 = arith.mulf %358, %357 : vector<8x256xf32>
    %360 = arith.addf %353, %359 : vector<8x256xf32>
    %c0_75 = arith.constant 0 : index
    %c54 = arith.constant 54 : index
    %361 = vector.load %arg4[%c0_75, %c54] : memref<8x72xf32, #tpu.memory_space<vmem>>, vector<8x1xf32>
    %362 = vector.extract_strided_slice %319 {offsets = [6, 0], sizes = [1, 256], strides = [1, 1]} : vector<8x256xf32> to vector<1x256xf32>
    %363 = vector.shape_cast %362 : vector<1x256xf32> to vector<1x256xf32>
    %364 = vector.broadcast %363 : vector<1x256xf32> to vector<8x256xf32>
    %365 = vector.broadcast %361 : vector<8x1xf32> to vector<8x256xf32>
    %366 = arith.mulf %365, %364 : vector<8x256xf32>
    %367 = arith.addf %360, %366 : vector<8x256xf32>
    %c0_76 = arith.constant 0 : index
    %c63 = arith.constant 63 : index
    %368 = vector.load %arg4[%c0_76, %c63] : memref<8x72xf32, #tpu.memory_space<vmem>>, vector<8x1xf32>
    %369 = vector.extract_strided_slice %319 {offsets = [7, 0], sizes = [1, 256], strides = [1, 1]} : vector<8x256xf32> to vector<1x256xf32>
    %370 = vector.shape_cast %369 : vector<1x256xf32> to vector<1x256xf32>
    %371 = vector.broadcast %370 : vector<1x256xf32> to vector<8x256xf32>
    %372 = vector.broadcast %368 : vector<8x1xf32> to vector<8x256xf32>
    %373 = arith.mulf %372, %371 : vector<8x256xf32>
    %374 = arith.addf %367, %373 : vector<8x256xf32>
    %cst_77 = arith.constant 0.000000e+00 : f32
    %375 = vector.broadcast %cst_77 : f32 to vector<8x256xf32>
    %376 = arith.select %7, %374, %375 : vector<8x256xi1>, vector<8x256xf32>
    %377 = arith.addf %318, %376 : vector<8x256xf32>
    %c16_i32_78 = arith.constant 16 : i32
    %378 = tpu.dynamic_rotate %317 by %c16_i32_78 dim 1 : vector<8x256xf32>, i32 -> vector<8x256xf32>
    %c0_79 = arith.constant 0 : index
    %c1_80 = arith.constant 1 : index
    %379 = vector.load %arg4[%c0_79, %c1_80] : memref<8x72xf32, #tpu.memory_space<vmem>>, vector<8x1xf32>
    %380 = vector.extract_strided_slice %378 {offsets = [0, 0], sizes = [1, 256], strides = [1, 1]} : vector<8x256xf32> to vector<1x256xf32>
    %381 = vector.shape_cast %380 : vector<1x256xf32> to vector<1x256xf32>
    %382 = vector.broadcast %381 : vector<1x256xf32> to vector<8x256xf32>
    %383 = vector.broadcast %379 : vector<8x1xf32> to vector<8x256xf32>
    %384 = arith.mulf %383, %382 : vector<8x256xf32>
    %c0_81 = arith.constant 0 : index
    %c10_82 = arith.constant 10 : index
    %385 = vector.load %arg4[%c0_81, %c10_82] : memref<8x72xf32, #tpu.memory_space<vmem>>, vector<8x1xf32>
    %386 = vector.extract_strided_slice %378 {offsets = [1, 0], sizes = [1, 256], strides = [1, 1]} : vector<8x256xf32> to vector<1x256xf32>
    %387 = vector.shape_cast %386 : vector<1x256xf32> to vector<1x256xf32>
    %388 = vector.broadcast %387 : vector<1x256xf32> to vector<8x256xf32>
    %389 = vector.broadcast %385 : vector<8x1xf32> to vector<8x256xf32>
    %390 = arith.mulf %389, %388 : vector<8x256xf32>
    %391 = arith.addf %384, %390 : vector<8x256xf32>
    %c0_83 = arith.constant 0 : index
    %c19_84 = arith.constant 19 : index
    %392 = vector.load %arg4[%c0_83, %c19_84] : memref<8x72xf32, #tpu.memory_space<vmem>>, vector<8x1xf32>
    %393 = vector.extract_strided_slice %378 {offsets = [2, 0], sizes = [1, 256], strides = [1, 1]} : vector<8x256xf32> to vector<1x256xf32>
    %394 = vector.shape_cast %393 : vector<1x256xf32> to vector<1x256xf32>
    %395 = vector.broadcast %394 : vector<1x256xf32> to vector<8x256xf32>
    %396 = vector.broadcast %392 : vector<8x1xf32> to vector<8x256xf32>
    %397 = arith.mulf %396, %395 : vector<8x256xf32>
    %398 = arith.addf %391, %397 : vector<8x256xf32>
    %c0_85 = arith.constant 0 : index
    %c28_86 = arith.constant 28 : index
    %399 = vector.load %arg4[%c0_85, %c28_86] : memref<8x72xf32, #tpu.memory_space<vmem>>, vector<8x1xf32>
    %400 = vector.extract_strided_slice %378 {offsets = [3, 0], sizes = [1, 256], strides = [1, 1]} : vector<8x256xf32> to vector<1x256xf32>
    %401 = vector.shape_cast %400 : vector<1x256xf32> to vector<1x256xf32>
    %402 = vector.broadcast %401 : vector<1x256xf32> to vector<8x256xf32>
    %403 = vector.broadcast %399 : vector<8x1xf32> to vector<8x256xf32>
    %404 = arith.mulf %403, %402 : vector<8x256xf32>
    %405 = arith.addf %398, %404 : vector<8x256xf32>
    %c0_87 = arith.constant 0 : index
    %c37 = arith.constant 37 : index
    %406 = vector.load %arg4[%c0_87, %c37] : memref<8x72xf32, #tpu.memory_space<vmem>>, vector<8x1xf32>
    %407 = vector.extract_strided_slice %378 {offsets = [4, 0], sizes = [1, 256], strides = [1, 1]} : vector<8x256xf32> to vector<1x256xf32>
    %408 = vector.shape_cast %407 : vector<1x256xf32> to vector<1x256xf32>
    %409 = vector.broadcast %408 : vector<1x256xf32> to vector<8x256xf32>
    %410 = vector.broadcast %406 : vector<8x1xf32> to vector<8x256xf32>
    %411 = arith.mulf %410, %409 : vector<8x256xf32>
    %412 = arith.addf %405, %411 : vector<8x256xf32>
    %c0_88 = arith.constant 0 : index
    %c46 = arith.constant 46 : index
    %413 = vector.load %arg4[%c0_88, %c46] : memref<8x72xf32, #tpu.memory_space<vmem>>, vector<8x1xf32>
    %414 = vector.extract_strided_slice %378 {offsets = [5, 0], sizes = [1, 256], strides = [1, 1]} : vector<8x256xf32> to vector<1x256xf32>
    %415 = vector.shape_cast %414 : vector<1x256xf32> to vector<1x256xf32>
    %416 = vector.broadcast %415 : vector<1x256xf32> to vector<8x256xf32>
    %417 = vector.broadcast %413 : vector<8x1xf32> to vector<8x256xf32>
    %418 = arith.mulf %417, %416 : vector<8x256xf32>
    %419 = arith.addf %412, %418 : vector<8x256xf32>
    %c0_89 = arith.constant 0 : index
    %c55 = arith.constant 55 : index
    %420 = vector.load %arg4[%c0_89, %c55] : memref<8x72xf32, #tpu.memory_space<vmem>>, vector<8x1xf32>
    %421 = vector.extract_strided_slice %378 {offsets = [6, 0], sizes = [1, 256], strides = [1, 1]} : vector<8x256xf32> to vector<1x256xf32>
    %422 = vector.shape_cast %421 : vector<1x256xf32> to vector<1x256xf32>
    %423 = vector.broadcast %422 : vector<1x256xf32> to vector<8x256xf32>
    %424 = vector.broadcast %420 : vector<8x1xf32> to vector<8x256xf32>
    %425 = arith.mulf %424, %423 : vector<8x256xf32>
    %426 = arith.addf %419, %425 : vector<8x256xf32>
    %c0_90 = arith.constant 0 : index
    %c64 = arith.constant 64 : index
    %427 = vector.load %arg4[%c0_90, %c64] : memref<8x72xf32, #tpu.memory_space<vmem>>, vector<8x1xf32>
    %428 = vector.extract_strided_slice %378 {offsets = [7, 0], sizes = [1, 256], strides = [1, 1]} : vector<8x256xf32> to vector<1x256xf32>
    %429 = vector.shape_cast %428 : vector<1x256xf32> to vector<1x256xf32>
    %430 = vector.broadcast %429 : vector<1x256xf32> to vector<8x256xf32>
    %431 = vector.broadcast %427 : vector<8x1xf32> to vector<8x256xf32>
    %432 = arith.mulf %431, %430 : vector<8x256xf32>
    %433 = arith.addf %426, %432 : vector<8x256xf32>
    %cst_91 = arith.constant 0.000000e+00 : f32
    %434 = vector.broadcast %cst_91 : f32 to vector<8x256xf32>
    %435 = arith.select %9, %433, %434 : vector<8x256xi1>, vector<8x256xf32>
    %436 = arith.addf %377, %435 : vector<8x256xf32>
    %c15_i32_92 = arith.constant 15 : i32
    %437 = tpu.dynamic_rotate %317 by %c15_i32_92 dim 1 : vector<8x256xf32>, i32 -> vector<8x256xf32>
    %c0_93 = arith.constant 0 : index
    %c2_94 = arith.constant 2 : index
    %438 = vector.load %arg4[%c0_93, %c2_94] : memref<8x72xf32, #tpu.memory_space<vmem>>, vector<8x1xf32>
    %439 = vector.extract_strided_slice %437 {offsets = [0, 0], sizes = [1, 256], strides = [1, 1]} : vector<8x256xf32> to vector<1x256xf32>
    %440 = vector.shape_cast %439 : vector<1x256xf32> to vector<1x256xf32>
    %441 = vector.broadcast %440 : vector<1x256xf32> to vector<8x256xf32>
    %442 = vector.broadcast %438 : vector<8x1xf32> to vector<8x256xf32>
    %443 = arith.mulf %442, %441 : vector<8x256xf32>
    %c0_95 = arith.constant 0 : index
    %c11_96 = arith.constant 11 : index
    %444 = vector.load %arg4[%c0_95, %c11_96] : memref<8x72xf32, #tpu.memory_space<vmem>>, vector<8x1xf32>
    %445 = vector.extract_strided_slice %437 {offsets = [1, 0], sizes = [1, 256], strides = [1, 1]} : vector<8x256xf32> to vector<1x256xf32>
    %446 = vector.shape_cast %445 : vector<1x256xf32> to vector<1x256xf32>
    %447 = vector.broadcast %446 : vector<1x256xf32> to vector<8x256xf32>
    %448 = vector.broadcast %444 : vector<8x1xf32> to vector<8x256xf32>
    %449 = arith.mulf %448, %447 : vector<8x256xf32>
    %450 = arith.addf %443, %449 : vector<8x256xf32>
    %c0_97 = arith.constant 0 : index
    %c20_98 = arith.constant 20 : index
    %451 = vector.load %arg4[%c0_97, %c20_98] : memref<8x72xf32, #tpu.memory_space<vmem>>, vector<8x1xf32>
    %452 = vector.extract_strided_slice %437 {offsets = [2, 0], sizes = [1, 256], strides = [1, 1]} : vector<8x256xf32> to vector<1x256xf32>
    %453 = vector.shape_cast %452 : vector<1x256xf32> to vector<1x256xf32>
    %454 = vector.broadcast %453 : vector<1x256xf32> to vector<8x256xf32>
    %455 = vector.broadcast %451 : vector<8x1xf32> to vector<8x256xf32>
    %456 = arith.mulf %455, %454 : vector<8x256xf32>
    %457 = arith.addf %450, %456 : vector<8x256xf32>
    %c0_99 = arith.constant 0 : index
    %c29_100 = arith.constant 29 : index
    %458 = vector.load %arg4[%c0_99, %c29_100] : memref<8x72xf32, #tpu.memory_space<vmem>>, vector<8x1xf32>
    %459 = vector.extract_strided_slice %437 {offsets = [3, 0], sizes = [1, 256], strides = [1, 1]} : vector<8x256xf32> to vector<1x256xf32>
    %460 = vector.shape_cast %459 : vector<1x256xf32> to vector<1x256xf32>
    %461 = vector.broadcast %460 : vector<1x256xf32> to vector<8x256xf32>
    %462 = vector.broadcast %458 : vector<8x1xf32> to vector<8x256xf32>
    %463 = arith.mulf %462, %461 : vector<8x256xf32>
    %464 = arith.addf %457, %463 : vector<8x256xf32>
    %c0_101 = arith.constant 0 : index
    %c38 = arith.constant 38 : index
    %465 = vector.load %arg4[%c0_101, %c38] : memref<8x72xf32, #tpu.memory_space<vmem>>, vector<8x1xf32>
    %466 = vector.extract_strided_slice %437 {offsets = [4, 0], sizes = [1, 256], strides = [1, 1]} : vector<8x256xf32> to vector<1x256xf32>
    %467 = vector.shape_cast %466 : vector<1x256xf32> to vector<1x256xf32>
    %468 = vector.broadcast %467 : vector<1x256xf32> to vector<8x256xf32>
    %469 = vector.broadcast %465 : vector<8x1xf32> to vector<8x256xf32>
    %470 = arith.mulf %469, %468 : vector<8x256xf32>
    %471 = arith.addf %464, %470 : vector<8x256xf32>
    %c0_102 = arith.constant 0 : index
    %c47 = arith.constant 47 : index
    %472 = vector.load %arg4[%c0_102, %c47] : memref<8x72xf32, #tpu.memory_space<vmem>>, vector<8x1xf32>
    %473 = vector.extract_strided_slice %437 {offsets = [5, 0], sizes = [1, 256], strides = [1, 1]} : vector<8x256xf32> to vector<1x256xf32>
    %474 = vector.shape_cast %473 : vector<1x256xf32> to vector<1x256xf32>
    %475 = vector.broadcast %474 : vector<1x256xf32> to vector<8x256xf32>
    %476 = vector.broadcast %472 : vector<8x1xf32> to vector<8x256xf32>
    %477 = arith.mulf %476, %475 : vector<8x256xf32>
    %478 = arith.addf %471, %477 : vector<8x256xf32>
    %c0_103 = arith.constant 0 : index
    %c56 = arith.constant 56 : index
    %479 = vector.load %arg4[%c0_103, %c56] : memref<8x72xf32, #tpu.memory_space<vmem>>, vector<8x1xf32>
    %480 = vector.extract_strided_slice %437 {offsets = [6, 0], sizes = [1, 256], strides = [1, 1]} : vector<8x256xf32> to vector<1x256xf32>
    %481 = vector.shape_cast %480 : vector<1x256xf32> to vector<1x256xf32>
    %482 = vector.broadcast %481 : vector<1x256xf32> to vector<8x256xf32>
    %483 = vector.broadcast %479 : vector<8x1xf32> to vector<8x256xf32>
    %484 = arith.mulf %483, %482 : vector<8x256xf32>
    %485 = arith.addf %478, %484 : vector<8x256xf32>
    %c0_104 = arith.constant 0 : index
    %c65 = arith.constant 65 : index
    %486 = vector.load %arg4[%c0_104, %c65] : memref<8x72xf32, #tpu.memory_space<vmem>>, vector<8x1xf32>
    %487 = vector.extract_strided_slice %437 {offsets = [7, 0], sizes = [1, 256], strides = [1, 1]} : vector<8x256xf32> to vector<1x256xf32>
    %488 = vector.shape_cast %487 : vector<1x256xf32> to vector<1x256xf32>
    %489 = vector.broadcast %488 : vector<1x256xf32> to vector<8x256xf32>
    %490 = vector.broadcast %486 : vector<8x1xf32> to vector<8x256xf32>
    %491 = arith.mulf %490, %489 : vector<8x256xf32>
    %492 = arith.addf %485, %491 : vector<8x256xf32>
    %cst_105 = arith.constant 0.000000e+00 : f32
    %493 = vector.broadcast %cst_105 : f32 to vector<8x256xf32>
    %494 = arith.select %14, %492, %493 : vector<8x256xi1>, vector<8x256xf32>
    %495 = arith.addf %436, %494 : vector<8x256xf32>
    %c1_i32_106 = arith.constant 1 : i32
    %496 = tpu.dynamic_rotate %317 by %c1_i32_106 dim 1 : vector<8x256xf32>, i32 -> vector<8x256xf32>
    %c0_107 = arith.constant 0 : index
    %c3_108 = arith.constant 3 : index
    %497 = vector.load %arg4[%c0_107, %c3_108] : memref<8x72xf32, #tpu.memory_space<vmem>>, vector<8x1xf32>
    %498 = vector.extract_strided_slice %496 {offsets = [0, 0], sizes = [1, 256], strides = [1, 1]} : vector<8x256xf32> to vector<1x256xf32>
    %499 = vector.shape_cast %498 : vector<1x256xf32> to vector<1x256xf32>
    %500 = vector.broadcast %499 : vector<1x256xf32> to vector<8x256xf32>
    %501 = vector.broadcast %497 : vector<8x1xf32> to vector<8x256xf32>
    %502 = arith.mulf %501, %500 : vector<8x256xf32>
    %c0_109 = arith.constant 0 : index
    %c12_110 = arith.constant 12 : index
    %503 = vector.load %arg4[%c0_109, %c12_110] : memref<8x72xf32, #tpu.memory_space<vmem>>, vector<8x1xf32>
    %504 = vector.extract_strided_slice %496 {offsets = [1, 0], sizes = [1, 256], strides = [1, 1]} : vector<8x256xf32> to vector<1x256xf32>
    %505 = vector.shape_cast %504 : vector<1x256xf32> to vector<1x256xf32>
    %506 = vector.broadcast %505 : vector<1x256xf32> to vector<8x256xf32>
    %507 = vector.broadcast %503 : vector<8x1xf32> to vector<8x256xf32>
    %508 = arith.mulf %507, %506 : vector<8x256xf32>
    %509 = arith.addf %502, %508 : vector<8x256xf32>
    %c0_111 = arith.constant 0 : index
    %c21_112 = arith.constant 21 : index
    %510 = vector.load %arg4[%c0_111, %c21_112] : memref<8x72xf32, #tpu.memory_space<vmem>>, vector<8x1xf32>
    %511 = vector.extract_strided_slice %496 {offsets = [2, 0], sizes = [1, 256], strides = [1, 1]} : vector<8x256xf32> to vector<1x256xf32>
    %512 = vector.shape_cast %511 : vector<1x256xf32> to vector<1x256xf32>
    %513 = vector.broadcast %512 : vector<1x256xf32> to vector<8x256xf32>
    %514 = vector.broadcast %510 : vector<8x1xf32> to vector<8x256xf32>
    %515 = arith.mulf %514, %513 : vector<8x256xf32>
    %516 = arith.addf %509, %515 : vector<8x256xf32>
    %c0_113 = arith.constant 0 : index
    %c30_114 = arith.constant 30 : index
    %517 = vector.load %arg4[%c0_113, %c30_114] : memref<8x72xf32, #tpu.memory_space<vmem>>, vector<8x1xf32>
    %518 = vector.extract_strided_slice %496 {offsets = [3, 0], sizes = [1, 256], strides = [1, 1]} : vector<8x256xf32> to vector<1x256xf32>
    %519 = vector.shape_cast %518 : vector<1x256xf32> to vector<1x256xf32>
    %520 = vector.broadcast %519 : vector<1x256xf32> to vector<8x256xf32>
    %521 = vector.broadcast %517 : vector<8x1xf32> to vector<8x256xf32>
    %522 = arith.mulf %521, %520 : vector<8x256xf32>
    %523 = arith.addf %516, %522 : vector<8x256xf32>
    %c0_115 = arith.constant 0 : index
    %c39 = arith.constant 39 : index
    %524 = vector.load %arg4[%c0_115, %c39] : memref<8x72xf32, #tpu.memory_space<vmem>>, vector<8x1xf32>
    %525 = vector.extract_strided_slice %496 {offsets = [4, 0], sizes = [1, 256], strides = [1, 1]} : vector<8x256xf32> to vector<1x256xf32>
    %526 = vector.shape_cast %525 : vector<1x256xf32> to vector<1x256xf32>
    %527 = vector.broadcast %526 : vector<1x256xf32> to vector<8x256xf32>
    %528 = vector.broadcast %524 : vector<8x1xf32> to vector<8x256xf32>
    %529 = arith.mulf %528, %527 : vector<8x256xf32>
    %530 = arith.addf %523, %529 : vector<8x256xf32>
    %c0_116 = arith.constant 0 : index
    %c48 = arith.constant 48 : index
    %531 = vector.load %arg4[%c0_116, %c48] : memref<8x72xf32, #tpu.memory_space<vmem>>, vector<8x1xf32>
    %532 = vector.extract_strided_slice %496 {offsets = [5, 0], sizes = [1, 256], strides = [1, 1]} : vector<8x256xf32> to vector<1x256xf32>
    %533 = vector.shape_cast %532 : vector<1x256xf32> to vector<1x256xf32>
    %534 = vector.broadcast %533 : vector<1x256xf32> to vector<8x256xf32>
    %535 = vector.broadcast %531 : vector<8x1xf32> to vector<8x256xf32>
    %536 = arith.mulf %535, %534 : vector<8x256xf32>
    %537 = arith.addf %530, %536 : vector<8x256xf32>
    %c0_117 = arith.constant 0 : index
    %c57 = arith.constant 57 : index
    %538 = vector.load %arg4[%c0_117, %c57] : memref<8x72xf32, #tpu.memory_space<vmem>>, vector<8x1xf32>
    %539 = vector.extract_strided_slice %496 {offsets = [6, 0], sizes = [1, 256], strides = [1, 1]} : vector<8x256xf32> to vector<1x256xf32>
    %540 = vector.shape_cast %539 : vector<1x256xf32> to vector<1x256xf32>
    %541 = vector.broadcast %540 : vector<1x256xf32> to vector<8x256xf32>
    %542 = vector.broadcast %538 : vector<8x1xf32> to vector<8x256xf32>
    %543 = arith.mulf %542, %541 : vector<8x256xf32>
    %544 = arith.addf %537, %543 : vector<8x256xf32>
    %c0_118 = arith.constant 0 : index
    %c66 = arith.constant 66 : index
    %545 = vector.load %arg4[%c0_118, %c66] : memref<8x72xf32, #tpu.memory_space<vmem>>, vector<8x1xf32>
    %546 = vector.extract_strided_slice %496 {offsets = [7, 0], sizes = [1, 256], strides = [1, 1]} : vector<8x256xf32> to vector<1x256xf32>
    %547 = vector.shape_cast %546 : vector<1x256xf32> to vector<1x256xf32>
    %548 = vector.broadcast %547 : vector<1x256xf32> to vector<8x256xf32>
    %549 = vector.broadcast %545 : vector<8x1xf32> to vector<8x256xf32>
    %550 = arith.mulf %549, %548 : vector<8x256xf32>
    %551 = arith.addf %544, %550 : vector<8x256xf32>
    %cst_119 = arith.constant 0.000000e+00 : f32
    %552 = vector.broadcast %cst_119 : f32 to vector<8x256xf32>
    %553 = arith.select %16, %551, %552 : vector<8x256xi1>, vector<8x256xf32>
    %554 = arith.addf %495, %553 : vector<8x256xf32>
    %c0_120 = arith.constant 0 : index
    %c4_121 = arith.constant 4 : index
    %555 = vector.load %arg4[%c0_120, %c4_121] : memref<8x72xf32, #tpu.memory_space<vmem>>, vector<8x1xf32>
    %556 = vector.extract_strided_slice %317 {offsets = [0, 0], sizes = [1, 256], strides = [1, 1]} : vector<8x256xf32> to vector<1x256xf32>
    %557 = vector.shape_cast %556 : vector<1x256xf32> to vector<1x256xf32>
    %558 = vector.broadcast %557 : vector<1x256xf32> to vector<8x256xf32>
    %559 = vector.broadcast %555 : vector<8x1xf32> to vector<8x256xf32>
    %560 = arith.mulf %559, %558 : vector<8x256xf32>
    %c0_122 = arith.constant 0 : index
    %c13_123 = arith.constant 13 : index
    %561 = vector.load %arg4[%c0_122, %c13_123] : memref<8x72xf32, #tpu.memory_space<vmem>>, vector<8x1xf32>
    %562 = vector.extract_strided_slice %317 {offsets = [1, 0], sizes = [1, 256], strides = [1, 1]} : vector<8x256xf32> to vector<1x256xf32>
    %563 = vector.shape_cast %562 : vector<1x256xf32> to vector<1x256xf32>
    %564 = vector.broadcast %563 : vector<1x256xf32> to vector<8x256xf32>
    %565 = vector.broadcast %561 : vector<8x1xf32> to vector<8x256xf32>
    %566 = arith.mulf %565, %564 : vector<8x256xf32>
    %567 = arith.addf %560, %566 : vector<8x256xf32>
    %c0_124 = arith.constant 0 : index
    %c22_125 = arith.constant 22 : index
    %568 = vector.load %arg4[%c0_124, %c22_125] : memref<8x72xf32, #tpu.memory_space<vmem>>, vector<8x1xf32>
    %569 = vector.extract_strided_slice %317 {offsets = [2, 0], sizes = [1, 256], strides = [1, 1]} : vector<8x256xf32> to vector<1x256xf32>
    %570 = vector.shape_cast %569 : vector<1x256xf32> to vector<1x256xf32>
    %571 = vector.broadcast %570 : vector<1x256xf32> to vector<8x256xf32>
    %572 = vector.broadcast %568 : vector<8x1xf32> to vector<8x256xf32>
    %573 = arith.mulf %572, %571 : vector<8x256xf32>
    %574 = arith.addf %567, %573 : vector<8x256xf32>
    %c0_126 = arith.constant 0 : index
    %c31_127 = arith.constant 31 : index
    %575 = vector.load %arg4[%c0_126, %c31_127] : memref<8x72xf32, #tpu.memory_space<vmem>>, vector<8x1xf32>
    %576 = vector.extract_strided_slice %317 {offsets = [3, 0], sizes = [1, 256], strides = [1, 1]} : vector<8x256xf32> to vector<1x256xf32>
    %577 = vector.shape_cast %576 : vector<1x256xf32> to vector<1x256xf32>
    %578 = vector.broadcast %577 : vector<1x256xf32> to vector<8x256xf32>
    %579 = vector.broadcast %575 : vector<8x1xf32> to vector<8x256xf32>
    %580 = arith.mulf %579, %578 : vector<8x256xf32>
    %581 = arith.addf %574, %580 : vector<8x256xf32>
    %c0_128 = arith.constant 0 : index
    %c40 = arith.constant 40 : index
    %582 = vector.load %arg4[%c0_128, %c40] : memref<8x72xf32, #tpu.memory_space<vmem>>, vector<8x1xf32>
    %583 = vector.extract_strided_slice %317 {offsets = [4, 0], sizes = [1, 256], strides = [1, 1]} : vector<8x256xf32> to vector<1x256xf32>
    %584 = vector.shape_cast %583 : vector<1x256xf32> to vector<1x256xf32>
    %585 = vector.broadcast %584 : vector<1x256xf32> to vector<8x256xf32>
    %586 = vector.broadcast %582 : vector<8x1xf32> to vector<8x256xf32>
    %587 = arith.mulf %586, %585 : vector<8x256xf32>
    %588 = arith.addf %581, %587 : vector<8x256xf32>
    %c0_129 = arith.constant 0 : index
    %c49 = arith.constant 49 : index
    %589 = vector.load %arg4[%c0_129, %c49] : memref<8x72xf32, #tpu.memory_space<vmem>>, vector<8x1xf32>
    %590 = vector.extract_strided_slice %317 {offsets = [5, 0], sizes = [1, 256], strides = [1, 1]} : vector<8x256xf32> to vector<1x256xf32>
    %591 = vector.shape_cast %590 : vector<1x256xf32> to vector<1x256xf32>
    %592 = vector.broadcast %591 : vector<1x256xf32> to vector<8x256xf32>
    %593 = vector.broadcast %589 : vector<8x1xf32> to vector<8x256xf32>
    %594 = arith.mulf %593, %592 : vector<8x256xf32>
    %595 = arith.addf %588, %594 : vector<8x256xf32>
    %c0_130 = arith.constant 0 : index
    %c58 = arith.constant 58 : index
    %596 = vector.load %arg4[%c0_130, %c58] : memref<8x72xf32, #tpu.memory_space<vmem>>, vector<8x1xf32>
    %597 = vector.extract_strided_slice %317 {offsets = [6, 0], sizes = [1, 256], strides = [1, 1]} : vector<8x256xf32> to vector<1x256xf32>
    %598 = vector.shape_cast %597 : vector<1x256xf32> to vector<1x256xf32>
    %599 = vector.broadcast %598 : vector<1x256xf32> to vector<8x256xf32>
    %600 = vector.broadcast %596 : vector<8x1xf32> to vector<8x256xf32>
    %601 = arith.mulf %600, %599 : vector<8x256xf32>
    %602 = arith.addf %595, %601 : vector<8x256xf32>
    %c0_131 = arith.constant 0 : index
    %c67 = arith.constant 67 : index
    %603 = vector.load %arg4[%c0_131, %c67] : memref<8x72xf32, #tpu.memory_space<vmem>>, vector<8x1xf32>
    %604 = vector.extract_strided_slice %317 {offsets = [7, 0], sizes = [1, 256], strides = [1, 1]} : vector<8x256xf32> to vector<1x256xf32>
    %605 = vector.shape_cast %604 : vector<1x256xf32> to vector<1x256xf32>
    %606 = vector.broadcast %605 : vector<1x256xf32> to vector<8x256xf32>
    %607 = vector.broadcast %603 : vector<8x1xf32> to vector<8x256xf32>
    %608 = arith.mulf %607, %606 : vector<8x256xf32>
    %609 = arith.addf %602, %608 : vector<8x256xf32>
    %610 = arith.addf %554, %609 : vector<8x256xf32>
    %c255_i32_132 = arith.constant 255 : i32
    %611 = tpu.dynamic_rotate %317 by %c255_i32_132 dim 1 : vector<8x256xf32>, i32 -> vector<8x256xf32>
    %c0_133 = arith.constant 0 : index
    %c5_134 = arith.constant 5 : index
    %612 = vector.load %arg4[%c0_133, %c5_134] : memref<8x72xf32, #tpu.memory_space<vmem>>, vector<8x1xf32>
    %613 = vector.extract_strided_slice %611 {offsets = [0, 0], sizes = [1, 256], strides = [1, 1]} : vector<8x256xf32> to vector<1x256xf32>
    %614 = vector.shape_cast %613 : vector<1x256xf32> to vector<1x256xf32>
    %615 = vector.broadcast %614 : vector<1x256xf32> to vector<8x256xf32>
    %616 = vector.broadcast %612 : vector<8x1xf32> to vector<8x256xf32>
    %617 = arith.mulf %616, %615 : vector<8x256xf32>
    %c0_135 = arith.constant 0 : index
    %c14_136 = arith.constant 14 : index
    %618 = vector.load %arg4[%c0_135, %c14_136] : memref<8x72xf32, #tpu.memory_space<vmem>>, vector<8x1xf32>
    %619 = vector.extract_strided_slice %611 {offsets = [1, 0], sizes = [1, 256], strides = [1, 1]} : vector<8x256xf32> to vector<1x256xf32>
    %620 = vector.shape_cast %619 : vector<1x256xf32> to vector<1x256xf32>
    %621 = vector.broadcast %620 : vector<1x256xf32> to vector<8x256xf32>
    %622 = vector.broadcast %618 : vector<8x1xf32> to vector<8x256xf32>
    %623 = arith.mulf %622, %621 : vector<8x256xf32>
    %624 = arith.addf %617, %623 : vector<8x256xf32>
    %c0_137 = arith.constant 0 : index
    %c23_138 = arith.constant 23 : index
    %625 = vector.load %arg4[%c0_137, %c23_138] : memref<8x72xf32, #tpu.memory_space<vmem>>, vector<8x1xf32>
    %626 = vector.extract_strided_slice %611 {offsets = [2, 0], sizes = [1, 256], strides = [1, 1]} : vector<8x256xf32> to vector<1x256xf32>
    %627 = vector.shape_cast %626 : vector<1x256xf32> to vector<1x256xf32>
    %628 = vector.broadcast %627 : vector<1x256xf32> to vector<8x256xf32>
    %629 = vector.broadcast %625 : vector<8x1xf32> to vector<8x256xf32>
    %630 = arith.mulf %629, %628 : vector<8x256xf32>
    %631 = arith.addf %624, %630 : vector<8x256xf32>
    %c0_139 = arith.constant 0 : index
    %c32_140 = arith.constant 32 : index
    %632 = vector.load %arg4[%c0_139, %c32_140] : memref<8x72xf32, #tpu.memory_space<vmem>>, vector<8x1xf32>
    %633 = vector.extract_strided_slice %611 {offsets = [3, 0], sizes = [1, 256], strides = [1, 1]} : vector<8x256xf32> to vector<1x256xf32>
    %634 = vector.shape_cast %633 : vector<1x256xf32> to vector<1x256xf32>
    %635 = vector.broadcast %634 : vector<1x256xf32> to vector<8x256xf32>
    %636 = vector.broadcast %632 : vector<8x1xf32> to vector<8x256xf32>
    %637 = arith.mulf %636, %635 : vector<8x256xf32>
    %638 = arith.addf %631, %637 : vector<8x256xf32>
    %c0_141 = arith.constant 0 : index
    %c41 = arith.constant 41 : index
    %639 = vector.load %arg4[%c0_141, %c41] : memref<8x72xf32, #tpu.memory_space<vmem>>, vector<8x1xf32>
    %640 = vector.extract_strided_slice %611 {offsets = [4, 0], sizes = [1, 256], strides = [1, 1]} : vector<8x256xf32> to vector<1x256xf32>
    %641 = vector.shape_cast %640 : vector<1x256xf32> to vector<1x256xf32>
    %642 = vector.broadcast %641 : vector<1x256xf32> to vector<8x256xf32>
    %643 = vector.broadcast %639 : vector<8x1xf32> to vector<8x256xf32>
    %644 = arith.mulf %643, %642 : vector<8x256xf32>
    %645 = arith.addf %638, %644 : vector<8x256xf32>
    %c0_142 = arith.constant 0 : index
    %c50 = arith.constant 50 : index
    %646 = vector.load %arg4[%c0_142, %c50] : memref<8x72xf32, #tpu.memory_space<vmem>>, vector<8x1xf32>
    %647 = vector.extract_strided_slice %611 {offsets = [5, 0], sizes = [1, 256], strides = [1, 1]} : vector<8x256xf32> to vector<1x256xf32>
    %648 = vector.shape_cast %647 : vector<1x256xf32> to vector<1x256xf32>
    %649 = vector.broadcast %648 : vector<1x256xf32> to vector<8x256xf32>
    %650 = vector.broadcast %646 : vector<8x1xf32> to vector<8x256xf32>
    %651 = arith.mulf %650, %649 : vector<8x256xf32>
    %652 = arith.addf %645, %651 : vector<8x256xf32>
    %c0_143 = arith.constant 0 : index
    %c59 = arith.constant 59 : index
    %653 = vector.load %arg4[%c0_143, %c59] : memref<8x72xf32, #tpu.memory_space<vmem>>, vector<8x1xf32>
    %654 = vector.extract_strided_slice %611 {offsets = [6, 0], sizes = [1, 256], strides = [1, 1]} : vector<8x256xf32> to vector<1x256xf32>
    %655 = vector.shape_cast %654 : vector<1x256xf32> to vector<1x256xf32>
    %656 = vector.broadcast %655 : vector<1x256xf32> to vector<8x256xf32>
    %657 = vector.broadcast %653 : vector<8x1xf32> to vector<8x256xf32>
    %658 = arith.mulf %657, %656 : vector<8x256xf32>
    %659 = arith.addf %652, %658 : vector<8x256xf32>
    %c0_144 = arith.constant 0 : index
    %c68 = arith.constant 68 : index
    %660 = vector.load %arg4[%c0_144, %c68] : memref<8x72xf32, #tpu.memory_space<vmem>>, vector<8x1xf32>
    %661 = vector.extract_strided_slice %611 {offsets = [7, 0], sizes = [1, 256], strides = [1, 1]} : vector<8x256xf32> to vector<1x256xf32>
    %662 = vector.shape_cast %661 : vector<1x256xf32> to vector<1x256xf32>
    %663 = vector.broadcast %662 : vector<1x256xf32> to vector<8x256xf32>
    %664 = vector.broadcast %660 : vector<8x1xf32> to vector<8x256xf32>
    %665 = arith.mulf %664, %663 : vector<8x256xf32>
    %666 = arith.addf %659, %665 : vector<8x256xf32>
    %cst_145 = arith.constant 0.000000e+00 : f32
    %667 = vector.broadcast %cst_145 : f32 to vector<8x256xf32>
    %668 = arith.select %18, %666, %667 : vector<8x256xi1>, vector<8x256xf32>
    %669 = arith.addf %610, %668 : vector<8x256xf32>
    %c241_i32_146 = arith.constant 241 : i32
    %670 = tpu.dynamic_rotate %317 by %c241_i32_146 dim 1 : vector<8x256xf32>, i32 -> vector<8x256xf32>
    %c0_147 = arith.constant 0 : index
    %c6_148 = arith.constant 6 : index
    %671 = vector.load %arg4[%c0_147, %c6_148] : memref<8x72xf32, #tpu.memory_space<vmem>>, vector<8x1xf32>
    %672 = vector.extract_strided_slice %670 {offsets = [0, 0], sizes = [1, 256], strides = [1, 1]} : vector<8x256xf32> to vector<1x256xf32>
    %673 = vector.shape_cast %672 : vector<1x256xf32> to vector<1x256xf32>
    %674 = vector.broadcast %673 : vector<1x256xf32> to vector<8x256xf32>
    %675 = vector.broadcast %671 : vector<8x1xf32> to vector<8x256xf32>
    %676 = arith.mulf %675, %674 : vector<8x256xf32>
    %c0_149 = arith.constant 0 : index
    %c15_150 = arith.constant 15 : index
    %677 = vector.load %arg4[%c0_149, %c15_150] : memref<8x72xf32, #tpu.memory_space<vmem>>, vector<8x1xf32>
    %678 = vector.extract_strided_slice %670 {offsets = [1, 0], sizes = [1, 256], strides = [1, 1]} : vector<8x256xf32> to vector<1x256xf32>
    %679 = vector.shape_cast %678 : vector<1x256xf32> to vector<1x256xf32>
    %680 = vector.broadcast %679 : vector<1x256xf32> to vector<8x256xf32>
    %681 = vector.broadcast %677 : vector<8x1xf32> to vector<8x256xf32>
    %682 = arith.mulf %681, %680 : vector<8x256xf32>
    %683 = arith.addf %676, %682 : vector<8x256xf32>
    %c0_151 = arith.constant 0 : index
    %c24_152 = arith.constant 24 : index
    %684 = vector.load %arg4[%c0_151, %c24_152] : memref<8x72xf32, #tpu.memory_space<vmem>>, vector<8x1xf32>
    %685 = vector.extract_strided_slice %670 {offsets = [2, 0], sizes = [1, 256], strides = [1, 1]} : vector<8x256xf32> to vector<1x256xf32>
    %686 = vector.shape_cast %685 : vector<1x256xf32> to vector<1x256xf32>
    %687 = vector.broadcast %686 : vector<1x256xf32> to vector<8x256xf32>
    %688 = vector.broadcast %684 : vector<8x1xf32> to vector<8x256xf32>
    %689 = arith.mulf %688, %687 : vector<8x256xf32>
    %690 = arith.addf %683, %689 : vector<8x256xf32>
    %c0_153 = arith.constant 0 : index
    %c33_154 = arith.constant 33 : index
    %691 = vector.load %arg4[%c0_153, %c33_154] : memref<8x72xf32, #tpu.memory_space<vmem>>, vector<8x1xf32>
    %692 = vector.extract_strided_slice %670 {offsets = [3, 0], sizes = [1, 256], strides = [1, 1]} : vector<8x256xf32> to vector<1x256xf32>
    %693 = vector.shape_cast %692 : vector<1x256xf32> to vector<1x256xf32>
    %694 = vector.broadcast %693 : vector<1x256xf32> to vector<8x256xf32>
    %695 = vector.broadcast %691 : vector<8x1xf32> to vector<8x256xf32>
    %696 = arith.mulf %695, %694 : vector<8x256xf32>
    %697 = arith.addf %690, %696 : vector<8x256xf32>
    %c0_155 = arith.constant 0 : index
    %c42 = arith.constant 42 : index
    %698 = vector.load %arg4[%c0_155, %c42] : memref<8x72xf32, #tpu.memory_space<vmem>>, vector<8x1xf32>
    %699 = vector.extract_strided_slice %670 {offsets = [4, 0], sizes = [1, 256], strides = [1, 1]} : vector<8x256xf32> to vector<1x256xf32>
    %700 = vector.shape_cast %699 : vector<1x256xf32> to vector<1x256xf32>
    %701 = vector.broadcast %700 : vector<1x256xf32> to vector<8x256xf32>
    %702 = vector.broadcast %698 : vector<8x1xf32> to vector<8x256xf32>
    %703 = arith.mulf %702, %701 : vector<8x256xf32>
    %704 = arith.addf %697, %703 : vector<8x256xf32>
    %c0_156 = arith.constant 0 : index
    %c51 = arith.constant 51 : index
    %705 = vector.load %arg4[%c0_156, %c51] : memref<8x72xf32, #tpu.memory_space<vmem>>, vector<8x1xf32>
    %706 = vector.extract_strided_slice %670 {offsets = [5, 0], sizes = [1, 256], strides = [1, 1]} : vector<8x256xf32> to vector<1x256xf32>
    %707 = vector.shape_cast %706 : vector<1x256xf32> to vector<1x256xf32>
    %708 = vector.broadcast %707 : vector<1x256xf32> to vector<8x256xf32>
    %709 = vector.broadcast %705 : vector<8x1xf32> to vector<8x256xf32>
    %710 = arith.mulf %709, %708 : vector<8x256xf32>
    %711 = arith.addf %704, %710 : vector<8x256xf32>
    %c0_157 = arith.constant 0 : index
    %c60 = arith.constant 60 : index
    %712 = vector.load %arg4[%c0_157, %c60] : memref<8x72xf32, #tpu.memory_space<vmem>>, vector<8x1xf32>
    %713 = vector.extract_strided_slice %670 {offsets = [6, 0], sizes = [1, 256], strides = [1, 1]} : vector<8x256xf32> to vector<1x256xf32>
    %714 = vector.shape_cast %713 : vector<1x256xf32> to vector<1x256xf32>
    %715 = vector.broadcast %714 : vector<1x256xf32> to vector<8x256xf32>
    %716 = vector.broadcast %712 : vector<8x1xf32> to vector<8x256xf32>
    %717 = arith.mulf %716, %715 : vector<8x256xf32>
    %718 = arith.addf %711, %717 : vector<8x256xf32>
    %c0_158 = arith.constant 0 : index
    %c69 = arith.constant 69 : index
    %719 = vector.load %arg4[%c0_158, %c69] : memref<8x72xf32, #tpu.memory_space<vmem>>, vector<8x1xf32>
    %720 = vector.extract_strided_slice %670 {offsets = [7, 0], sizes = [1, 256], strides = [1, 1]} : vector<8x256xf32> to vector<1x256xf32>
    %721 = vector.shape_cast %720 : vector<1x256xf32> to vector<1x256xf32>
    %722 = vector.broadcast %721 : vector<1x256xf32> to vector<8x256xf32>
    %723 = vector.broadcast %719 : vector<8x1xf32> to vector<8x256xf32>
    %724 = arith.mulf %723, %722 : vector<8x256xf32>
    %725 = arith.addf %718, %724 : vector<8x256xf32>
    %cst_159 = arith.constant 0.000000e+00 : f32
    %726 = vector.broadcast %cst_159 : f32 to vector<8x256xf32>
    %727 = arith.select %23, %725, %726 : vector<8x256xi1>, vector<8x256xf32>
    %728 = arith.addf %669, %727 : vector<8x256xf32>
    %c240_i32_160 = arith.constant 240 : i32
    %729 = tpu.dynamic_rotate %317 by %c240_i32_160 dim 1 : vector<8x256xf32>, i32 -> vector<8x256xf32>
    %c0_161 = arith.constant 0 : index
    %c7_162 = arith.constant 7 : index
    %730 = vector.load %arg4[%c0_161, %c7_162] : memref<8x72xf32, #tpu.memory_space<vmem>>, vector<8x1xf32>
    %731 = vector.extract_strided_slice %729 {offsets = [0, 0], sizes = [1, 256], strides = [1, 1]} : vector<8x256xf32> to vector<1x256xf32>
    %732 = vector.shape_cast %731 : vector<1x256xf32> to vector<1x256xf32>
    %733 = vector.broadcast %732 : vector<1x256xf32> to vector<8x256xf32>
    %734 = vector.broadcast %730 : vector<8x1xf32> to vector<8x256xf32>
    %735 = arith.mulf %734, %733 : vector<8x256xf32>
    %c0_163 = arith.constant 0 : index
    %c16_164 = arith.constant 16 : index
    %736 = vector.load %arg4[%c0_163, %c16_164] : memref<8x72xf32, #tpu.memory_space<vmem>>, vector<8x1xf32>
    %737 = vector.extract_strided_slice %729 {offsets = [1, 0], sizes = [1, 256], strides = [1, 1]} : vector<8x256xf32> to vector<1x256xf32>
    %738 = vector.shape_cast %737 : vector<1x256xf32> to vector<1x256xf32>
    %739 = vector.broadcast %738 : vector<1x256xf32> to vector<8x256xf32>
    %740 = vector.broadcast %736 : vector<8x1xf32> to vector<8x256xf32>
    %741 = arith.mulf %740, %739 : vector<8x256xf32>
    %742 = arith.addf %735, %741 : vector<8x256xf32>
    %c0_165 = arith.constant 0 : index
    %c25_166 = arith.constant 25 : index
    %743 = vector.load %arg4[%c0_165, %c25_166] : memref<8x72xf32, #tpu.memory_space<vmem>>, vector<8x1xf32>
    %744 = vector.extract_strided_slice %729 {offsets = [2, 0], sizes = [1, 256], strides = [1, 1]} : vector<8x256xf32> to vector<1x256xf32>
    %745 = vector.shape_cast %744 : vector<1x256xf32> to vector<1x256xf32>
    %746 = vector.broadcast %745 : vector<1x256xf32> to vector<8x256xf32>
    %747 = vector.broadcast %743 : vector<8x1xf32> to vector<8x256xf32>
    %748 = arith.mulf %747, %746 : vector<8x256xf32>
    %749 = arith.addf %742, %748 : vector<8x256xf32>
    %c0_167 = arith.constant 0 : index
    %c34_168 = arith.constant 34 : index
    %750 = vector.load %arg4[%c0_167, %c34_168] : memref<8x72xf32, #tpu.memory_space<vmem>>, vector<8x1xf32>
    %751 = vector.extract_strided_slice %729 {offsets = [3, 0], sizes = [1, 256], strides = [1, 1]} : vector<8x256xf32> to vector<1x256xf32>
    %752 = vector.shape_cast %751 : vector<1x256xf32> to vector<1x256xf32>
    %753 = vector.broadcast %752 : vector<1x256xf32> to vector<8x256xf32>
    %754 = vector.broadcast %750 : vector<8x1xf32> to vector<8x256xf32>
    %755 = arith.mulf %754, %753 : vector<8x256xf32>
    %756 = arith.addf %749, %755 : vector<8x256xf32>
    %c0_169 = arith.constant 0 : index
    %c43 = arith.constant 43 : index
    %757 = vector.load %arg4[%c0_169, %c43] : memref<8x72xf32, #tpu.memory_space<vmem>>, vector<8x1xf32>
    %758 = vector.extract_strided_slice %729 {offsets = [4, 0], sizes = [1, 256], strides = [1, 1]} : vector<8x256xf32> to vector<1x256xf32>
    %759 = vector.shape_cast %758 : vector<1x256xf32> to vector<1x256xf32>
    %760 = vector.broadcast %759 : vector<1x256xf32> to vector<8x256xf32>
    %761 = vector.broadcast %757 : vector<8x1xf32> to vector<8x256xf32>
    %762 = arith.mulf %761, %760 : vector<8x256xf32>
    %763 = arith.addf %756, %762 : vector<8x256xf32>
    %c0_170 = arith.constant 0 : index
    %c52 = arith.constant 52 : index
    %764 = vector.load %arg4[%c0_170, %c52] : memref<8x72xf32, #tpu.memory_space<vmem>>, vector<8x1xf32>
    %765 = vector.extract_strided_slice %729 {offsets = [5, 0], sizes = [1, 256], strides = [1, 1]} : vector<8x256xf32> to vector<1x256xf32>
    %766 = vector.shape_cast %765 : vector<1x256xf32> to vector<1x256xf32>
    %767 = vector.broadcast %766 : vector<1x256xf32> to vector<8x256xf32>
    %768 = vector.broadcast %764 : vector<8x1xf32> to vector<8x256xf32>
    %769 = arith.mulf %768, %767 : vector<8x256xf32>
    %770 = arith.addf %763, %769 : vector<8x256xf32>
    %c0_171 = arith.constant 0 : index
    %c61 = arith.constant 61 : index
    %771 = vector.load %arg4[%c0_171, %c61] : memref<8x72xf32, #tpu.memory_space<vmem>>, vector<8x1xf32>
    %772 = vector.extract_strided_slice %729 {offsets = [6, 0], sizes = [1, 256], strides = [1, 1]} : vector<8x256xf32> to vector<1x256xf32>
    %773 = vector.shape_cast %772 : vector<1x256xf32> to vector<1x256xf32>
    %774 = vector.broadcast %773 : vector<1x256xf32> to vector<8x256xf32>
    %775 = vector.broadcast %771 : vector<8x1xf32> to vector<8x256xf32>
    %776 = arith.mulf %775, %774 : vector<8x256xf32>
    %777 = arith.addf %770, %776 : vector<8x256xf32>
    %c0_172 = arith.constant 0 : index
    %c70 = arith.constant 70 : index
    %778 = vector.load %arg4[%c0_172, %c70] : memref<8x72xf32, #tpu.memory_space<vmem>>, vector<8x1xf32>
    %779 = vector.extract_strided_slice %729 {offsets = [7, 0], sizes = [1, 256], strides = [1, 1]} : vector<8x256xf32> to vector<1x256xf32>
    %780 = vector.shape_cast %779 : vector<1x256xf32> to vector<1x256xf32>
    %781 = vector.broadcast %780 : vector<1x256xf32> to vector<8x256xf32>
    %782 = vector.broadcast %778 : vector<8x1xf32> to vector<8x256xf32>
    %783 = arith.mulf %782, %781 : vector<8x256xf32>
    %784 = arith.addf %777, %783 : vector<8x256xf32>
    %cst_173 = arith.constant 0.000000e+00 : f32
    %785 = vector.broadcast %cst_173 : f32 to vector<8x256xf32>
    %786 = arith.select %25, %784, %785 : vector<8x256xi1>, vector<8x256xf32>
    %787 = arith.addf %728, %786 : vector<8x256xf32>
    %c239_i32_174 = arith.constant 239 : i32
    %788 = tpu.dynamic_rotate %317 by %c239_i32_174 dim 1 : vector<8x256xf32>, i32 -> vector<8x256xf32>
    %c0_175 = arith.constant 0 : index
    %c8_176 = arith.constant 8 : index
    %789 = vector.load %arg4[%c0_175, %c8_176] : memref<8x72xf32, #tpu.memory_space<vmem>>, vector<8x1xf32>
    %790 = vector.extract_strided_slice %788 {offsets = [0, 0], sizes = [1, 256], strides = [1, 1]} : vector<8x256xf32> to vector<1x256xf32>
    %791 = vector.shape_cast %790 : vector<1x256xf32> to vector<1x256xf32>
    %792 = vector.broadcast %791 : vector<1x256xf32> to vector<8x256xf32>
    %793 = vector.broadcast %789 : vector<8x1xf32> to vector<8x256xf32>
    %794 = arith.mulf %793, %792 : vector<8x256xf32>
    %c0_177 = arith.constant 0 : index
    %c17_178 = arith.constant 17 : index
    %795 = vector.load %arg4[%c0_177, %c17_178] : memref<8x72xf32, #tpu.memory_space<vmem>>, vector<8x1xf32>
    %796 = vector.extract_strided_slice %788 {offsets = [1, 0], sizes = [1, 256], strides = [1, 1]} : vector<8x256xf32> to vector<1x256xf32>
    %797 = vector.shape_cast %796 : vector<1x256xf32> to vector<1x256xf32>
    %798 = vector.broadcast %797 : vector<1x256xf32> to vector<8x256xf32>
    %799 = vector.broadcast %795 : vector<8x1xf32> to vector<8x256xf32>
    %800 = arith.mulf %799, %798 : vector<8x256xf32>
    %801 = arith.addf %794, %800 : vector<8x256xf32>
    %c0_179 = arith.constant 0 : index
    %c26_180 = arith.constant 26 : index
    %802 = vector.load %arg4[%c0_179, %c26_180] : memref<8x72xf32, #tpu.memory_space<vmem>>, vector<8x1xf32>
    %803 = vector.extract_strided_slice %788 {offsets = [2, 0], sizes = [1, 256], strides = [1, 1]} : vector<8x256xf32> to vector<1x256xf32>
    %804 = vector.shape_cast %803 : vector<1x256xf32> to vector<1x256xf32>
    %805 = vector.broadcast %804 : vector<1x256xf32> to vector<8x256xf32>
    %806 = vector.broadcast %802 : vector<8x1xf32> to vector<8x256xf32>
    %807 = arith.mulf %806, %805 : vector<8x256xf32>
    %808 = arith.addf %801, %807 : vector<8x256xf32>
    %c0_181 = arith.constant 0 : index
    %c35_182 = arith.constant 35 : index
    %809 = vector.load %arg4[%c0_181, %c35_182] : memref<8x72xf32, #tpu.memory_space<vmem>>, vector<8x1xf32>
    %810 = vector.extract_strided_slice %788 {offsets = [3, 0], sizes = [1, 256], strides = [1, 1]} : vector<8x256xf32> to vector<1x256xf32>
    %811 = vector.shape_cast %810 : vector<1x256xf32> to vector<1x256xf32>
    %812 = vector.broadcast %811 : vector<1x256xf32> to vector<8x256xf32>
    %813 = vector.broadcast %809 : vector<8x1xf32> to vector<8x256xf32>
    %814 = arith.mulf %813, %812 : vector<8x256xf32>
    %815 = arith.addf %808, %814 : vector<8x256xf32>
    %c0_183 = arith.constant 0 : index
    %c44 = arith.constant 44 : index
    %816 = vector.load %arg4[%c0_183, %c44] : memref<8x72xf32, #tpu.memory_space<vmem>>, vector<8x1xf32>
    %817 = vector.extract_strided_slice %788 {offsets = [4, 0], sizes = [1, 256], strides = [1, 1]} : vector<8x256xf32> to vector<1x256xf32>
    %818 = vector.shape_cast %817 : vector<1x256xf32> to vector<1x256xf32>
    %819 = vector.broadcast %818 : vector<1x256xf32> to vector<8x256xf32>
    %820 = vector.broadcast %816 : vector<8x1xf32> to vector<8x256xf32>
    %821 = arith.mulf %820, %819 : vector<8x256xf32>
    %822 = arith.addf %815, %821 : vector<8x256xf32>
    %c0_184 = arith.constant 0 : index
    %c53 = arith.constant 53 : index
    %823 = vector.load %arg4[%c0_184, %c53] : memref<8x72xf32, #tpu.memory_space<vmem>>, vector<8x1xf32>
    %824 = vector.extract_strided_slice %788 {offsets = [5, 0], sizes = [1, 256], strides = [1, 1]} : vector<8x256xf32> to vector<1x256xf32>
    %825 = vector.shape_cast %824 : vector<1x256xf32> to vector<1x256xf32>
    %826 = vector.broadcast %825 : vector<1x256xf32> to vector<8x256xf32>
    %827 = vector.broadcast %823 : vector<8x1xf32> to vector<8x256xf32>
    %828 = arith.mulf %827, %826 : vector<8x256xf32>
    %829 = arith.addf %822, %828 : vector<8x256xf32>
    %c0_185 = arith.constant 0 : index
    %c62 = arith.constant 62 : index
    %830 = vector.load %arg4[%c0_185, %c62] : memref<8x72xf32, #tpu.memory_space<vmem>>, vector<8x1xf32>
    %831 = vector.extract_strided_slice %788 {offsets = [6, 0], sizes = [1, 256], strides = [1, 1]} : vector<8x256xf32> to vector<1x256xf32>
    %832 = vector.shape_cast %831 : vector<1x256xf32> to vector<1x256xf32>
    %833 = vector.broadcast %832 : vector<1x256xf32> to vector<8x256xf32>
    %834 = vector.broadcast %830 : vector<8x1xf32> to vector<8x256xf32>
    %835 = arith.mulf %834, %833 : vector<8x256xf32>
    %836 = arith.addf %829, %835 : vector<8x256xf32>
    %c0_186 = arith.constant 0 : index
    %c71 = arith.constant 71 : index
    %837 = vector.load %arg4[%c0_186, %c71] : memref<8x72xf32, #tpu.memory_space<vmem>>, vector<8x1xf32>
    %838 = vector.extract_strided_slice %788 {offsets = [7, 0], sizes = [1, 256], strides = [1, 1]} : vector<8x256xf32> to vector<1x256xf32>
    %839 = vector.shape_cast %838 : vector<1x256xf32> to vector<1x256xf32>
    %840 = vector.broadcast %839 : vector<1x256xf32> to vector<8x256xf32>
    %841 = vector.broadcast %837 : vector<8x1xf32> to vector<8x256xf32>
    %842 = arith.mulf %841, %840 : vector<8x256xf32>
    %843 = arith.addf %836, %842 : vector<8x256xf32>
    %cst_187 = arith.constant 0.000000e+00 : f32
    %844 = vector.broadcast %cst_187 : f32 to vector<8x256xf32>
    %845 = arith.select %30, %843, %844 : vector<8x256xi1>, vector<8x256xf32>
    %846 = arith.addf %787, %845 : vector<8x256xf32>
    %c0_188 = arith.constant 0 : index
    %c0_189 = arith.constant 0 : index
    %847 = vector.load %arg5[%c0_188, %c0_189] : memref<8x1xf32, #tpu.memory_space<vmem>>, vector<8x1xf32>
    %848 = vector.broadcast %847 : vector<8x1xf32> to vector<8x256xf32>
    %849 = arith.addf %846, %848 : vector<8x256xf32>
    %cst_190 = arith.constant 0.000000e+00 : f32
    %850 = vector.broadcast %cst_190 : f32 to vector<8x256xf32>
    %851 = arith.cmpf oge, %849, %850 : vector<8x256xf32>
    %cst_191 = arith.constant 0.00999999977 : f32
    %852 = vector.broadcast %cst_191 : f32 to vector<8x256xf32>
    %853 = arith.mulf %852, %849 : vector<8x256xf32>
    %854 = arith.select %851, %849, %853 : vector<8x256xi1>, vector<8x256xf32>
    %c0_192 = arith.constant 0 : index
    %c0_193 = arith.constant 0 : index
    %c0_194 = arith.constant 0 : index
    %855 = vector.load %arg6[%c0_192, %c0_193, %c0_194] : memref<1x8x256xf32, #tpu.memory_space<vmem>>, vector<1x8x256xf32>
    %856 = vector.shape_cast %855 : vector<1x8x256xf32> to vector<8x256xf32>
    %857 = vector.shape_cast %854 : vector<8x256xf32> to vector<1x8x256xf32>
    tpu.vector_store %arg6[%c0_192, %c0_193, %c0_194], %857 {strides = array<i32>} : memref<1x8x256xf32, #tpu.memory_space<vmem>>, vector<1x8x256xf32>,
    return
  }
  func.func @transform_0(%arg0: i32) -> (i32, i32, i32) {
    %c0_i32 = arith.constant 0 : i32
    %c0_i32_0 = arith.constant 0 : i32
    %c0_i32_1 = arith.constant 0 : i32
    return %arg0, %c0_i32, %c0_i32_0 : i32, i32, i32
  }
  func.func @transform_1(%arg0: i32) -> (i32, i32) {
    %c0_i32 = arith.constant 0 : i32
    %c0_i32_0 = arith.constant 0 : i32
    %c0_i32_1 = arith.constant 0 : i32
    return %c0_i32, %c0_i32_0 : i32, i32
  }
  func.func @transform_2(%arg0: i32) -> (i32, i32) {
    %c0_i32 = arith.constant 0 : i32
    %c0_i32_0 = arith.constant 0 : i32
    %c0_i32_1 = arith.constant 0 : i32
    return %c0_i32, %c0_i32_0 : i32, i32
  }
  func.func @transform_3(%arg0: i32) -> (i32, i32) {
    %c0_i32 = arith.constant 0 : i32
    %c0_i32_0 = arith.constant 0 : i32
    %c0_i32_1 = arith.constant 0 : i32
    return %c0_i32, %c0_i32_0 : i32, i32
  }
  func.func @transform_4(%arg0: i32) -> (i32, i32) {
    %c0_i32 = arith.constant 0 : i32
    %c0_i32_0 = arith.constant 0 : i32
    %c0_i32_1 = arith.constant 0 : i32
    return %c0_i32, %c0_i32_0 : i32, i32
  }
  func.func @transform_5(%arg0: i32) -> (i32, i32, i32) {
    %c0_i32 = arith.constant 0 : i32
    %c0_i32_0 = arith.constant 0 : i32
    %c0_i32_1 = arith.constant 0 : i32
    return %arg0, %c0_i32, %c0_i32_0 : i32, i32, i32
  }
}

</mosaic_0001>

<llo_original>
// kernel: tpu_custom_call.1
$region0: #{tpu_custom_call.1}
  #allocation0 [shape = 'u32[]', space=smem, size = 0x4, offset = 0x4, fixed_abs, tag = 'smem constant byte address 0x4 - core index']
  #allocation1 [shape = 'u32[144,128]{1,0:T(1,128)}', space=vmem, size = 0x12000, scoped, tag = 'internal scratch']
  %s0 = inlined_call_operand.vmem [shape: f32[2,4,256], index: 0, kind: input, shape index: {}]
  %s1 = inlined_call_operand.hbm [shape: f32[8,36], index: 1, kind: input, shape index: {}]
  %s2 = inlined_call_operand.vmem [shape: f32[8,1], index: 2, kind: input, shape index: {}]
  %s3 = inlined_call_operand.vmem [shape: f32[8,72], index: 3, kind: input, shape index: {}]
  %s4 = inlined_call_operand.vmem [shape: f32[8,1], index: 4, kind: input, shape index: {}]
  %s5 = inlined_call_operand.hbm [shape: f32[2,8,256], index: 5, kind: output, shape index: {}]
  %s6 = sld [smem:[#allocation0]]
  $region57: #{tpu_custom_call.1} parent=0
    _
  %s8 = ssub.s32 1, %s6
  %s9 = scalar_select 0, %s8, %s6
  $region1: #{tpu_custom_call.1} parent=0
    #allocation2 [shape = 'u8[4096]{0}', space=vmem, size = 0x1000, scoped, tag = 'input window, operand 1, single buffered']
    #allocation3 [shape = 's32[2]{0}', space=sflag, size = 0x8, scoped, tag = 'scoped memory for tpu_custom_call.1']
    #allocation4 [shape = 's32[2]{0}', space=sflag, size = 0x8, scoped, tag = 'scoped memory for tpu_custom_call.1']
    #allocation5 [shape = 'u8[16384]{0}', space=vmem, size = 0x4000, scoped, tag = 'output window, operand 0']
    %10 = vsyncpa [#allocation3], 0
    %11 = vsyncpa [#allocation4], 0
    %s12 = scalar_lea.sflag [#allocation4], 1
    %13 = vsyncpa %s12, 0
    loop: start=0, step=1, limit=4
    $region2: #{tpu_custom_call.1} parent=1 // loop_pre_header
      _
    $region3: #{tpu_custom_call.1} parent=1 // loop_header
      %s15 = sphi 0, %s19
      %p16 = scmp.ge.s32.totalorder %s15, 4
      %s25 = sphi 0, %s27
      %s28 = sphi 0, %s25
      %s29 = sphi 0, %s28
      %s45 = sphi 0, %s29
      %s49 = sphi 0, %s49
      %s51 = sphi 0, %s49
      %s52 = sphi 0, %s51
      %s66 = sphi 0, %s52
      %s70 = sphi 0, %s70
      %s72 = sphi 0, %s70
      %s73 = sphi 0, %s72
      %s87 = sphi 0, %s73
      %s91 = sphi 0, %s91
      %s93 = sphi 0, %s91
      %s94 = sphi 0, %s93
      %s108 = sphi 0, %s94
      %s112 = sphi 0, %s112
      %s114 = sphi 0, %s112
      %s115 = sphi 0, %s114
      %s129 = sphi 0, %s115
      %s135 = sphi 0, %s137
      %s138 = sphi 0, %s135
      %s139 = sphi 0, %s138
      %s155 = sphi 0, %s139
    $region4: #{tpu_custom_call.1} parent=1 // loop_header_branch
      %18 = sbr.rel (%p16) target = $region8
    $region5: #{tpu_custom_call.1} parent=1 // loop_body
      %s20 = ssub.s32 %s15, 1
      %s21 = ssub.s32 %s15, 2
      %s22 = sadd.s32 %s15, 1
      %s23 = ssub.s32 %s15, %s22
      %p24 = scmp.eq.s32.totalorder %s23, 0
      %s26 = sadd.s32 %s25, 1
      %s27 = scalar_select %p24, %s25, %s26
      %p30 = pneg %p24
      %p31 = scmp.eq.s32.totalorder %s15, 1
      %p32 = por %p30, %p31
      %p33 = scmp.ne.s32.totalorder %s25, %s28
      %p34 = scmp.eq.s32.totalorder %s15, 0
      %p35 = por %p33, %p34
      %p36 = scmp.ne.s32.totalorder %s25, %s28
      %p37 = scmp.eq.s32.totalorder %s20, 1
      %p38 = por %p36, %p37
      %p39 = scmp.ne.s32.totalorder %s28, %s29
      %p40 = scmp.eq.s32.totalorder %s20, 0
      %p41 = por %p39, %p40
      %p42 = scmp.ne.s32.totalorder %s28, %s29
      %p43 = scmp.eq.s32.totalorder %s21, 1
      %p44 = por %p42, %p43
      %p46 = scmp.ne.s32.totalorder %s29, %s45
      %p47 = scmp.eq.s32.totalorder %s21, 0
      %p48 = por %p46, %p47
      %s50 = sadd.s32 %s49, 1
      %p53 = scmp.eq.s32.totalorder %s15, 1
      %p54 = scmp.ne.s32.totalorder %s49, %s51
      %p55 = scmp.eq.s32.totalorder %s15, 0
      %p56 = por %p54, %p55
      %p57 = scmp.ne.s32.totalorder %s49, %s51
      %p58 = scmp.eq.s32.totalorder %s20, 1
      %p59 = por %p57, %p58
      %p60 = scmp.ne.s32.totalorder %s51, %s52
      %p61 = scmp.eq.s32.totalorder %s20, 0
      %p62 = por %p60, %p61
      %p63 = scmp.ne.s32.totalorder %s51, %s52
      %p64 = scmp.eq.s32.totalorder %s21, 1
      %p65 = por %p63, %p64
      %p67 = scmp.ne.s32.totalorder %s52, %s66
      %p68 = scmp.eq.s32.totalorder %s21, 0
      %p69 = por %p67, %p68
      %s71 = sadd.s32 %s70, 1
      %p74 = scmp.eq.s32.totalorder %s15, 1
      %p75 = scmp.ne.s32.totalorder %s70, %s72
      %p76 = scmp.eq.s32.totalorder %s15, 0
      %p77 = por %p75, %p76
      %p78 = scmp.ne.s32.totalorder %s70, %s72
      %p79 = scmp.eq.s32.totalorder %s20, 1
      %p80 = por %p78, %p79
      %p81 = scmp.ne.s32.totalorder %s72, %s73
      %p82 = scmp.eq.s32.totalorder %s20, 0
      %p83 = por %p81, %p82
      %p84 = scmp.ne.s32.totalorder %s72, %s73
      %p85 = scmp.eq.s32.totalorder %s21, 1
      %p86 = por %p84, %p85
      %p88 = scmp.ne.s32.totalorder %s73, %s87
      %p89 = scmp.eq.s32.totalorder %s21, 0
      %p90 = por %p88, %p89
      %s92 = sadd.s32 %s91, 1
      %p95 = scmp.eq.s32.totalorder %s15, 1
      %p96 = scmp.ne.s32.totalorder %s91, %s93
      %p97 = scmp.eq.s32.totalorder %s15, 0
      %p98 = por %p96, %p97
      %p99 = scmp.ne.s32.totalorder %s91, %s93
      %p100 = scmp.eq.s32.totalorder %s20, 1
      %p101 = por %p99, %p100
      %p102 = scmp.ne.s32.totalorder %s93, %s94
      %p103 = scmp.eq.s32.totalorder %s20, 0
      %p104 = por %p102, %p103
      %p105 = scmp.ne.s32.totalorder %s93, %s94
      %p106 = scmp.eq.s32.totalorder %s21, 1
      %p107 = por %p105, %p106
      %p109 = scmp.ne.s32.totalorder %s94, %s108
      %p110 = scmp.eq.s32.totalorder %s21, 0
      %p111 = por %p109, %p110
      %s113 = sadd.s32 %s112, 1
      %p116 = scmp.eq.s32.totalorder %s15, 1
      %p117 = scmp.ne.s32.totalorder %s112, %s114
      %p118 = scmp.eq.s32.totalorder %s15, 0
      %p119 = por %p117, %p118
      %p120 = scmp.ne.s32.totalorder %s112, %s114
      %p121 = scmp.eq.s32.totalorder %s20, 1
      %p122 = por %p120, %p121
      %p123 = scmp.ne.s32.totalorder %s114, %s115
      %p124 = scmp.eq.s32.totalorder %s20, 0
      %p125 = por %p123, %p124
      %p126 = scmp.ne.s32.totalorder %s114, %s115
      %p127 = scmp.eq.s32.totalorder %s21, 1
      %p128 = por %p126, %p127
      %p130 = scmp.ne.s32.totalorder %s115, %s129
      %p131 = scmp.eq.s32.totalorder %s21, 0
      %p132 = por %p130, %p131
      %s133 = ssub.s32 %s15, %s22
      %p134 = scmp.eq.s32.totalorder %s133, 0
      %s136 = sadd.s32 %s135, 1
      %s137 = scalar_select %p134, %s135, %s136
      %p140 = pneg %p134
      %p141 = scmp.eq.s32.totalorder %s15, 1
      %p142 = por %p140, %p141
      %p143 = scmp.ne.s32.totalorder %s135, %s138
      %p144 = scmp.eq.s32.totalorder %s15, 0
      %p145 = por %p143, %p144
      %p146 = scmp.ne.s32.totalorder %s135, %s138
      %p147 = scmp.eq.s32.totalorder %s20, 1
      %p148 = por %p146, %p147
      %p149 = scmp.ne.s32.totalorder %s138, %s139
      %p150 = scmp.eq.s32.totalorder %s20, 0
      %p151 = por %p149, %p150
      %p152 = scmp.ne.s32.totalorder %s138, %s139
      %p153 = scmp.eq.s32.totalorder %s21, 1
      %p154 = por %p152, %p153
      %p156 = scmp.ne.s32.totalorder %s139, %s155
      %p157 = scmp.eq.s32.totalorder %s21, 0
      %p158 = por %p156, %p157
      %p159 = scmp.le.s32.totalorder 1, %s15
      %p160 = scmp.lt.s32.totalorder %s15, 3
      %p161 = pnand %p159, %p160
      %p162 = pneg %p161
      // Predicated region
      $region9: #{tpu_custom_call.1} parent=5 // pred_check
        _
      $region10: #{tpu_custom_call.1} parent=5 // pred_check_branch
        %164 = sbr.rel (%p161) target = $region12
      $region11: #{tpu_custom_call.1} parent=5 // pred_region
        %s165 = ssub.s32 %s15, 1
        // Predicated region
        $region13: #{tpu_custom_call.1} parent=11 // pred_check
          %p166 = pneg %p62
        $region14: #{tpu_custom_call.1} parent=11 // pred_check_branch
          %168 = sbr.rel (%p166) target = $region16
        $region15: #{tpu_custom_call.1} parent=11 // pred_region
          %s170 = ssub.s32 128, 128
          %171 = vsyncadd [#allocation3], %s170
          %s173 = sshll.u32 [#allocation2], 4
          %s174 = int_to_ptr.vmem [resolvable:$true] %s173
          %176 = dma.hbm_to_vmem [thread:$0]  %s1, 128, %s174, [#allocation3]
        $region16: #{tpu_custom_call.1} parent=11 // pred_fallthru
          _
        // Predicated region
        $region17: #{tpu_custom_call.1} parent=11 // pred_check
          %p177 = pneg %p83
        $region18: #{tpu_custom_call.1} parent=11 // pred_check_branch
          %179 = sbr.rel (%p177) target = $region20
        $region19: #{tpu_custom_call.1} parent=11 // pred_region
          _
        $region20: #{tpu_custom_call.1} parent=11 // pred_fallthru
          _
        // Predicated region
        $region21: #{tpu_custom_call.1} parent=11 // pred_check
          %p180 = pneg %p104
        $region22: #{tpu_custom_call.1} parent=11 // pred_check_branch
          %182 = sbr.rel (%p180) target = $region24
        $region23: #{tpu_custom_call.1} parent=11 // pred_region
          _
        $region24: #{tpu_custom_call.1} parent=11 // pred_fallthru
          _
        // Predicated region
        $region25: #{tpu_custom_call.1} parent=11 // pred_check
          %p183 = pneg %p125
        $region26: #{tpu_custom_call.1} parent=11 // pred_check_branch
          %185 = sbr.rel (%p183) target = $region28
        $region27: #{tpu_custom_call.1} parent=11 // pred_region
          _
        $region28: #{tpu_custom_call.1} parent=11 // pred_fallthru
          _
      $region12: #{tpu_custom_call.1} parent=5 // pred_fallthru
        _
      %p186 = scmp.lt.s32.totalorder %s15, 2
      // Predicated region
      $region29: #{tpu_custom_call.1} parent=5 // pred_check
        %p187 = pneg %p186
      $region30: #{tpu_custom_call.1} parent=5 // pred_check_branch
        %189 = sbr.rel (%p187) target = $region32
      $region31: #{tpu_custom_call.1} parent=5 // pred_region
        // Predicated region
        $region33: #{tpu_custom_call.1} parent=31 // pred_check
          %p190 = pneg %p35
        $region34: #{tpu_custom_call.1} parent=31 // pred_check_branch
          %192 = sbr.rel (%p190) target = $region36
        $region35: #{tpu_custom_call.1} parent=31 // pred_region
          %p193 = scmp.lt.s32.totalorder %s15, 1
          %s194 = scalar_select %p193, %s15, 1
          %s195 = smul.addr %s194, 2
          %s196 = smul.addr %s195, 4
          %s197 = scalar_lea.vmem %s0, %s196
        $region36: #{tpu_custom_call.1} parent=31 // pred_fallthru
          _
      $region32: #{tpu_custom_call.1} parent=5 // pred_fallthru
        _
      %p198 = scmp.le.s32.totalorder 1, %s15
      %p199 = scmp.lt.s32.totalorder %s15, 3
      %p200 = pnand %p198, %p199
      %p201 = pneg %p200
      // Predicated region
      $region37: #{tpu_custom_call.1} parent=5 // pred_check
        _
      $region38: #{tpu_custom_call.1} parent=5 // pred_check_branch
        %203 = sbr.rel (%p200) target = $region40
      $region39: #{tpu_custom_call.1} parent=5 // pred_region
        %s204 = ssub.s32 %s15, 1
        // Predicated region
        $region41: #{tpu_custom_call.1} parent=39 // pred_check
          %p205 = pneg %p62
        $region42: #{tpu_custom_call.1} parent=39 // pred_check_branch
          %207 = sbr.rel (%p205) target = $region44
        $region43: #{tpu_custom_call.1} parent=39 // pred_region
          %208 = dma.done [#allocation3], 128
        $region44: #{tpu_custom_call.1} parent=39 // pred_fallthru
          _
        %p209 = scmp.lt.s32.totalorder %s20, 1
        %s210 = scalar_select %p209, %s20, 1
        %s211 = smul.addr %s210, 2
        %s212 = smul.addr %s211, 4
        %s213 = scalar_lea.vmem %s0, %s212
        %p214 = pneg %p41
        %p215 = pneg %p38
        %p216 = pneg %p62
        %p217 = pneg %p59
        %p218 = pneg %p83
        %p219 = pneg %p80
        %p220 = pneg %p104
        %p221 = pneg %p101
        %p222 = pneg %p125
        %p223 = pneg %p122
        %p224 = pneg %p151
        %p225 = pneg %p148
        %s226 = sand.u32 %s138, 1
        %s227 = scalar_lea.sflag [#allocation4], %s226
        %s228 = sand.u32 %s138, 1
        %s229 = smul.addr %s228, 16
        %s230 = scalar_lea.vmem [#allocation5], %s229
        %p231 = scmp.lt.s32.totalorder %s20, 1
        %s232 = scalar_select %p231, %s20, 1
        %s233 = smul.addr %s232, 2
        %s234 = smul.addr %s233, 4
        %s235 = scalar_lea.vmem %s0, %s234
        %v236 = vlaneseq
        %v237 = vand.u32 %v236, 127
        %v238 = vadd.s32 %v237, 128
        %v239 = vand.u32 %v237, 15
        %v240 = vand.u32 %v238, 15
        %vm241 = vcmp.ge.s32.totalorder %v237, 16
        %vm242 = vcmp.ge.s32.totalorder %v238, 16
        %vm243 = vcmp.ge.s32.totalorder %v239, 1
        %vm244 = vcmp.ge.s32.totalorder %v240, 1
        %vm245 = vmand %vm241, %vm243
        %vm246 = vmand %vm242, %vm244
        %vm247 = vcmp.le.s32.totalorder %v239, 14
        %vm248 = vcmp.le.s32.totalorder %v240, 14
        %vm249 = vmand %vm241, %vm247
        %vm250 = vmand %vm242, %vm248
        %vm251 = vcmp.lt.s32.totalorder %v237, 240
        %vm252 = vcmp.lt.s32.totalorder %v238, 240
        %vm253 = vmand %vm251, %vm243
        %vm254 = vmand %vm252, %vm244
        %vm255 = vmand %vm251, %vm247
        %vm256 = vmand %vm252, %vm248
        %v257 = vld [vmem:[%s235] sm:$0xff]
        %v259 = vcombine.high %v257, %v257
        %261 = vrot.lane.b32.xlu0 %v257, 17
        %v262 = vpop.permute.xlu0 %261
        %263 = vrot.lane.b32.xlu0 %v259, 17
        %v264 = vpop.permute.xlu0 %263
        %vm265 = vcmp.lt.s32.totalorder %v237, 17
        %v266 = vsel %vm265, %v262, %v264
        %v267 = vsel %vm265, %v264, %v262
        %v268 = vld [vmem:[#allocation2] sm:$0xff]
        %v269 = vlaneseq
        %v270 = vshrl.u32 %v269, 7
        %v271 = vsub.s32 0, %v270
        %v272 = vrot.slane %v267, %v271
        %v273 = vlaneseq
        %v274 = vshrl.u32 %v273, 7
        %v275 = vsub.s32 0, %v274
        %v276 = vrot.slane %v266, %v275
        %278 = vset.pattern.permute.xlu0 0
        %279 = vperm.xlu0 %278, %v268
        %v280 = vpop.permute.xlu0 %279
        %v282 = vmul.f32 %v280, %v272
        %v283 = vmul.f32 %v280, %v276
        %v284 = vlaneseq
        %v285 = vshrl.u32 %v284, 7
        %v286 = vsub.s32 1, %v285
        %v287 = vrot.slane %v267, %v286
        %v288 = vlaneseq
        %v289 = vshrl.u32 %v288, 7
        %v290 = vsub.s32 1, %v289
        %v291 = vrot.slane %v266, %v290
        %292 = vset.pattern.permute.xlu0 9
        %293 = vperm.xlu0 %292, %v268
        %v294 = vpop.permute.xlu0 %293
        %v296 = vmul.f32 %v294, %v287
        %v297 = vmul.f32 %v294, %v291
        %v298 = vadd.f32 %v282, %v296
        %v299 = vadd.f32 %v283, %v297
        %v300 = vlaneseq
        %v301 = vshrl.u32 %v300, 7
        %v302 = vsub.s32 2, %v301
        %v303 = vrot.slane %v267, %v302
        %v304 = vlaneseq
        %v305 = vshrl.u32 %v304, 7
        %v306 = vsub.s32 2, %v305
        %v307 = vrot.slane %v266, %v306
        %308 = vset.pattern.permute.xlu0 18
        %309 = vperm.xlu0 %308, %v268
        %v310 = vpop.permute.xlu0 %309
        %v312 = vmul.f32 %v310, %v303
        %v313 = vmul.f32 %v310, %v307
        %v314 = vadd.f32 %v298, %v312
        %v315 = vadd.f32 %v299, %v313
        %v316 = vlaneseq
        %v317 = vshrl.u32 %v316, 7
        %v318 = vsub.s32 3, %v317
        %v319 = vrot.slane %v267, %v318
        %v320 = vlaneseq
        %v321 = vshrl.u32 %v320, 7
        %v322 = vsub.s32 3, %v321
        %v323 = vrot.slane %v266, %v322
        %324 = vset.pattern.permute.xlu0 27
        %325 = vperm.xlu0 %324, %v268
        %v326 = vpop.permute.xlu0 %325
        %v328 = vmul.f32 %v326, %v319
        %v329 = vmul.f32 %v326, %v323
        %v330 = vadd.f32 %v314, %v328
        %v331 = vadd.f32 %v315, %v329
        %v332 = vsel %vm245, %v330, 0.0
        %v333 = vsel %vm246, %v331, 0.0
        %v334 = vadd.f32 %v332, 0.0
        %v335 = vadd.f32 %v333, 0.0
        %336 = vrot.lane.b32.xlu0 %v257, 16
        %v337 = vpop.permute.xlu0 %336
        %338 = vrot.lane.b32.xlu0 %v259, 16
        %v339 = vpop.permute.xlu0 %338
        %vm340 = vcmp.lt.s32.totalorder %v237, 16
        %v341 = vsel %vm340, %v337, %v339
        %v342 = vsel %vm340, %v339, %v337
        %v343 = vld [vmem:[#allocation2] sm:$0xff]
        %v344 = vlaneseq
        %v345 = vshrl.u32 %v344, 7
        %v346 = vsub.s32 0, %v345
        %v347 = vrot.slane %v342, %v346
        %v348 = vlaneseq
        %v349 = vshrl.u32 %v348, 7
        %v350 = vsub.s32 0, %v349
        %v351 = vrot.slane %v341, %v350
        %353 = vset.pattern.permute.xlu0 1
        %354 = vperm.xlu0 %353, %v343
        %v355 = vpop.permute.xlu0 %354
        %v357 = vmul.f32 %v355, %v347
        %v358 = vmul.f32 %v355, %v351
        %v359 = vlaneseq
        %v360 = vshrl.u32 %v359, 7
        %v361 = vsub.s32 1, %v360
        %v362 = vrot.slane %v342, %v361
        %v363 = vlaneseq
        %v364 = vshrl.u32 %v363, 7
        %v365 = vsub.s32 1, %v364
        %v366 = vrot.slane %v341, %v365
        %367 = vset.pattern.permute.xlu0 10
        %368 = vperm.xlu0 %367, %v343
        %v369 = vpop.permute.xlu0 %368
        %v371 = vmul.f32 %v369, %v362
        %v372 = vmul.f32 %v369, %v366
        %v373 = vadd.f32 %v357, %v371
        %v374 = vadd.f32 %v358, %v372
        %v375 = vlaneseq
        %v376 = vshrl.u32 %v375, 7
        %v377 = vsub.s32 2, %v376
        %v378 = vrot.slane %v342, %v377
        %v379 = vlaneseq
        %v380 = vshrl.u32 %v379, 7
        %v381 = vsub.s32 2, %v380
        %v382 = vrot.slane %v341, %v381
        %383 = vset.pattern.permute.xlu0 19
        %384 = vperm.xlu0 %383, %v343
        %v385 = vpop.permute.xlu0 %384
        %v387 = vmul.f32 %v385, %v378
        %v388 = vmul.f32 %v385, %v382
        %v389 = vadd.f32 %v373, %v387
        %v390 = vadd.f32 %v374, %v388
        %v391 = vlaneseq
        %v392 = vshrl.u32 %v391, 7
        %v393 = vsub.s32 3, %v392
        %v394 = vrot.slane %v342, %v393
        %v395 = vlaneseq
        %v396 = vshrl.u32 %v395, 7
        %v397 = vsub.s32 3, %v396
        %v398 = vrot.slane %v341, %v397
        %399 = vset.pattern.permute.xlu0 28
        %400 = vperm.xlu0 %399, %v343
        %v401 = vpop.permute.xlu0 %400
        %v403 = vmul.f32 %v401, %v394
        %v404 = vmul.f32 %v401, %v398
        %v405 = vadd.f32 %v389, %v403
        %v406 = vadd.f32 %v390, %v404
        %v407 = vsel %vm241, %v405, 0.0
        %v408 = vsel %vm242, %v406, 0.0
        %v409 = vadd.f32 %v334, %v407
        %v410 = vadd.f32 %v335, %v408
        %411 = vrot.lane.b32.xlu0 %v257, 15
        %v412 = vpop.permute.xlu0 %411
        %413 = vrot.lane.b32.xlu0 %v259, 15
        %v414 = vpop.permute.xlu0 %413
        %vm415 = vcmp.lt.s32.totalorder %v237, 15
        %v416 = vsel %vm415, %v412, %v414
        %v417 = vsel %vm415, %v414, %v412
        %v418 = vld [vmem:[#allocation2] sm:$0xff]
        %v419 = vlaneseq
        %v420 = vshrl.u32 %v419, 7
        %v421 = vsub.s32 0, %v420
        %v422 = vrot.slane %v417, %v421
        %v423 = vlaneseq
        %v424 = vshrl.u32 %v423, 7
        %v425 = vsub.s32 0, %v424
        %v426 = vrot.slane %v416, %v425
        %428 = vset.pattern.permute.xlu0 2
        %429 = vperm.xlu0 %428, %v418
        %v430 = vpop.permute.xlu0 %429
        %v432 = vmul.f32 %v430, %v422
        %v433 = vmul.f32 %v430, %v426
        %v434 = vlaneseq
        %v435 = vshrl.u32 %v434, 7
        %v436 = vsub.s32 1, %v435
        %v437 = vrot.slane %v417, %v436
        %v438 = vlaneseq
        %v439 = vshrl.u32 %v438, 7
        %v440 = vsub.s32 1, %v439
        %v441 = vrot.slane %v416, %v440
        %442 = vset.pattern.permute.xlu0 11
        %443 = vperm.xlu0 %442, %v418
        %v444 = vpop.permute.xlu0 %443
        %v446 = vmul.f32 %v444, %v437
        %v447 = vmul.f32 %v444, %v441
        %v448 = vadd.f32 %v432, %v446
        %v449 = vadd.f32 %v433, %v447
        %v450 = vlaneseq
        %v451 = vshrl.u32 %v450, 7
        %v452 = vsub.s32 2, %v451
        %v453 = vrot.slane %v417, %v452
        %v454 = vlaneseq
        %v455 = vshrl.u32 %v454, 7
        %v456 = vsub.s32 2, %v455
        %v457 = vrot.slane %v416, %v456
        %458 = vset.pattern.permute.xlu0 20
        %459 = vperm.xlu0 %458, %v418
        %v460 = vpop.permute.xlu0 %459
        %v462 = vmul.f32 %v460, %v453
        %v463 = vmul.f32 %v460, %v457
        %v464 = vadd.f32 %v448, %v462
        %v465 = vadd.f32 %v449, %v463
        %v466 = vlaneseq
        %v467 = vshrl.u32 %v466, 7
        %v468 = vsub.s32 3, %v467
        %v469 = vrot.slane %v417, %v468
        %v470 = vlaneseq
        %v471 = vshrl.u32 %v470, 7
        %v472 = vsub.s32 3, %v471
        %v473 = vrot.slane %v416, %v472
        %474 = vset.pattern.permute.xlu0 29
        %475 = vperm.xlu0 %474, %v418
        %v476 = vpop.permute.xlu0 %475
        %v478 = vmul.f32 %v476, %v469
        %v479 = vmul.f32 %v476, %v473
        %v480 = vadd.f32 %v464, %v478
        %v481 = vadd.f32 %v465, %v479
        %v482 = vsel %vm249, %v480, 0.0
        %v483 = vsel %vm250, %v481, 0.0
        %v484 = vadd.f32 %v409, %v482
        %v485 = vadd.f32 %v410, %v483
        %486 = vrot.lane.b32.xlu0 %v257, 1
        %v487 = vpop.permute.xlu0 %486
        %488 = vrot.lane.b32.xlu0 %v259, 1
        %v489 = vpop.permute.xlu0 %488
        %vm490 = vcmp.lt.s32.totalorder %v237, 1
        %v491 = vsel %vm490, %v487, %v489
        %v492 = vsel %vm490, %v489, %v487
        %v493 = vld [vmem:[#allocation2] sm:$0xff]
        %v494 = vlaneseq
        %v495 = vshrl.u32 %v494, 7
        %v496 = vsub.s32 0, %v495
        %v497 = vrot.slane %v492, %v496
        %v498 = vlaneseq
        %v499 = vshrl.u32 %v498, 7
        %v500 = vsub.s32 0, %v499
        %v501 = vrot.slane %v491, %v500
        %503 = vset.pattern.permute.xlu0 3
        %504 = vperm.xlu0 %503, %v493
        %v505 = vpop.permute.xlu0 %504
        %v507 = vmul.f32 %v505, %v497
        %v508 = vmul.f32 %v505, %v501
        %v509 = vlaneseq
        %v510 = vshrl.u32 %v509, 7
        %v511 = vsub.s32 1, %v510
        %v512 = vrot.slane %v492, %v511
        %v513 = vlaneseq
        %v514 = vshrl.u32 %v513, 7
        %v515 = vsub.s32 1, %v514
        %v516 = vrot.slane %v491, %v515
        %517 = vset.pattern.permute.xlu0 12
        %518 = vperm.xlu0 %517, %v493
        %v519 = vpop.permute.xlu0 %518
        %v521 = vmul.f32 %v519, %v512
        %v522 = vmul.f32 %v519, %v516
        %v523 = vadd.f32 %v507, %v521
        %v524 = vadd.f32 %v508, %v522
        %v525 = vlaneseq
        %v526 = vshrl.u32 %v525, 7
        %v527 = vsub.s32 2, %v526
        %v528 = vrot.slane %v492, %v527
        %v529 = vlaneseq
        %v530 = vshrl.u32 %v529, 7
        %v531 = vsub.s32 2, %v530
        %v532 = vrot.slane %v491, %v531
        %533 = vset.pattern.permute.xlu0 21
        %534 = vperm.xlu0 %533, %v493
        %v535 = vpop.permute.xlu0 %534
        %v537 = vmul.f32 %v535, %v528
        %v538 = vmul.f32 %v535, %v532
        %v539 = vadd.f32 %v523, %v537
        %v540 = vadd.f32 %v524, %v538
        %v541 = vlaneseq
        %v542 = vshrl.u32 %v541, 7
        %v543 = vsub.s32 3, %v542
        %v544 = vrot.slane %v492, %v543
        %v545 = vlaneseq
        %v546 = vshrl.u32 %v545, 7
        %v547 = vsub.s32 3, %v546
        %v548 = vrot.slane %v491, %v547
        %549 = vset.pattern.permute.xlu0 30
        %550 = vperm.xlu0 %549, %v493
        %v551 = vpop.permute.xlu0 %550
        %v553 = vmul.f32 %v551, %v544
        %v554 = vmul.f32 %v551, %v548
        %v555 = vadd.f32 %v539, %v553
        %v556 = vadd.f32 %v540, %v554
        %v557 = vsel %vm243, %v555, 0.0
        %v558 = vsel %vm244, %v556, 0.0
        %v559 = vadd.f32 %v484, %v557
        %v560 = vadd.f32 %v485, %v558
        %v561 = vlaneseq
        %v562 = vshrl.u32 %v561, 7
        %v563 = vsub.s32 0, %v562
        %v564 = vrot.slane %v257, %v563
        %v565 = vlaneseq
        %v566 = vshrl.u32 %v565, 7
        %v567 = vsub.s32 4, %v566
        %v568 = vrot.slane %v257, %v567
        %v571 = vlaneseq
        %v572 = vshrl.u32 %v571, 7
        %v573 = vsub.s32 0, %v572
        %v574 = vrot.slane %v564, %v573
        %v575 = vlaneseq
        %v576 = vshrl.u32 %v575, 7
        %v577 = vsub.s32 0, %v576
        %v578 = vrot.slane %v568, %v577
        %579 = vset.pattern.permute.xlu0 4
        %580 = vperm.xlu0 %579, %v493
        %v581 = vpop.permute.xlu0 %580
        %v583 = vmul.f32 %v581, %v574
        %v584 = vmul.f32 %v581, %v578
        %v585 = vlaneseq
        %v586 = vshrl.u32 %v585, 7
        %v587 = vsub.s32 1, %v586
        %v588 = vrot.slane %v257, %v587
        %v589 = vlaneseq
        %v590 = vshrl.u32 %v589, 7
        %v591 = vsub.s32 5, %v590
        %v592 = vrot.slane %v257, %v591
        %v595 = vlaneseq
        %v596 = vshrl.u32 %v595, 7
        %v597 = vsub.s32 1, %v596
        %v598 = vrot.slane %v588, %v597
        %v599 = vlaneseq
        %v600 = vshrl.u32 %v599, 7
        %v601 = vsub.s32 1, %v600
        %v602 = vrot.slane %v592, %v601
        %603 = vset.pattern.permute.xlu0 13
        %604 = vperm.xlu0 %603, %v493
        %v605 = vpop.permute.xlu0 %604
        %v607 = vmul.f32 %v605, %v598
        %v608 = vmul.f32 %v605, %v602
        %v609 = vadd.f32 %v583, %v607
        %v610 = vadd.f32 %v584, %v608
        %v611 = vlaneseq
        %v612 = vshrl.u32 %v611, 7
        %v613 = vsub.s32 2, %v612
        %v614 = vrot.slane %v257, %v613
        %v615 = vlaneseq
        %v616 = vshrl.u32 %v615, 7
        %v617 = vsub.s32 6, %v616
        %v618 = vrot.slane %v257, %v617
        %v621 = vlaneseq
        %v622 = vshrl.u32 %v621, 7
        %v623 = vsub.s32 2, %v622
        %v624 = vrot.slane %v614, %v623
        %v625 = vlaneseq
        %v626 = vshrl.u32 %v625, 7
        %v627 = vsub.s32 2, %v626
        %v628 = vrot.slane %v618, %v627
        %629 = vset.pattern.permute.xlu0 22
        %630 = vperm.xlu0 %629, %v493
        %v631 = vpop.permute.xlu0 %630
        %v633 = vmul.f32 %v631, %v624
        %v634 = vmul.f32 %v631, %v628
        %v635 = vadd.f32 %v609, %v633
        %v636 = vadd.f32 %v610, %v634
        %v637 = vlaneseq
        %v638 = vshrl.u32 %v637, 7
        %v639 = vsub.s32 3, %v638
        %v640 = vrot.slane %v257, %v639
        %v641 = vlaneseq
        %v642 = vshrl.u32 %v641, 7
        %v643 = vsub.s32 7, %v642
        %v644 = vrot.slane %v257, %v643
        %v647 = vlaneseq
        %v648 = vshrl.u32 %v647, 7
        %v649 = vsub.s32 3, %v648
        %v650 = vrot.slane %v640, %v649
        %v651 = vlaneseq
        %v652 = vshrl.u32 %v651, 7
        %v653 = vsub.s32 3, %v652
        %v654 = vrot.slane %v644, %v653
        %655 = vset.pattern.permute.xlu0 31
        %656 = vperm.xlu0 %655, %v493
        %v657 = vpop.permute.xlu0 %656
        %v659 = vmul.f32 %v657, %v650
        %v660 = vmul.f32 %v657, %v654
        %v661 = vadd.f32 %v635, %v659
        %v662 = vadd.f32 %v636, %v660
        %v663 = vadd.f32 %v559, %v661
        %v664 = vadd.f32 %v560, %v662
        %665 = vrot.lane.b32.xlu0 %v257, 127
        %v666 = vpop.permute.xlu0 %665
        %667 = vrot.lane.b32.xlu0 %v259, 127
        %v668 = vpop.permute.xlu0 %667
        %vm669 = vcmp.lt.s32.totalorder %v237, 127
        %v670 = vsel %vm669, %v666, %v668
        %v671 = vsel %vm669, %v668, %v666
        %v672 = vld [vmem:[#allocation2] sm:$0xff]
        %v673 = vlaneseq
        %v674 = vshrl.u32 %v673, 7
        %v675 = vsub.s32 0, %v674
        %v676 = vrot.slane %v670, %v675
        %v677 = vlaneseq
        %v678 = vshrl.u32 %v677, 7
        %v679 = vsub.s32 0, %v678
        %v680 = vrot.slane %v671, %v679
        %682 = vset.pattern.permute.xlu0 5
        %683 = vperm.xlu0 %682, %v672
        %v684 = vpop.permute.xlu0 %683
        %v686 = vmul.f32 %v684, %v676
        %v687 = vmul.f32 %v684, %v680
        %v688 = vlaneseq
        %v689 = vshrl.u32 %v688, 7
        %v690 = vsub.s32 1, %v689
        %v691 = vrot.slane %v670, %v690
        %v692 = vlaneseq
        %v693 = vshrl.u32 %v692, 7
        %v694 = vsub.s32 1, %v693
        %v695 = vrot.slane %v671, %v694
        %696 = vset.pattern.permute.xlu0 14
        %697 = vperm.xlu0 %696, %v672
        %v698 = vpop.permute.xlu0 %697
        %v700 = vmul.f32 %v698, %v691
        %v701 = vmul.f32 %v698, %v695
        %v702 = vadd.f32 %v686, %v700
        %v703 = vadd.f32 %v687, %v701
        %v704 = vlaneseq
        %v705 = vshrl.u32 %v704, 7
        %v706 = vsub.s32 2, %v705
        %v707 = vrot.slane %v670, %v706
        %v708 = vlaneseq
        %v709 = vshrl.u32 %v708, 7
        %v710 = vsub.s32 2, %v709
        %v711 = vrot.slane %v671, %v710
        %712 = vset.pattern.permute.xlu0 23
        %713 = vperm.xlu0 %712, %v672
        %v714 = vpop.permute.xlu0 %713
        %v716 = vmul.f32 %v714, %v707
        %v717 = vmul.f32 %v714, %v711
        %v718 = vadd.f32 %v702, %v716
        %v719 = vadd.f32 %v703, %v717
        %v720 = vlaneseq
        %v721 = vshrl.u32 %v720, 7
        %v722 = vsub.s32 3, %v721
        %v723 = vrot.slane %v670, %v722
        %v724 = vlaneseq
        %v725 = vshrl.u32 %v724, 7
        %v726 = vsub.s32 3, %v725
        %v727 = vrot.slane %v671, %v726
        %728 = vset.pattern.permute.xlu0 32
        %729 = vperm.xlu0 %728, %v672
        %v730 = vpop.permute.xlu0 %729
        %v732 = vmul.f32 %v730, %v723
        %v733 = vmul.f32 %v730, %v727
        %v734 = vadd.f32 %v718, %v732
        %v735 = vadd.f32 %v719, %v733
        %v736 = vsel %vm247, %v734, 0.0
        %v737 = vsel %vm248, %v735, 0.0
        %v738 = vadd.f32 %v663, %v736
        %v739 = vadd.f32 %v664, %v737
        %740 = vrot.lane.b32.xlu0 %v257, 113
        %v741 = vpop.permute.xlu0 %740
        %742 = vrot.lane.b32.xlu0 %v259, 113
        %v743 = vpop.permute.xlu0 %742
        %vm744 = vcmp.lt.s32.totalorder %v237, 113
        %v745 = vsel %vm744, %v741, %v743
        %v746 = vsel %vm744, %v743, %v741
        %v747 = vld [vmem:[#allocation2] sm:$0xff]
        %v748 = vlaneseq
        %v749 = vshrl.u32 %v748, 7
        %v750 = vsub.s32 0, %v749
        %v751 = vrot.slane %v745, %v750
        %v752 = vlaneseq
        %v753 = vshrl.u32 %v752, 7
        %v754 = vsub.s32 0, %v753
        %v755 = vrot.slane %v746, %v754
        %757 = vset.pattern.permute.xlu0 6
        %758 = vperm.xlu0 %757, %v747
        %v759 = vpop.permute.xlu0 %758
        %v761 = vmul.f32 %v759, %v751
        %v762 = vmul.f32 %v759, %v755
        %v763 = vlaneseq
        %v764 = vshrl.u32 %v763, 7
        %v765 = vsub.s32 1, %v764
        %v766 = vrot.slane %v745, %v765
        %v767 = vlaneseq
        %v768 = vshrl.u32 %v767, 7
        %v769 = vsub.s32 1, %v768
        %v770 = vrot.slane %v746, %v769
        %771 = vset.pattern.permute.xlu0 15
        %772 = vperm.xlu0 %771, %v747
        %v773 = vpop.permute.xlu0 %772
        %v775 = vmul.f32 %v773, %v766
        %v776 = vmul.f32 %v773, %v770
        %v777 = vadd.f32 %v761, %v775
        %v778 = vadd.f32 %v762, %v776
        %v779 = vlaneseq
        %v780 = vshrl.u32 %v779, 7
        %v781 = vsub.s32 2, %v780
        %v782 = vrot.slane %v745, %v781
        %v783 = vlaneseq
        %v784 = vshrl.u32 %v783, 7
        %v785 = vsub.s32 2, %v784
        %v786 = vrot.slane %v746, %v785
        %787 = vset.pattern.permute.xlu0 24
        %788 = vperm.xlu0 %787, %v747
        %v789 = vpop.permute.xlu0 %788
        %v791 = vmul.f32 %v789, %v782
        %v792 = vmul.f32 %v789, %v786
        %v793 = vadd.f32 %v777, %v791
        %v794 = vadd.f32 %v778, %v792
        %v795 = vlaneseq
        %v796 = vshrl.u32 %v795, 7
        %v797 = vsub.s32 3, %v796
        %v798 = vrot.slane %v745, %v797
        %v799 = vlaneseq
        %v800 = vshrl.u32 %v799, 7
        %v801 = vsub.s32 3, %v800
        %v802 = vrot.slane %v746, %v801
        %803 = vset.pattern.permute.xlu0 33
        %804 = vperm.xlu0 %803, %v747
        %v805 = vpop.permute.xlu0 %804
        %v807 = vmul.f32 %v805, %v798
        %v808 = vmul.f32 %v805, %v802
        %v809 = vadd.f32 %v793, %v807
        %v810 = vadd.f32 %v794, %v808
        %v811 = vsel %vm253, %v809, 0.0
        %v812 = vsel %vm254, %v810, 0.0
        %v813 = vadd.f32 %v738, %v811
        %v814 = vadd.f32 %v739, %v812
        %815 = vrot.lane.b32.xlu0 %v257, 112
        %v816 = vpop.permute.xlu0 %815
        %817 = vrot.lane.b32.xlu0 %v259, 112
        %v818 = vpop.permute.xlu0 %817
        %vm819 = vcmp.lt.s32.totalorder %v237, 112
        %v820 = vsel %vm819, %v816, %v818
        %v821 = vsel %vm819, %v818, %v816
        %v822 = vld [vmem:[#allocation2] sm:$0xff]
        %v823 = vlaneseq
        %v824 = vshrl.u32 %v823, 7
        %v825 = vsub.s32 0, %v824
        %v826 = vrot.slane %v820, %v825
        %v827 = vlaneseq
        %v828 = vshrl.u32 %v827, 7
        %v829 = vsub.s32 0, %v828
        %v830 = vrot.slane %v821, %v829
        %832 = vset.pattern.permute.xlu0 7
        %833 = vperm.xlu0 %832, %v822
        %v834 = vpop.permute.xlu0 %833
        %v836 = vmul.f32 %v834, %v826
        %v837 = vmul.f32 %v834, %v830
        %v838 = vlaneseq
        %v839 = vshrl.u32 %v838, 7
        %v840 = vsub.s32 1, %v839
        %v841 = vrot.slane %v820, %v840
        %v842 = vlaneseq
        %v843 = vshrl.u32 %v842, 7
        %v844 = vsub.s32 1, %v843
        %v845 = vrot.slane %v821, %v844
        %846 = vset.pattern.permute.xlu0 16
        %847 = vperm.xlu0 %846, %v822
        %v848 = vpop.permute.xlu0 %847
        %v850 = vmul.f32 %v848, %v841
        %v851 = vmul.f32 %v848, %v845
        %v852 = vadd.f32 %v836, %v850
        %v853 = vadd.f32 %v837, %v851
        %v854 = vlaneseq
        %v855 = vshrl.u32 %v854, 7
        %v856 = vsub.s32 2, %v855
        %v857 = vrot.slane %v820, %v856
        %v858 = vlaneseq
        %v859 = vshrl.u32 %v858, 7
        %v860 = vsub.s32 2, %v859
        %v861 = vrot.slane %v821, %v860
        %862 = vset.pattern.permute.xlu0 25
        %863 = vperm.xlu0 %862, %v822
        %v864 = vpop.permute.xlu0 %863
        %v866 = vmul.f32 %v864, %v857
        %v867 = vmul.f32 %v864, %v861
        %v868 = vadd.f32 %v852, %v866
        %v869 = vadd.f32 %v853, %v867
        %v870 = vlaneseq
        %v871 = vshrl.u32 %v870, 7
        %v872 = vsub.s32 3, %v871
        %v873 = vrot.slane %v820, %v872
        %v874 = vlaneseq
        %v875 = vshrl.u32 %v874, 7
        %v876 = vsub.s32 3, %v875
        %v877 = vrot.slane %v821, %v876
        %878 = vset.pattern.permute.xlu0 34
        %879 = vperm.xlu0 %878, %v822
        %v880 = vpop.permute.xlu0 %879
        %v882 = vmul.f32 %v880, %v873
        %v883 = vmul.f32 %v880, %v877
        %v884 = vadd.f32 %v868, %v882
        %v885 = vadd.f32 %v869, %v883
        %v886 = vsel %vm251, %v884, 0.0
        %v887 = vsel %vm252, %v885, 0.0
        %v888 = vadd.f32 %v813, %v886
        %v889 = vadd.f32 %v814, %v887
        %890 = vrot.lane.b32.xlu0 %v257, 111
        %v891 = vpop.permute.xlu0 %890
        %892 = vrot.lane.b32.xlu0 %v259, 111
        %v893 = vpop.permute.xlu0 %892
        %vm894 = vcmp.lt.s32.totalorder %v237, 111
        %v895 = vsel %vm894, %v891, %v893
        %v896 = vsel %vm894, %v893, %v891
        %v897 = vld [vmem:[#allocation2] sm:$0xff]
        %v898 = vlaneseq
        %v899 = vshrl.u32 %v898, 7
        %v900 = vsub.s32 0, %v899
        %v901 = vrot.slane %v895, %v900
        %v902 = vlaneseq
        %v903 = vshrl.u32 %v902, 7
        %v904 = vsub.s32 0, %v903
        %v905 = vrot.slane %v896, %v904
        %907 = vset.pattern.permute.xlu0 8
        %908 = vperm.xlu0 %907, %v897
        %v909 = vpop.permute.xlu0 %908
        %v911 = vmul.f32 %v909, %v901
        %v912 = vmul.f32 %v909, %v905
        %v913 = vlaneseq
        %v914 = vshrl.u32 %v913, 7
        %v915 = vsub.s32 1, %v914
        %v916 = vrot.slane %v895, %v915
        %v917 = vlaneseq
        %v918 = vshrl.u32 %v917, 7
        %v919 = vsub.s32 1, %v918
        %v920 = vrot.slane %v896, %v919
        %921 = vset.pattern.permute.xlu0 17
        %922 = vperm.xlu0 %921, %v897
        %v923 = vpop.permute.xlu0 %922
        %v925 = vmul.f32 %v923, %v916
        %v926 = vmul.f32 %v923, %v920
        %v927 = vadd.f32 %v911, %v925
        %v928 = vadd.f32 %v912, %v926
        %v929 = vlaneseq
        %v930 = vshrl.u32 %v929, 7
        %v931 = vsub.s32 2, %v930
        %v932 = vrot.slane %v895, %v931
        %v933 = vlaneseq
        %v934 = vshrl.u32 %v933, 7
        %v935 = vsub.s32 2, %v934
        %v936 = vrot.slane %v896, %v935
        %937 = vset.pattern.permute.xlu0 26
        %938 = vperm.xlu0 %937, %v897
        %v939 = vpop.permute.xlu0 %938
        %v941 = vmul.f32 %v939, %v932
        %v942 = vmul.f32 %v939, %v936
        %v943 = vadd.f32 %v927, %v941
        %v944 = vadd.f32 %v928, %v942
        %v945 = vlaneseq
        %v946 = vshrl.u32 %v945, 7
        %v947 = vsub.s32 3, %v946
        %v948 = vrot.slane %v895, %v947
        %v949 = vlaneseq
        %v950 = vshrl.u32 %v949, 7
        %v951 = vsub.s32 3, %v950
        %v952 = vrot.slane %v896, %v951
        %953 = vset.pattern.permute.xlu0 35
        %954 = vperm.xlu0 %953, %v897
        %v955 = vpop.permute.xlu0 %954
        %v957 = vmul.f32 %v955, %v948
        %v958 = vmul.f32 %v955, %v952
        %v959 = vadd.f32 %v943, %v957
        %v960 = vadd.f32 %v944, %v958
        %v961 = vsel %vm255, %v959, 0.0
        %v962 = vsel %vm256, %v960, 0.0
        %v963 = vadd.f32 %v888, %v961
        %v964 = vadd.f32 %v889, %v962
        %v965 = vld [vmem:[%s2] sm:$0xff]
        %967 = vset.pattern.permute.xlu0 0
        %968 = vperm.xlu0 %967, %v965
        %v969 = vpop.permute.xlu0 %968
        %v971 = vadd.f32 %v963, %v969
        %v972 = vadd.f32 %v964, %v969
        %vm973 = vcmp.ge.f32.partialorder %v971, 0.0
        %vm974 = vcmp.ge.f32.partialorder %v972, 0.0
        %v975 = vmul.f32 %v971, 0.01
        %v976 = vmul.f32 %v972, 0.01
        %v977 = vsel %vm973, %v971, %v975
        %v978 = vsel %vm974, %v972, %v976
        %979 = vrot.lane.b32.xlu0 %v977, 17
        %v980 = vpop.permute.xlu0 %979
        %981 = vrot.lane.b32.xlu0 %v978, 17
        %v982 = vpop.permute.xlu0 %981
        %v983 = vsel %vm265, %v980, %v982
        %v984 = vsel %vm265, %v982, %v980
        %v985 = vld [vmem:[%s3] sm:$0xff]
        %v986 = vlaneseq
        %v987 = vshrl.u32 %v986, 7
        %v988 = vsub.s32 0, %v987
        %v989 = vrot.slane %v984, %v988
        %v990 = vlaneseq
        %v991 = vshrl.u32 %v990, 7
        %v992 = vsub.s32 0, %v991
        %v993 = vrot.slane %v983, %v992
        %995 = vset.pattern.permute.xlu0 0
        %996 = vperm.xlu0 %995, %v985
        %v997 = vpop.permute.xlu0 %996
        %v999 = vmul.f32 %v997, %v989
        %v1000 = vmul.f32 %v997, %v993
        %v1001 = vlaneseq
        %v1002 = vshrl.u32 %v1001, 7
        %v1003 = vsub.s32 1, %v1002
        %v1004 = vrot.slane %v984, %v1003
        %v1005 = vlaneseq
        %v1006 = vshrl.u32 %v1005, 7
        %v1007 = vsub.s32 1, %v1006
        %v1008 = vrot.slane %v983, %v1007
        %1009 = vset.pattern.permute.xlu0 9
        %1010 = vperm.xlu0 %1009, %v985
        %v1011 = vpop.permute.xlu0 %1010
        %v1013 = vmul.f32 %v1011, %v1004
        %v1014 = vmul.f32 %v1011, %v1008
        %v1015 = vadd.f32 %v999, %v1013
        %v1016 = vadd.f32 %v1000, %v1014
        %v1017 = vlaneseq
        %v1018 = vshrl.u32 %v1017, 7
        %v1019 = vsub.s32 2, %v1018
        %v1020 = vrot.slane %v984, %v1019
        %v1021 = vlaneseq
        %v1022 = vshrl.u32 %v1021, 7
        %v1023 = vsub.s32 2, %v1022
        %v1024 = vrot.slane %v983, %v1023
        %1025 = vset.pattern.permute.xlu0 18
        %1026 = vperm.xlu0 %1025, %v985
        %v1027 = vpop.permute.xlu0 %1026
        %v1029 = vmul.f32 %v1027, %v1020
        %v1030 = vmul.f32 %v1027, %v1024
        %v1031 = vadd.f32 %v1015, %v1029
        %v1032 = vadd.f32 %v1016, %v1030
        %v1033 = vlaneseq
        %v1034 = vshrl.u32 %v1033, 7
        %v1035 = vsub.s32 3, %v1034
        %v1036 = vrot.slane %v984, %v1035
        %v1037 = vlaneseq
        %v1038 = vshrl.u32 %v1037, 7
        %v1039 = vsub.s32 3, %v1038
        %v1040 = vrot.slane %v983, %v1039
        %1041 = vset.pattern.permute.xlu0 27
        %1042 = vperm.xlu0 %1041, %v985
        %v1043 = vpop.permute.xlu0 %1042
        %v1045 = vmul.f32 %v1043, %v1036
        %v1046 = vmul.f32 %v1043, %v1040
        %v1047 = vadd.f32 %v1031, %v1045
        %v1048 = vadd.f32 %v1032, %v1046
        %v1049 = vlaneseq
        %v1050 = vshrl.u32 %v1049, 7
        %v1051 = vsub.s32 4, %v1050
        %v1052 = vrot.slane %v984, %v1051
        %v1053 = vlaneseq
        %v1054 = vshrl.u32 %v1053, 7
        %v1055 = vsub.s32 4, %v1054
        %v1056 = vrot.slane %v983, %v1055
        %1057 = vset.pattern.permute.xlu0 36
        %1058 = vperm.xlu0 %1057, %v985
        %v1059 = vpop.permute.xlu0 %1058
        %v1061 = vmul.f32 %v1059, %v1052
        %v1062 = vmul.f32 %v1059, %v1056
        %v1063 = vadd.f32 %v1047, %v1061
        %v1064 = vadd.f32 %v1048, %v1062
        %v1065 = vlaneseq
        %v1066 = vshrl.u32 %v1065, 7
        %v1067 = vsub.s32 5, %v1066
        %v1068 = vrot.slane %v984, %v1067
        %v1069 = vlaneseq
        %v1070 = vshrl.u32 %v1069, 7
        %v1071 = vsub.s32 5, %v1070
        %v1072 = vrot.slane %v983, %v1071
        %1073 = vset.pattern.permute.xlu0 45
        %1074 = vperm.xlu0 %1073, %v985
        %v1075 = vpop.permute.xlu0 %1074
        %v1077 = vmul.f32 %v1075, %v1068
        %v1078 = vmul.f32 %v1075, %v1072
        %v1079 = vadd.f32 %v1063, %v1077
        %v1080 = vadd.f32 %v1064, %v1078
        %v1081 = vlaneseq
        %v1082 = vshrl.u32 %v1081, 7
        %v1083 = vsub.s32 6, %v1082
        %v1084 = vrot.slane %v984, %v1083
        %v1085 = vlaneseq
        %v1086 = vshrl.u32 %v1085, 7
        %v1087 = vsub.s32 6, %v1086
        %v1088 = vrot.slane %v983, %v1087
        %1089 = vset.pattern.permute.xlu0 54
        %1090 = vperm.xlu0 %1089, %v985
        %v1091 = vpop.permute.xlu0 %1090
        %v1093 = vmul.f32 %v1091, %v1084
        %v1094 = vmul.f32 %v1091, %v1088
        %v1095 = vadd.f32 %v1079, %v1093
        %v1096 = vadd.f32 %v1080, %v1094
        %v1097 = vlaneseq
        %v1098 = vshrl.u32 %v1097, 7
        %v1099 = vsub.s32 7, %v1098
        %v1100 = vrot.slane %v984, %v1099
        %v1101 = vlaneseq
        %v1102 = vshrl.u32 %v1101, 7
        %v1103 = vsub.s32 7, %v1102
        %v1104 = vrot.slane %v983, %v1103
        %1105 = vset.pattern.permute.xlu0 63
        %1106 = vperm.xlu0 %1105, %v985
        %v1107 = vpop.permute.xlu0 %1106
        %v1109 = vmul.f32 %v1107, %v1100
        %v1110 = vmul.f32 %v1107, %v1104
        %v1111 = vadd.f32 %v1095, %v1109
        %v1112 = vadd.f32 %v1096, %v1110
        %v1113 = vsel %vm245, %v1111, 0.0
        %v1114 = vsel %vm246, %v1112, 0.0
        %v1115 = vadd.f32 %v1113, 0.0
        %v1116 = vadd.f32 %v1114, 0.0
        %1117 = vrot.lane.b32.xlu0 %v977, 16
        %v1118 = vpop.permute.xlu0 %1117
        %1119 = vrot.lane.b32.xlu0 %v978, 16
        %v1120 = vpop.permute.xlu0 %1119
        %v1121 = vsel %vm340, %v1118, %v1120
        %v1122 = vsel %vm340, %v1120, %v1118
        %v1123 = vlaneseq
        %v1124 = vshrl.u32 %v1123, 7
        %v1125 = vsub.s32 0, %v1124
        %v1126 = vrot.slane %v1122, %v1125
        %v1127 = vlaneseq
        %v1128 = vshrl.u32 %v1127, 7
        %v1129 = vsub.s32 0, %v1128
        %v1130 = vrot.slane %v1121, %v1129
        %1131 = vset.pattern.permute.xlu0 1
        %1132 = vperm.xlu0 %1131, %v985
        %v1133 = vpop.permute.xlu0 %1132
        %v1135 = vmul.f32 %v1133, %v1126
        %v1136 = vmul.f32 %v1133, %v1130
        %v1137 = vlaneseq
        %v1138 = vshrl.u32 %v1137, 7
        %v1139 = vsub.s32 1, %v1138
        %v1140 = vrot.slane %v1122, %v1139
        %v1141 = vlaneseq
        %v1142 = vshrl.u32 %v1141, 7
        %v1143 = vsub.s32 1, %v1142
        %v1144 = vrot.slane %v1121, %v1143
        %1145 = vset.pattern.permute.xlu0 10
        %1146 = vperm.xlu0 %1145, %v985
        %v1147 = vpop.permute.xlu0 %1146
        %v1149 = vmul.f32 %v1147, %v1140
        %v1150 = vmul.f32 %v1147, %v1144
        %v1151 = vadd.f32 %v1135, %v1149
        %v1152 = vadd.f32 %v1136, %v1150
        %v1153 = vlaneseq
        %v1154 = vshrl.u32 %v1153, 7
        %v1155 = vsub.s32 2, %v1154
        %v1156 = vrot.slane %v1122, %v1155
        %v1157 = vlaneseq
        %v1158 = vshrl.u32 %v1157, 7
        %v1159 = vsub.s32 2, %v1158
        %v1160 = vrot.slane %v1121, %v1159
        %1161 = vset.pattern.permute.xlu0 19
        %1162 = vperm.xlu0 %1161, %v985
        %v1163 = vpop.permute.xlu0 %1162
        %v1165 = vmul.f32 %v1163, %v1156
        %v1166 = vmul.f32 %v1163, %v1160
        %v1167 = vadd.f32 %v1151, %v1165
        %v1168 = vadd.f32 %v1152, %v1166
        %v1169 = vlaneseq
        %v1170 = vshrl.u32 %v1169, 7
        %v1171 = vsub.s32 3, %v1170
        %v1172 = vrot.slane %v1122, %v1171
        %v1173 = vlaneseq
        %v1174 = vshrl.u32 %v1173, 7
        %v1175 = vsub.s32 3, %v1174
        %v1176 = vrot.slane %v1121, %v1175
        %1177 = vset.pattern.permute.xlu0 28
        %1178 = vperm.xlu0 %1177, %v985
        %v1179 = vpop.permute.xlu0 %1178
        %v1181 = vmul.f32 %v1179, %v1172
        %v1182 = vmul.f32 %v1179, %v1176
        %v1183 = vadd.f32 %v1167, %v1181
        %v1184 = vadd.f32 %v1168, %v1182
        %v1185 = vlaneseq
        %v1186 = vshrl.u32 %v1185, 7
        %v1187 = vsub.s32 4, %v1186
        %v1188 = vrot.slane %v1122, %v1187
        %v1189 = vlaneseq
        %v1190 = vshrl.u32 %v1189, 7
        %v1191 = vsub.s32 4, %v1190
        %v1192 = vrot.slane %v1121, %v1191
        %1193 = vset.pattern.permute.xlu0 37
        %1194 = vperm.xlu0 %1193, %v985
        %v1195 = vpop.permute.xlu0 %1194
        %v1197 = vmul.f32 %v1195, %v1188
        %v1198 = vmul.f32 %v1195, %v1192
        %v1199 = vadd.f32 %v1183, %v1197
        %v1200 = vadd.f32 %v1184, %v1198
        %v1201 = vlaneseq
        %v1202 = vshrl.u32 %v1201, 7
        %v1203 = vsub.s32 5, %v1202
        %v1204 = vrot.slane %v1122, %v1203
        %v1205 = vlaneseq
        %v1206 = vshrl.u32 %v1205, 7
        %v1207 = vsub.s32 5, %v1206
        %v1208 = vrot.slane %v1121, %v1207
        %1209 = vset.pattern.permute.xlu0 46
        %1210 = vperm.xlu0 %1209, %v985
        %v1211 = vpop.permute.xlu0 %1210
        %v1213 = vmul.f32 %v1211, %v1204
        %v1214 = vmul.f32 %v1211, %v1208
        %v1215 = vadd.f32 %v1199, %v1213
        %v1216 = vadd.f32 %v1200, %v1214
        %v1217 = vlaneseq
        %v1218 = vshrl.u32 %v1217, 7
        %v1219 = vsub.s32 6, %v1218
        %v1220 = vrot.slane %v1122, %v1219
        %v1221 = vlaneseq
        %v1222 = vshrl.u32 %v1221, 7
        %v1223 = vsub.s32 6, %v1222
        %v1224 = vrot.slane %v1121, %v1223
        %1225 = vset.pattern.permute.xlu0 55
        %1226 = vperm.xlu0 %1225, %v985
        %v1227 = vpop.permute.xlu0 %1226
        %v1229 = vmul.f32 %v1227, %v1220
        %v1230 = vmul.f32 %v1227, %v1224
        %v1231 = vadd.f32 %v1215, %v1229
        %v1232 = vadd.f32 %v1216, %v1230
        %v1233 = vlaneseq
        %v1234 = vshrl.u32 %v1233, 7
        %v1235 = vsub.s32 7, %v1234
        %v1236 = vrot.slane %v1122, %v1235
        %v1237 = vlaneseq
        %v1238 = vshrl.u32 %v1237, 7
        %v1239 = vsub.s32 7, %v1238
        %v1240 = vrot.slane %v1121, %v1239
        %1241 = vset.pattern.permute.xlu0 64
        %1242 = vperm.xlu0 %1241, %v985
        %v1243 = vpop.permute.xlu0 %1242
        %v1245 = vmul.f32 %v1243, %v1236
        %v1246 = vmul.f32 %v1243, %v1240
        %v1247 = vadd.f32 %v1231, %v1245
        %v1248 = vadd.f32 %v1232, %v1246
        %v1249 = vsel %vm241, %v1247, 0.0
        %v1250 = vsel %vm242, %v1248, 0.0
        %v1251 = vadd.f32 %v1115, %v1249
        %v1252 = vadd.f32 %v1116, %v1250
        %1253 = vrot.lane.b32.xlu0 %v977, 15
        %v1254 = vpop.permute.xlu0 %1253
        %1255 = vrot.lane.b32.xlu0 %v978, 15
        %v1256 = vpop.permute.xlu0 %1255
        %v1257 = vsel %vm415, %v1254, %v1256
        %v1258 = vsel %vm415, %v1256, %v1254
        %v1259 = vlaneseq
        %v1260 = vshrl.u32 %v1259, 7
        %v1261 = vsub.s32 0, %v1260
        %v1262 = vrot.slane %v1258, %v1261
        %v1263 = vlaneseq
        %v1264 = vshrl.u32 %v1263, 7
        %v1265 = vsub.s32 0, %v1264
        %v1266 = vrot.slane %v1257, %v1265
        %1267 = vset.pattern.permute.xlu0 2
        %1268 = vperm.xlu0 %1267, %v985
        %v1269 = vpop.permute.xlu0 %1268
        %v1271 = vmul.f32 %v1269, %v1262
        %v1272 = vmul.f32 %v1269, %v1266
        %v1273 = vlaneseq
        %v1274 = vshrl.u32 %v1273, 7
        %v1275 = vsub.s32 1, %v1274
        %v1276 = vrot.slane %v1258, %v1275
        %v1277 = vlaneseq
        %v1278 = vshrl.u32 %v1277, 7
        %v1279 = vsub.s32 1, %v1278
        %v1280 = vrot.slane %v1257, %v1279
        %1281 = vset.pattern.permute.xlu0 11
        %1282 = vperm.xlu0 %1281, %v985
        %v1283 = vpop.permute.xlu0 %1282
        %v1285 = vmul.f32 %v1283, %v1276
        %v1286 = vmul.f32 %v1283, %v1280
        %v1287 = vadd.f32 %v1271, %v1285
        %v1288 = vadd.f32 %v1272, %v1286
        %v1289 = vlaneseq
        %v1290 = vshrl.u32 %v1289, 7
        %v1291 = vsub.s32 2, %v1290
        %v1292 = vrot.slane %v1258, %v1291
        %v1293 = vlaneseq
        %v1294 = vshrl.u32 %v1293, 7
        %v1295 = vsub.s32 2, %v1294
        %v1296 = vrot.slane %v1257, %v1295
        %1297 = vset.pattern.permute.xlu0 20
        %1298 = vperm.xlu0 %1297, %v985
        %v1299 = vpop.permute.xlu0 %1298
        %v1301 = vmul.f32 %v1299, %v1292
        %v1302 = vmul.f32 %v1299, %v1296
        %v1303 = vadd.f32 %v1287, %v1301
        %v1304 = vadd.f32 %v1288, %v1302
        %v1305 = vlaneseq
        %v1306 = vshrl.u32 %v1305, 7
        %v1307 = vsub.s32 3, %v1306
        %v1308 = vrot.slane %v1258, %v1307
        %v1309 = vlaneseq
        %v1310 = vshrl.u32 %v1309, 7
        %v1311 = vsub.s32 3, %v1310
        %v1312 = vrot.slane %v1257, %v1311
        %1313 = vset.pattern.permute.xlu0 29
        %1314 = vperm.xlu0 %1313, %v985
        %v1315 = vpop.permute.xlu0 %1314
        %v1317 = vmul.f32 %v1315, %v1308
        %v1318 = vmul.f32 %v1315, %v1312
        %v1319 = vadd.f32 %v1303, %v1317
        %v1320 = vadd.f32 %v1304, %v1318
        %v1321 = vlaneseq
        %v1322 = vshrl.u32 %v1321, 7
        %v1323 = vsub.s32 4, %v1322
        %v1324 = vrot.slane %v1258, %v1323
        %v1325 = vlaneseq
        %v1326 = vshrl.u32 %v1325, 7
        %v1327 = vsub.s32 4, %v1326
        %v1328 = vrot.slane %v1257, %v1327
        %1329 = vset.pattern.permute.xlu0 38
        %1330 = vperm.xlu0 %1329, %v985
        %v1331 = vpop.permute.xlu0 %1330
        %v1333 = vmul.f32 %v1331, %v1324
        %v1334 = vmul.f32 %v1331, %v1328
        %v1335 = vadd.f32 %v1319, %v1333
        %v1336 = vadd.f32 %v1320, %v1334
        %v1337 = vlaneseq
        %v1338 = vshrl.u32 %v1337, 7
        %v1339 = vsub.s32 5, %v1338
        %v1340 = vrot.slane %v1258, %v1339
        %v1341 = vlaneseq
        %v1342 = vshrl.u32 %v1341, 7
        %v1343 = vsub.s32 5, %v1342
        %v1344 = vrot.slane %v1257, %v1343
        %1345 = vset.pattern.permute.xlu0 47
        %1346 = vperm.xlu0 %1345, %v985
        %v1347 = vpop.permute.xlu0 %1346
        %v1349 = vmul.f32 %v1347, %v1340
        %v1350 = vmul.f32 %v1347, %v1344
        %v1351 = vadd.f32 %v1335, %v1349
        %v1352 = vadd.f32 %v1336, %v1350
        %v1353 = vlaneseq
        %v1354 = vshrl.u32 %v1353, 7
        %v1355 = vsub.s32 6, %v1354
        %v1356 = vrot.slane %v1258, %v1355
        %v1357 = vlaneseq
        %v1358 = vshrl.u32 %v1357, 7
        %v1359 = vsub.s32 6, %v1358
        %v1360 = vrot.slane %v1257, %v1359
        %1361 = vset.pattern.permute.xlu0 56
        %1362 = vperm.xlu0 %1361, %v985
        %v1363 = vpop.permute.xlu0 %1362
        %v1365 = vmul.f32 %v1363, %v1356
        %v1366 = vmul.f32 %v1363, %v1360
        %v1367 = vadd.f32 %v1351, %v1365
        %v1368 = vadd.f32 %v1352, %v1366
        %v1369 = vlaneseq
        %v1370 = vshrl.u32 %v1369, 7
        %v1371 = vsub.s32 7, %v1370
        %v1372 = vrot.slane %v1258, %v1371
        %v1373 = vlaneseq
        %v1374 = vshrl.u32 %v1373, 7
        %v1375 = vsub.s32 7, %v1374
        %v1376 = vrot.slane %v1257, %v1375
        %1377 = vset.pattern.permute.xlu0 65
        %1378 = vperm.xlu0 %1377, %v985
        %v1379 = vpop.permute.xlu0 %1378
        %v1381 = vmul.f32 %v1379, %v1372
        %v1382 = vmul.f32 %v1379, %v1376
        %v1383 = vadd.f32 %v1367, %v1381
        %v1384 = vadd.f32 %v1368, %v1382
        %v1385 = vsel %vm249, %v1383, 0.0
        %v1386 = vsel %vm250, %v1384, 0.0
        %v1387 = vadd.f32 %v1251, %v1385
        %v1388 = vadd.f32 %v1252, %v1386
        %1389 = vrot.lane.b32.xlu0 %v977, 1
        %v1390 = vpop.permute.xlu0 %1389
        %1391 = vrot.lane.b32.xlu0 %v978, 1
        %v1392 = vpop.permute.xlu0 %1391
        %v1393 = vsel %vm490, %v1390, %v1392
        %v1394 = vsel %vm490, %v1392, %v1390
        %v1395 = vlaneseq
        %v1396 = vshrl.u32 %v1395, 7
        %v1397 = vsub.s32 0, %v1396
        %v1398 = vrot.slane %v1394, %v1397
        %v1399 = vlaneseq
        %v1400 = vshrl.u32 %v1399, 7
        %v1401 = vsub.s32 0, %v1400
        %v1402 = vrot.slane %v1393, %v1401
        %1403 = vset.pattern.permute.xlu0 3
        %1404 = vperm.xlu0 %1403, %v985
        %v1405 = vpop.permute.xlu0 %1404
        %v1407 = vmul.f32 %v1405, %v1398
        %v1408 = vmul.f32 %v1405, %v1402
        %v1409 = vlaneseq
        %v1410 = vshrl.u32 %v1409, 7
        %v1411 = vsub.s32 1, %v1410
        %v1412 = vrot.slane %v1394, %v1411
        %v1413 = vlaneseq
        %v1414 = vshrl.u32 %v1413, 7
        %v1415 = vsub.s32 1, %v1414
        %v1416 = vrot.slane %v1393, %v1415
        %1417 = vset.pattern.permute.xlu0 12
        %1418 = vperm.xlu0 %1417, %v985
        %v1419 = vpop.permute.xlu0 %1418
        %v1421 = vmul.f32 %v1419, %v1412
        %v1422 = vmul.f32 %v1419, %v1416
        %v1423 = vadd.f32 %v1407, %v1421
        %v1424 = vadd.f32 %v1408, %v1422
        %v1425 = vlaneseq
        %v1426 = vshrl.u32 %v1425, 7
        %v1427 = vsub.s32 2, %v1426
        %v1428 = vrot.slane %v1394, %v1427
        %v1429 = vlaneseq
        %v1430 = vshrl.u32 %v1429, 7
        %v1431 = vsub.s32 2, %v1430
        %v1432 = vrot.slane %v1393, %v1431
        %1433 = vset.pattern.permute.xlu0 21
        %1434 = vperm.xlu0 %1433, %v985
        %v1435 = vpop.permute.xlu0 %1434
        %v1437 = vmul.f32 %v1435, %v1428
        %v1438 = vmul.f32 %v1435, %v1432
        %v1439 = vadd.f32 %v1423, %v1437
        %v1440 = vadd.f32 %v1424, %v1438
        %v1441 = vlaneseq
        %v1442 = vshrl.u32 %v1441, 7
        %v1443 = vsub.s32 3, %v1442
        %v1444 = vrot.slane %v1394, %v1443
        %v1445 = vlaneseq
        %v1446 = vshrl.u32 %v1445, 7
        %v1447 = vsub.s32 3, %v1446
        %v1448 = vrot.slane %v1393, %v1447
        %1449 = vset.pattern.permute.xlu0 30
        %1450 = vperm.xlu0 %1449, %v985
        %v1451 = vpop.permute.xlu0 %1450
        %v1453 = vmul.f32 %v1451, %v1444
        %v1454 = vmul.f32 %v1451, %v1448
        %v1455 = vadd.f32 %v1439, %v1453
        %v1456 = vadd.f32 %v1440, %v1454
        %v1457 = vlaneseq
        %v1458 = vshrl.u32 %v1457, 7
        %v1459 = vsub.s32 4, %v1458
        %v1460 = vrot.slane %v1394, %v1459
        %v1461 = vlaneseq
        %v1462 = vshrl.u32 %v1461, 7
        %v1463 = vsub.s32 4, %v1462
        %v1464 = vrot.slane %v1393, %v1463
        %1465 = vset.pattern.permute.xlu0 39
        %1466 = vperm.xlu0 %1465, %v985
        %v1467 = vpop.permute.xlu0 %1466
        %v1469 = vmul.f32 %v1467, %v1460
        %v1470 = vmul.f32 %v1467, %v1464
        %v1471 = vadd.f32 %v1455, %v1469
        %v1472 = vadd.f32 %v1456, %v1470
        %v1473 = vlaneseq
        %v1474 = vshrl.u32 %v1473, 7
        %v1475 = vsub.s32 5, %v1474
        %v1476 = vrot.slane %v1394, %v1475
        %v1477 = vlaneseq
        %v1478 = vshrl.u32 %v1477, 7
        %v1479 = vsub.s32 5, %v1478
        %v1480 = vrot.slane %v1393, %v1479
        %1481 = vset.pattern.permute.xlu0 48
        %1482 = vperm.xlu0 %1481, %v985
        %v1483 = vpop.permute.xlu0 %1482
        %v1485 = vmul.f32 %v1483, %v1476
        %v1486 = vmul.f32 %v1483, %v1480
        %v1487 = vadd.f32 %v1471, %v1485
        %v1488 = vadd.f32 %v1472, %v1486
        %v1489 = vlaneseq
        %v1490 = vshrl.u32 %v1489, 7
        %v1491 = vsub.s32 6, %v1490
        %v1492 = vrot.slane %v1394, %v1491
        %v1493 = vlaneseq
        %v1494 = vshrl.u32 %v1493, 7
        %v1495 = vsub.s32 6, %v1494
        %v1496 = vrot.slane %v1393, %v1495
        %1497 = vset.pattern.permute.xlu0 57
        %1498 = vperm.xlu0 %1497, %v985
        %v1499 = vpop.permute.xlu0 %1498
        %v1501 = vmul.f32 %v1499, %v1492
        %v1502 = vmul.f32 %v1499, %v1496
        %v1503 = vadd.f32 %v1487, %v1501
        %v1504 = vadd.f32 %v1488, %v1502
        %v1505 = vlaneseq
        %v1506 = vshrl.u32 %v1505, 7
        %v1507 = vsub.s32 7, %v1506
        %v1508 = vrot.slane %v1394, %v1507
        %v1509 = vlaneseq
        %v1510 = vshrl.u32 %v1509, 7
        %v1511 = vsub.s32 7, %v1510
        %v1512 = vrot.slane %v1393, %v1511
        %1513 = vset.pattern.permute.xlu0 66
        %1514 = vperm.xlu0 %1513, %v985
        %v1515 = vpop.permute.xlu0 %1514
        %v1517 = vmul.f32 %v1515, %v1508
        %v1518 = vmul.f32 %v1515, %v1512
        %v1519 = vadd.f32 %v1503, %v1517
        %v1520 = vadd.f32 %v1504, %v1518
        %v1521 = vsel %vm243, %v1519, 0.0
        %v1522 = vsel %vm244, %v1520, 0.0
        %v1523 = vadd.f32 %v1387, %v1521
        %v1524 = vadd.f32 %v1388, %v1522
        %v1525 = vlaneseq
        %v1526 = vshrl.u32 %v1525, 7
        %v1527 = vsub.s32 0, %v1526
        %v1528 = vrot.slane %v977, %v1527
        %v1529 = vlaneseq
        %v1530 = vshrl.u32 %v1529, 7
        %v1531 = vsub.s32 0, %v1530
        %v1532 = vrot.slane %v978, %v1531
        %1533 = vset.pattern.permute.xlu0 4
        %1534 = vperm.xlu0 %1533, %v985
        %v1535 = vpop.permute.xlu0 %1534
        %v1537 = vmul.f32 %v1535, %v1528
        %v1538 = vmul.f32 %v1535, %v1532
        %v1539 = vlaneseq
        %v1540 = vshrl.u32 %v1539, 7
        %v1541 = vsub.s32 1, %v1540
        %v1542 = vrot.slane %v977, %v1541
        %v1543 = vlaneseq
        %v1544 = vshrl.u32 %v1543, 7
        %v1545 = vsub.s32 1, %v1544
        %v1546 = vrot.slane %v978, %v1545
        %1547 = vset.pattern.permute.xlu0 13
        %1548 = vperm.xlu0 %1547, %v985
        %v1549 = vpop.permute.xlu0 %1548
        %v1551 = vmul.f32 %v1549, %v1542
        %v1552 = vmul.f32 %v1549, %v1546
        %v1553 = vadd.f32 %v1537, %v1551
        %v1554 = vadd.f32 %v1538, %v1552
        %v1555 = vlaneseq
        %v1556 = vshrl.u32 %v1555, 7
        %v1557 = vsub.s32 2, %v1556
        %v1558 = vrot.slane %v977, %v1557
        %v1559 = vlaneseq
        %v1560 = vshrl.u32 %v1559, 7
        %v1561 = vsub.s32 2, %v1560
        %v1562 = vrot.slane %v978, %v1561
        %1563 = vset.pattern.permute.xlu0 22
        %1564 = vperm.xlu0 %1563, %v985
        %v1565 = vpop.permute.xlu0 %1564
        %v1567 = vmul.f32 %v1565, %v1558
        %v1568 = vmul.f32 %v1565, %v1562
        %v1569 = vadd.f32 %v1553, %v1567
        %v1570 = vadd.f32 %v1554, %v1568
        %v1571 = vlaneseq
        %v1572 = vshrl.u32 %v1571, 7
        %v1573 = vsub.s32 3, %v1572
        %v1574 = vrot.slane %v977, %v1573
        %v1575 = vlaneseq
        %v1576 = vshrl.u32 %v1575, 7
        %v1577 = vsub.s32 3, %v1576
        %v1578 = vrot.slane %v978, %v1577
        %1579 = vset.pattern.permute.xlu0 31
        %1580 = vperm.xlu0 %1579, %v985
        %v1581 = vpop.permute.xlu0 %1580
        %v1583 = vmul.f32 %v1581, %v1574
        %v1584 = vmul.f32 %v1581, %v1578
        %v1585 = vadd.f32 %v1569, %v1583
        %v1586 = vadd.f32 %v1570, %v1584
        %v1587 = vlaneseq
        %v1588 = vshrl.u32 %v1587, 7
        %v1589 = vsub.s32 4, %v1588
        %v1590 = vrot.slane %v977, %v1589
        %v1591 = vlaneseq
        %v1592 = vshrl.u32 %v1591, 7
        %v1593 = vsub.s32 4, %v1592
        %v1594 = vrot.slane %v978, %v1593
        %1595 = vset.pattern.permute.xlu0 40
        %1596 = vperm.xlu0 %1595, %v985
        %v1597 = vpop.permute.xlu0 %1596
        %v1599 = vmul.f32 %v1597, %v1590
        %v1600 = vmul.f32 %v1597, %v1594
        %v1601 = vadd.f32 %v1585, %v1599
        %v1602 = vadd.f32 %v1586, %v1600
        %v1603 = vlaneseq
        %v1604 = vshrl.u32 %v1603, 7
        %v1605 = vsub.s32 5, %v1604
        %v1606 = vrot.slane %v977, %v1605
        %v1607 = vlaneseq
        %v1608 = vshrl.u32 %v1607, 7
        %v1609 = vsub.s32 5, %v1608
        %v1610 = vrot.slane %v978, %v1609
        %1611 = vset.pattern.permute.xlu0 49
        %1612 = vperm.xlu0 %1611, %v985
        %v1613 = vpop.permute.xlu0 %1612
        %v1615 = vmul.f32 %v1613, %v1606
        %v1616 = vmul.f32 %v1613, %v1610
        %v1617 = vadd.f32 %v1601, %v1615
        %v1618 = vadd.f32 %v1602, %v1616
        %v1619 = vlaneseq
        %v1620 = vshrl.u32 %v1619, 7
        %v1621 = vsub.s32 6, %v1620
        %v1622 = vrot.slane %v977, %v1621
        %v1623 = vlaneseq
        %v1624 = vshrl.u32 %v1623, 7
        %v1625 = vsub.s32 6, %v1624
        %v1626 = vrot.slane %v978, %v1625
        %1627 = vset.pattern.permute.xlu0 58
        %1628 = vperm.xlu0 %1627, %v985
        %v1629 = vpop.permute.xlu0 %1628
        %v1631 = vmul.f32 %v1629, %v1622
        %v1632 = vmul.f32 %v1629, %v1626
        %v1633 = vadd.f32 %v1617, %v1631
        %v1634 = vadd.f32 %v1618, %v1632
        %v1635 = vlaneseq
        %v1636 = vshrl.u32 %v1635, 7
        %v1637 = vsub.s32 7, %v1636
        %v1638 = vrot.slane %v977, %v1637
        %v1639 = vlaneseq
        %v1640 = vshrl.u32 %v1639, 7
        %v1641 = vsub.s32 7, %v1640
        %v1642 = vrot.slane %v978, %v1641
        %1643 = vset.pattern.permute.xlu0 67
        %1644 = vperm.xlu0 %1643, %v985
        %v1645 = vpop.permute.xlu0 %1644
        %v1647 = vmul.f32 %v1645, %v1638
        %v1648 = vmul.f32 %v1645, %v1642
        %v1649 = vadd.f32 %v1633, %v1647
        %v1650 = vadd.f32 %v1634, %v1648
        %v1651 = vadd.f32 %v1523, %v1649
        %v1652 = vadd.f32 %v1524, %v1650
        %1653 = vrot.lane.b32.xlu0 %v977, 127
        %v1654 = vpop.permute.xlu0 %1653
        %1655 = vrot.lane.b32.xlu0 %v978, 127
        %v1656 = vpop.permute.xlu0 %1655
        %v1657 = vsel %vm669, %v1654, %v1656
        %v1658 = vsel %vm669, %v1656, %v1654
        %v1659 = vlaneseq
        %v1660 = vshrl.u32 %v1659, 7
        %v1661 = vsub.s32 0, %v1660
        %v1662 = vrot.slane %v1657, %v1661
        %v1663 = vlaneseq
        %v1664 = vshrl.u32 %v1663, 7
        %v1665 = vsub.s32 0, %v1664
        %v1666 = vrot.slane %v1658, %v1665
        %1667 = vset.pattern.permute.xlu0 5
        %1668 = vperm.xlu0 %1667, %v985
        %v1669 = vpop.permute.xlu0 %1668
        %v1671 = vmul.f32 %v1669, %v1662
        %v1672 = vmul.f32 %v1669, %v1666
        %v1673 = vlaneseq
        %v1674 = vshrl.u32 %v1673, 7
        %v1675 = vsub.s32 1, %v1674
        %v1676 = vrot.slane %v1657, %v1675
        %v1677 = vlaneseq
        %v1678 = vshrl.u32 %v1677, 7
        %v1679 = vsub.s32 1, %v1678
        %v1680 = vrot.slane %v1658, %v1679
        %1681 = vset.pattern.permute.xlu0 14
        %1682 = vperm.xlu0 %1681, %v985
        %v1683 = vpop.permute.xlu0 %1682
        %v1685 = vmul.f32 %v1683, %v1676
        %v1686 = vmul.f32 %v1683, %v1680
        %v1687 = vadd.f32 %v1671, %v1685
        %v1688 = vadd.f32 %v1672, %v1686
        %v1689 = vlaneseq
        %v1690 = vshrl.u32 %v1689, 7
        %v1691 = vsub.s32 2, %v1690
        %v1692 = vrot.slane %v1657, %v1691
        %v1693 = vlaneseq
        %v1694 = vshrl.u32 %v1693, 7
        %v1695 = vsub.s32 2, %v1694
        %v1696 = vrot.slane %v1658, %v1695
        %1697 = vset.pattern.permute.xlu0 23
        %1698 = vperm.xlu0 %1697, %v985
        %v1699 = vpop.permute.xlu0 %1698
        %v1701 = vmul.f32 %v1699, %v1692
        %v1702 = vmul.f32 %v1699, %v1696
        %v1703 = vadd.f32 %v1687, %v1701
        %v1704 = vadd.f32 %v1688, %v1702
        %v1705 = vlaneseq
        %v1706 = vshrl.u32 %v1705, 7
        %v1707 = vsub.s32 3, %v1706
        %v1708 = vrot.slane %v1657, %v1707
        %v1709 = vlaneseq
        %v1710 = vshrl.u32 %v1709, 7
        %v1711 = vsub.s32 3, %v1710
        %v1712 = vrot.slane %v1658, %v1711
        %1713 = vset.pattern.permute.xlu0 32
        %1714 = vperm.xlu0 %1713, %v985
        %v1715 = vpop.permute.xlu0 %1714
        %v1717 = vmul.f32 %v1715, %v1708
        %v1718 = vmul.f32 %v1715, %v1712
        %v1719 = vadd.f32 %v1703, %v1717
        %v1720 = vadd.f32 %v1704, %v1718
        %v1721 = vlaneseq
        %v1722 = vshrl.u32 %v1721, 7
        %v1723 = vsub.s32 4, %v1722
        %v1724 = vrot.slane %v1657, %v1723
        %v1725 = vlaneseq
        %v1726 = vshrl.u32 %v1725, 7
        %v1727 = vsub.s32 4, %v1726
        %v1728 = vrot.slane %v1658, %v1727
        %1729 = vset.pattern.permute.xlu0 41
        %1730 = vperm.xlu0 %1729, %v985
        %v1731 = vpop.permute.xlu0 %1730
        %v1733 = vmul.f32 %v1731, %v1724
        %v1734 = vmul.f32 %v1731, %v1728
        %v1735 = vadd.f32 %v1719, %v1733
        %v1736 = vadd.f32 %v1720, %v1734
        %v1737 = vlaneseq
        %v1738 = vshrl.u32 %v1737, 7
        %v1739 = vsub.s32 5, %v1738
        %v1740 = vrot.slane %v1657, %v1739
        %v1741 = vlaneseq
        %v1742 = vshrl.u32 %v1741, 7
        %v1743 = vsub.s32 5, %v1742
        %v1744 = vrot.slane %v1658, %v1743
        %1745 = vset.pattern.permute.xlu0 50
        %1746 = vperm.xlu0 %1745, %v985
        %v1747 = vpop.permute.xlu0 %1746
        %v1749 = vmul.f32 %v1747, %v1740
        %v1750 = vmul.f32 %v1747, %v1744
        %v1751 = vadd.f32 %v1735, %v1749
        %v1752 = vadd.f32 %v1736, %v1750
        %v1753 = vlaneseq
        %v1754 = vshrl.u32 %v1753, 7
        %v1755 = vsub.s32 6, %v1754
        %v1756 = vrot.slane %v1657, %v1755
        %v1757 = vlaneseq
        %v1758 = vshrl.u32 %v1757, 7
        %v1759 = vsub.s32 6, %v1758
        %v1760 = vrot.slane %v1658, %v1759
        %1761 = vset.pattern.permute.xlu0 59
        %1762 = vperm.xlu0 %1761, %v985
        %v1763 = vpop.permute.xlu0 %1762
        %v1765 = vmul.f32 %v1763, %v1756
        %v1766 = vmul.f32 %v1763, %v1760
        %v1767 = vadd.f32 %v1751, %v1765
        %v1768 = vadd.f32 %v1752, %v1766
        %v1769 = vlaneseq
        %v1770 = vshrl.u32 %v1769, 7
        %v1771 = vsub.s32 7, %v1770
        %v1772 = vrot.slane %v1657, %v1771
        %v1773 = vlaneseq
        %v1774 = vshrl.u32 %v1773, 7
        %v1775 = vsub.s32 7, %v1774
        %v1776 = vrot.slane %v1658, %v1775
        %1777 = vset.pattern.permute.xlu0 68
        %1778 = vperm.xlu0 %1777, %v985
        %v1779 = vpop.permute.xlu0 %1778
        %v1781 = vmul.f32 %v1779, %v1772
        %v1782 = vmul.f32 %v1779, %v1776
        %v1783 = vadd.f32 %v1767, %v1781
        %v1784 = vadd.f32 %v1768, %v1782
        %v1785 = vsel %vm247, %v1783, 0.0
        %v1786 = vsel %vm248, %v1784, 0.0
        %v1787 = vadd.f32 %v1651, %v1785
        %v1788 = vadd.f32 %v1652, %v1786
        %1789 = vrot.lane.b32.xlu0 %v977, 113
        %v1790 = vpop.permute.xlu0 %1789
        %1791 = vrot.lane.b32.xlu0 %v978, 113
        %v1792 = vpop.permute.xlu0 %1791
        %v1793 = vsel %vm744, %v1790, %v1792
        %v1794 = vsel %vm744, %v1792, %v1790
        %v1795 = vlaneseq
        %v1796 = vshrl.u32 %v1795, 7
        %v1797 = vsub.s32 0, %v1796
        %v1798 = vrot.slane %v1793, %v1797
        %v1799 = vlaneseq
        %v1800 = vshrl.u32 %v1799, 7
        %v1801 = vsub.s32 0, %v1800
        %v1802 = vrot.slane %v1794, %v1801
        %1803 = vset.pattern.permute.xlu0 6
        %1804 = vperm.xlu0 %1803, %v985
        %v1805 = vpop.permute.xlu0 %1804
        %v1807 = vmul.f32 %v1805, %v1798
        %v1808 = vmul.f32 %v1805, %v1802
        %v1809 = vlaneseq
        %v1810 = vshrl.u32 %v1809, 7
        %v1811 = vsub.s32 1, %v1810
        %v1812 = vrot.slane %v1793, %v1811
        %v1813 = vlaneseq
        %v1814 = vshrl.u32 %v1813, 7
        %v1815 = vsub.s32 1, %v1814
        %v1816 = vrot.slane %v1794, %v1815
        %1817 = vset.pattern.permute.xlu0 15
        %1818 = vperm.xlu0 %1817, %v985
        %v1819 = vpop.permute.xlu0 %1818
        %v1821 = vmul.f32 %v1819, %v1812
        %v1822 = vmul.f32 %v1819, %v1816
        %v1823 = vadd.f32 %v1807, %v1821
        %v1824 = vadd.f32 %v1808, %v1822
        %v1825 = vlaneseq
        %v1826 = vshrl.u32 %v1825, 7
        %v1827 = vsub.s32 2, %v1826
        %v1828 = vrot.slane %v1793, %v1827
        %v1829 = vlaneseq
        %v1830 = vshrl.u32 %v1829, 7
        %v1831 = vsub.s32 2, %v1830
        %v1832 = vrot.slane %v1794, %v1831
        %1833 = vset.pattern.permute.xlu0 24
        %1834 = vperm.xlu0 %1833, %v985
        %v1835 = vpop.permute.xlu0 %1834
        %v1837 = vmul.f32 %v1835, %v1828
        %v1838 = vmul.f32 %v1835, %v1832
        %v1839 = vadd.f32 %v1823, %v1837
        %v1840 = vadd.f32 %v1824, %v1838
        %v1841 = vlaneseq
        %v1842 = vshrl.u32 %v1841, 7
        %v1843 = vsub.s32 3, %v1842
        %v1844 = vrot.slane %v1793, %v1843
        %v1845 = vlaneseq
        %v1846 = vshrl.u32 %v1845, 7
        %v1847 = vsub.s32 3, %v1846
        %v1848 = vrot.slane %v1794, %v1847
        %1849 = vset.pattern.permute.xlu0 33
        %1850 = vperm.xlu0 %1849, %v985
        %v1851 = vpop.permute.xlu0 %1850
        %v1853 = vmul.f32 %v1851, %v1844
        %v1854 = vmul.f32 %v1851, %v1848
        %v1855 = vadd.f32 %v1839, %v1853
        %v1856 = vadd.f32 %v1840, %v1854
        %v1857 = vlaneseq
        %v1858 = vshrl.u32 %v1857, 7
        %v1859 = vsub.s32 4, %v1858
        %v1860 = vrot.slane %v1793, %v1859
        %v1861 = vlaneseq
        %v1862 = vshrl.u32 %v1861, 7
        %v1863 = vsub.s32 4, %v1862
        %v1864 = vrot.slane %v1794, %v1863
        %1865 = vset.pattern.permute.xlu0 42
        %1866 = vperm.xlu0 %1865, %v985
        %v1867 = vpop.permute.xlu0 %1866
        %v1869 = vmul.f32 %v1867, %v1860
        %v1870 = vmul.f32 %v1867, %v1864
        %v1871 = vadd.f32 %v1855, %v1869
        %v1872 = vadd.f32 %v1856, %v1870
        %v1873 = vlaneseq
        %v1874 = vshrl.u32 %v1873, 7
        %v1875 = vsub.s32 5, %v1874
        %v1876 = vrot.slane %v1793, %v1875
        %v1877 = vlaneseq
        %v1878 = vshrl.u32 %v1877, 7
        %v1879 = vsub.s32 5, %v1878
        %v1880 = vrot.slane %v1794, %v1879
        %1881 = vset.pattern.permute.xlu0 51
        %1882 = vperm.xlu0 %1881, %v985
        %v1883 = vpop.permute.xlu0 %1882
        %v1885 = vmul.f32 %v1883, %v1876
        %v1886 = vmul.f32 %v1883, %v1880
        %v1887 = vadd.f32 %v1871, %v1885
        %v1888 = vadd.f32 %v1872, %v1886
        %v1889 = vlaneseq
        %v1890 = vshrl.u32 %v1889, 7
        %v1891 = vsub.s32 6, %v1890
        %v1892 = vrot.slane %v1793, %v1891
        %v1893 = vlaneseq
        %v1894 = vshrl.u32 %v1893, 7
        %v1895 = vsub.s32 6, %v1894
        %v1896 = vrot.slane %v1794, %v1895
        %1897 = vset.pattern.permute.xlu0 60
        %1898 = vperm.xlu0 %1897, %v985
        %v1899 = vpop.permute.xlu0 %1898
        %v1901 = vmul.f32 %v1899, %v1892
        %v1902 = vmul.f32 %v1899, %v1896
        %v1903 = vadd.f32 %v1887, %v1901
        %v1904 = vadd.f32 %v1888, %v1902
        %v1905 = vlaneseq
        %v1906 = vshrl.u32 %v1905, 7
        %v1907 = vsub.s32 7, %v1906
        %v1908 = vrot.slane %v1793, %v1907
        %v1909 = vlaneseq
        %v1910 = vshrl.u32 %v1909, 7
        %v1911 = vsub.s32 7, %v1910
        %v1912 = vrot.slane %v1794, %v1911
        %1913 = vset.pattern.permute.xlu0 69
        %1914 = vperm.xlu0 %1913, %v985
        %v1915 = vpop.permute.xlu0 %1914
        %v1917 = vmul.f32 %v1915, %v1908
        %v1918 = vmul.f32 %v1915, %v1912
        %v1919 = vadd.f32 %v1903, %v1917
        %v1920 = vadd.f32 %v1904, %v1918
        %v1921 = vsel %vm253, %v1919, 0.0
        %v1922 = vsel %vm254, %v1920, 0.0
        %v1923 = vadd.f32 %v1787, %v1921
        %v1924 = vadd.f32 %v1788, %v1922
        %1925 = vrot.lane.b32.xlu0 %v977, 112
        %v1926 = vpop.permute.xlu0 %1925
        %1927 = vrot.lane.b32.xlu0 %v978, 112
        %v1928 = vpop.permute.xlu0 %1927
        %v1929 = vsel %vm819, %v1926, %v1928
        %v1930 = vsel %vm819, %v1928, %v1926
        %v1931 = vlaneseq
        %v1932 = vshrl.u32 %v1931, 7
        %v1933 = vsub.s32 0, %v1932
        %v1934 = vrot.slane %v1929, %v1933
        %v1935 = vlaneseq
        %v1936 = vshrl.u32 %v1935, 7
        %v1937 = vsub.s32 0, %v1936
        %v1938 = vrot.slane %v1930, %v1937
        %1939 = vset.pattern.permute.xlu0 7
        %1940 = vperm.xlu0 %1939, %v985
        %v1941 = vpop.permute.xlu0 %1940
        %v1943 = vmul.f32 %v1941, %v1934
        %v1944 = vmul.f32 %v1941, %v1938
        %v1945 = vlaneseq
        %v1946 = vshrl.u32 %v1945, 7
        %v1947 = vsub.s32 1, %v1946
        %v1948 = vrot.slane %v1929, %v1947
        %v1949 = vlaneseq
        %v1950 = vshrl.u32 %v1949, 7
        %v1951 = vsub.s32 1, %v1950
        %v1952 = vrot.slane %v1930, %v1951
        %1953 = vset.pattern.permute.xlu0 16
        %1954 = vperm.xlu0 %1953, %v985
        %v1955 = vpop.permute.xlu0 %1954
        %v1957 = vmul.f32 %v1955, %v1948
        %v1958 = vmul.f32 %v1955, %v1952
        %v1959 = vadd.f32 %v1943, %v1957
        %v1960 = vadd.f32 %v1944, %v1958
        %v1961 = vlaneseq
        %v1962 = vshrl.u32 %v1961, 7
        %v1963 = vsub.s32 2, %v1962
        %v1964 = vrot.slane %v1929, %v1963
        %v1965 = vlaneseq
        %v1966 = vshrl.u32 %v1965, 7
        %v1967 = vsub.s32 2, %v1966
        %v1968 = vrot.slane %v1930, %v1967
        %1969 = vset.pattern.permute.xlu0 25
        %1970 = vperm.xlu0 %1969, %v985
        %v1971 = vpop.permute.xlu0 %1970
        %v1973 = vmul.f32 %v1971, %v1964
        %v1974 = vmul.f32 %v1971, %v1968
        %v1975 = vadd.f32 %v1959, %v1973
        %v1976 = vadd.f32 %v1960, %v1974
        %v1977 = vlaneseq
        %v1978 = vshrl.u32 %v1977, 7
        %v1979 = vsub.s32 3, %v1978
        %v1980 = vrot.slane %v1929, %v1979
        %v1981 = vlaneseq
        %v1982 = vshrl.u32 %v1981, 7
        %v1983 = vsub.s32 3, %v1982
        %v1984 = vrot.slane %v1930, %v1983
        %1985 = vset.pattern.permute.xlu0 34
        %1986 = vperm.xlu0 %1985, %v985
        %v1987 = vpop.permute.xlu0 %1986
        %v1989 = vmul.f32 %v1987, %v1980
        %v1990 = vmul.f32 %v1987, %v1984
        %v1991 = vadd.f32 %v1975, %v1989
        %v1992 = vadd.f32 %v1976, %v1990
        %v1993 = vlaneseq
        %v1994 = vshrl.u32 %v1993, 7
        %v1995 = vsub.s32 4, %v1994
        %v1996 = vrot.slane %v1929, %v1995
        %v1997 = vlaneseq
        %v1998 = vshrl.u32 %v1997, 7
        %v1999 = vsub.s32 4, %v1998
        %v2000 = vrot.slane %v1930, %v1999
        %2001 = vset.pattern.permute.xlu0 43
        %2002 = vperm.xlu0 %2001, %v985
        %v2003 = vpop.permute.xlu0 %2002
        %v2005 = vmul.f32 %v2003, %v1996
        %v2006 = vmul.f32 %v2003, %v2000
        %v2007 = vadd.f32 %v1991, %v2005
        %v2008 = vadd.f32 %v1992, %v2006
        %v2009 = vlaneseq
        %v2010 = vshrl.u32 %v2009, 7
        %v2011 = vsub.s32 5, %v2010
        %v2012 = vrot.slane %v1929, %v2011
        %v2013 = vlaneseq
        %v2014 = vshrl.u32 %v2013, 7
        %v2015 = vsub.s32 5, %v2014
        %v2016 = vrot.slane %v1930, %v2015
        %2017 = vset.pattern.permute.xlu0 52
        %2018 = vperm.xlu0 %2017, %v985
        %v2019 = vpop.permute.xlu0 %2018
        %v2021 = vmul.f32 %v2019, %v2012
        %v2022 = vmul.f32 %v2019, %v2016
        %v2023 = vadd.f32 %v2007, %v2021
        %v2024 = vadd.f32 %v2008, %v2022
        %v2025 = vlaneseq
        %v2026 = vshrl.u32 %v2025, 7
        %v2027 = vsub.s32 6, %v2026
        %v2028 = vrot.slane %v1929, %v2027
        %v2029 = vlaneseq
        %v2030 = vshrl.u32 %v2029, 7
        %v2031 = vsub.s32 6, %v2030
        %v2032 = vrot.slane %v1930, %v2031
        %2033 = vset.pattern.permute.xlu0 61
        %2034 = vperm.xlu0 %2033, %v985
        %v2035 = vpop.permute.xlu0 %2034
        %v2037 = vmul.f32 %v2035, %v2028
        %v2038 = vmul.f32 %v2035, %v2032
        %v2039 = vadd.f32 %v2023, %v2037
        %v2040 = vadd.f32 %v2024, %v2038
        %v2041 = vlaneseq
        %v2042 = vshrl.u32 %v2041, 7
        %v2043 = vsub.s32 7, %v2042
        %v2044 = vrot.slane %v1929, %v2043
        %v2045 = vlaneseq
        %v2046 = vshrl.u32 %v2045, 7
        %v2047 = vsub.s32 7, %v2046
        %v2048 = vrot.slane %v1930, %v2047
        %2049 = vset.pattern.permute.xlu0 70
        %2050 = vperm.xlu0 %2049, %v985
        %v2051 = vpop.permute.xlu0 %2050
        %v2053 = vmul.f32 %v2051, %v2044
        %v2054 = vmul.f32 %v2051, %v2048
        %v2055 = vadd.f32 %v2039, %v2053
        %v2056 = vadd.f32 %v2040, %v2054
        %v2057 = vsel %vm251, %v2055, 0.0
        %v2058 = vsel %vm252, %v2056, 0.0
        %v2059 = vadd.f32 %v1923, %v2057
        %v2060 = vadd.f32 %v1924, %v2058
        %2061 = vrot.lane.b32.xlu0 %v977, 111
        %v2062 = vpop.permute.xlu0 %2061
        %2063 = vrot.lane.b32.xlu0 %v978, 111
        %v2064 = vpop.permute.xlu0 %2063
        %v2065 = vsel %vm894, %v2062, %v2064
        %v2066 = vsel %vm894, %v2064, %v2062
        %v2067 = vlaneseq
        %v2068 = vshrl.u32 %v2067, 7
        %v2069 = vsub.s32 0, %v2068
        %v2070 = vrot.slane %v2065, %v2069
        %v2071 = vlaneseq
        %v2072 = vshrl.u32 %v2071, 7
        %v2073 = vsub.s32 0, %v2072
        %v2074 = vrot.slane %v2066, %v2073
        %2075 = vset.pattern.permute.xlu0 8
        %2076 = vperm.xlu0 %2075, %v985
        %v2077 = vpop.permute.xlu0 %2076
        %v2079 = vmul.f32 %v2077, %v2070
        %v2080 = vmul.f32 %v2077, %v2074
        %v2081 = vlaneseq
        %v2082 = vshrl.u32 %v2081, 7
        %v2083 = vsub.s32 1, %v2082
        %v2084 = vrot.slane %v2065, %v2083
        %v2085 = vlaneseq
        %v2086 = vshrl.u32 %v2085, 7
        %v2087 = vsub.s32 1, %v2086
        %v2088 = vrot.slane %v2066, %v2087
        %2089 = vset.pattern.permute.xlu0 17
        %2090 = vperm.xlu0 %2089, %v985
        %v2091 = vpop.permute.xlu0 %2090
        %v2093 = vmul.f32 %v2091, %v2084
        %v2094 = vmul.f32 %v2091, %v2088
        %v2095 = vadd.f32 %v2079, %v2093
        %v2096 = vadd.f32 %v2080, %v2094
        %v2097 = vlaneseq
        %v2098 = vshrl.u32 %v2097, 7
        %v2099 = vsub.s32 2, %v2098
        %v2100 = vrot.slane %v2065, %v2099
        %v2101 = vlaneseq
        %v2102 = vshrl.u32 %v2101, 7
        %v2103 = vsub.s32 2, %v2102
        %v2104 = vrot.slane %v2066, %v2103
        %2105 = vset.pattern.permute.xlu0 26
        %2106 = vperm.xlu0 %2105, %v985
        %v2107 = vpop.permute.xlu0 %2106
        %v2109 = vmul.f32 %v2107, %v2100
        %v2110 = vmul.f32 %v2107, %v2104
        %v2111 = vadd.f32 %v2095, %v2109
        %v2112 = vadd.f32 %v2096, %v2110
        %v2113 = vlaneseq
        %v2114 = vshrl.u32 %v2113, 7
        %v2115 = vsub.s32 3, %v2114
        %v2116 = vrot.slane %v2065, %v2115
        %v2117 = vlaneseq
        %v2118 = vshrl.u32 %v2117, 7
        %v2119 = vsub.s32 3, %v2118
        %v2120 = vrot.slane %v2066, %v2119
        %2121 = vset.pattern.permute.xlu0 35
        %2122 = vperm.xlu0 %2121, %v985
        %v2123 = vpop.permute.xlu0 %2122
        %v2125 = vmul.f32 %v2123, %v2116
        %v2126 = vmul.f32 %v2123, %v2120
        %v2127 = vadd.f32 %v2111, %v2125
        %v2128 = vadd.f32 %v2112, %v2126
        %v2129 = vlaneseq
        %v2130 = vshrl.u32 %v2129, 7
        %v2131 = vsub.s32 4, %v2130
        %v2132 = vrot.slane %v2065, %v2131
        %v2133 = vlaneseq
        %v2134 = vshrl.u32 %v2133, 7
        %v2135 = vsub.s32 4, %v2134
        %v2136 = vrot.slane %v2066, %v2135
        %2137 = vset.pattern.permute.xlu0 44
        %2138 = vperm.xlu0 %2137, %v985
        %v2139 = vpop.permute.xlu0 %2138
        %v2141 = vmul.f32 %v2139, %v2132
        %v2142 = vmul.f32 %v2139, %v2136
        %v2143 = vadd.f32 %v2127, %v2141
        %v2144 = vadd.f32 %v2128, %v2142
        %v2145 = vlaneseq
        %v2146 = vshrl.u32 %v2145, 7
        %v2147 = vsub.s32 5, %v2146
        %v2148 = vrot.slane %v2065, %v2147
        %v2149 = vlaneseq
        %v2150 = vshrl.u32 %v2149, 7
        %v2151 = vsub.s32 5, %v2150
        %v2152 = vrot.slane %v2066, %v2151
        %2153 = vset.pattern.permute.xlu0 53
        %2154 = vperm.xlu0 %2153, %v985
        %v2155 = vpop.permute.xlu0 %2154
        %v2157 = vmul.f32 %v2155, %v2148
        %v2158 = vmul.f32 %v2155, %v2152
        %v2159 = vadd.f32 %v2143, %v2157
        %v2160 = vadd.f32 %v2144, %v2158
        %v2161 = vlaneseq
        %v2162 = vshrl.u32 %v2161, 7
        %v2163 = vsub.s32 6, %v2162
        %v2164 = vrot.slane %v2065, %v2163
        %v2165 = vlaneseq
        %v2166 = vshrl.u32 %v2165, 7
        %v2167 = vsub.s32 6, %v2166
        %v2168 = vrot.slane %v2066, %v2167
        %2169 = vset.pattern.permute.xlu0 62
        %2170 = vperm.xlu0 %2169, %v985
        %v2171 = vpop.permute.xlu0 %2170
        %v2173 = vmul.f32 %v2171, %v2164
        %v2174 = vmul.f32 %v2171, %v2168
        %v2175 = vadd.f32 %v2159, %v2173
        %v2176 = vadd.f32 %v2160, %v2174
        %v2177 = vlaneseq
        %v2178 = vshrl.u32 %v2177, 7
        %v2179 = vsub.s32 7, %v2178
        %v2180 = vrot.slane %v2065, %v2179
        %v2181 = vlaneseq
        %v2182 = vshrl.u32 %v2181, 7
        %v2183 = vsub.s32 7, %v2182
        %v2184 = vrot.slane %v2066, %v2183
        %2185 = vset.pattern.permute.xlu0 71
        %2186 = vperm.xlu0 %2185, %v985
        %v2187 = vpop.permute.xlu0 %2186
        %v2189 = vmul.f32 %v2187, %v2180
        %v2190 = vmul.f32 %v2187, %v2184
        %v2191 = vadd.f32 %v2175, %v2189
        %v2192 = vadd.f32 %v2176, %v2190
        %v2193 = vsel %vm255, %v2191, 0.0
        %v2194 = vsel %vm256, %v2192, 0.0
        %v2195 = vadd.f32 %v2059, %v2193
        %v2196 = vadd.f32 %v2060, %v2194
        %v2197 = vld [vmem:[%s4] sm:$0xff]
        %2199 = vset.pattern.permute.xlu0 0
        %2200 = vperm.xlu0 %2199, %v2197
        %v2201 = vpop.permute.xlu0 %2200
        %v2203 = vadd.f32 %v2195, %v2201
        %v2204 = vadd.f32 %v2196, %v2201
        %vm2205 = vcmp.ge.f32.partialorder %v2203, 0.0
        %vm2206 = vcmp.ge.f32.partialorder %v2204, 0.0
        %v2207 = vmul.f32 %v2203, 0.01
        %v2208 = vmul.f32 %v2204, 0.01
        %v2209 = vsel %vm2205, %v2203, %v2207
        %v2210 = vsel %vm2206, %v2204, %v2208
        %2211 = vst [vmem:[%s230] sm:$0xff] %v2209
        %2212 = vst [vmem:[%s230 + $0x8] sm:$0xff] %v2210
        %s2213 = sand.u32 %s138, 1
        %s2214 = scalar_lea.sflag [#allocation4], %s2213
        %s2215 = sand.u32 %s138, 1
        %s2216 = smul.addr %s2215, 16
        %s2217 = scalar_lea.vmem [#allocation5], %s2216
        // Predicated region
        $region45: #{tpu_custom_call.1} parent=39 // pred_check
          %p2218 = pneg %p148
        $region46: #{tpu_custom_call.1} parent=39 // pred_check_branch
          %2220 = sbr.rel (%p2218) target = $region48
        $region47: #{tpu_custom_call.1} parent=39 // pred_region
          %s2222 = ssub.s32 256, 256
          %2223 = vsyncadd %s2214, %s2222
          %s2224 = smul.addr %s20, 2
          %s2225 = smul.addr %s2224, 128
          %s2226 = scalar_lea.hbm %s5, %s2225
          %s2228 = sshll.u32 %s2217, 4
          %s2229 = int_to_ptr.vmem [resolvable:$true] %s2228
          %2231 = dma.vmem_to_hbm [thread:$0]  %s2229, 256, %s2226, %s2214
        $region48: #{tpu_custom_call.1} parent=39 // pred_fallthru
          _
      $region40: #{tpu_custom_call.1} parent=5 // pred_fallthru
        _
      %p2232 = scmp.le.s32.totalorder 2, %s15
      // Predicated region
      $region49: #{tpu_custom_call.1} parent=5 // pred_check
        %p2233 = pneg %p2232
      $region50: #{tpu_custom_call.1} parent=5 // pred_check_branch
        %2235 = sbr.rel (%p2233) target = $region52
      $region51: #{tpu_custom_call.1} parent=5 // pred_region
        %s2236 = ssub.s32 %s15, 2
        // Predicated region
        $region53: #{tpu_custom_call.1} parent=51 // pred_check
          %p2237 = pneg %p154
        $region54: #{tpu_custom_call.1} parent=51 // pred_check_branch
          %2239 = sbr.rel (%p2237) target = $region56
        $region55: #{tpu_custom_call.1} parent=51 // pred_region
          %s2240 = sand.u32 %s139, 1
          %s2241 = scalar_lea.sflag [#allocation4], %s2240
          %s2242 = sand.u32 %s139, 1
          %s2243 = smul.addr %s2242, 16
          %s2244 = scalar_lea.vmem [#allocation5], %s2243
          %2245 = dma.done %s2241, 256
        $region56: #{tpu_custom_call.1} parent=51 // pred_fallthru
          _
      $region52: #{tpu_custom_call.1} parent=5 // pred_fallthru
        _
    $region6: #{tpu_custom_call.1} parent=1 // loop_footer
      %s19 = sadd.s32 1, %s15
    $region7: #{tpu_custom_call.1} parent=1 // loop_footer_branch
      %14 = sbr.rel target = $region3
    $region8: #{tpu_custom_call.1} parent=1 // loop_exit
      _
    %2246 = vsyncpa [#allocation3], 1
    %s2247 = scalar_lea.sflag [#allocation3], 1
    %2248 = vsyncpa %s2247, 1
    %2249 = vsyncpa [#allocation4], 1
    %s2250 = scalar_lea.sflag [#allocation4], 1
    %2251 = vsyncpa %s2250, 1

</llo_original>
